<compile_context>
chip_gen: v5e
topology: v5e:2x2
jax: 0.10.0
libtpu: 0.0.40
codegen_flags: <defaults>
</compile_context>

<pallas_src>
import jax
import jax.numpy as jnp
from jax.experimental import pallas as pl
from jax.experimental.pallas import tpu as pltpu

NUM_CLASSES = 10  # args.num_classes
LANE = 128


def _round_up(x, m):
    return (x + m - 1) // m * m


# ----------------------------- Pallas kernels ------------------------------

def _conv_pool_relu_kernel(patches_ref, w_ref, b_ref, o_ref):
    # patches_ref: (4, TM, K) bf16 -- 4 = 2x2 pool-window offsets,
    #                                 TM rows of (n, pooled_h, pooled_w)
    # w_ref:       (K, COUT_PAD) bf16 (resident across the grid)
    # b_ref:       (1, COUT_PAD) f32  (resident across the grid)
    # o_ref:       (TM, COUT_PAD) f32 = relu(maxpool2x2(conv(x) + b))
    w = w_ref[...]
    acc = jnp.dot(patches_ref[0], w, preferred_element_type=jnp.float32)
    for d in range(1, 4):  # static unrolled loop over the pool window
        acc = jnp.maximum(
            acc, jnp.dot(patches_ref[d], w, preferred_element_type=jnp.float32))
    # max(conv_d + b) == max(conv_d) + b, then ReLU (all f32 on the VPU)
    o_ref[...] = jnp.maximum(acc + b_ref[...], 0.0)


def _mlp_kernel(x_ref, w1_ref, b1_ref, w2_ref, b2_ref, o_ref):
    # x_ref: (TN, 1024) bf16; w1: (1024, 512) bf16; b1: (1, 512) f32
    # w2: (512, C_PAD) bf16;  b2: (1, C_PAD) f32;   o_ref: (TN, C_PAD) f32
    h = jnp.dot(x_ref[...], w1_ref[...], preferred_element_type=jnp.float32)
    h = jnp.maximum(h + b1_ref[...], 0.0)
    o = jnp.dot(h.astype(w2_ref.dtype), w2_ref[...],
                preferred_element_type=jnp.float32)
    o_ref[...] = o + b2_ref[...]


# ------------------------------ JAX wrappers --------------------------------

def _im2col(x_nhwc, kh, kw):
    """(N,H,W,Cin) -> (N,OH,OW,Cin*KH*KW), column order = (cin, kh, kw)."""
    n, h, w, cin = x_nhwc.shape
    oh, ow = h - kh + 1, w - kw + 1
    taps = jnp.stack(
        [x_nhwc[:, i:i + oh, j:j + ow, :] for i in range(kh) for j in range(kw)],
        axis=3)                                    # (N, OH, OW, KH*KW, Cin)
    taps = jnp.transpose(taps, (0, 1, 2, 4, 3))    # (N, OH, OW, Cin, KH*KW)
    return taps.reshape(n, oh, ow, cin * kh * kw)


def conv_pool_relu(x_nhwc, w_oihw, b, *, tile_m=512):
    """relu(max_pool2d(conv2d(x, w, b), 2)); returns NHWC (N, PH, PW, Cout) f32."""
    cout, cin, kh, kw = w_oihw.shape
    n, h, w, _ = x_nhwc.shape
    oh, ow = h - kh + 1, w - kw + 1
    ph, pw = oh // 2, ow // 2
    k = cin * kh * kw
    m = n * ph * pw
    cout_pad = _round_up(cout, LANE)

    # ---- glue (fused by XLA under jit) ----
    # TODO(synk): im2col could move inside the kernel (DMA the NHWC tile and
    # build the K columns with shifted slices) to cut the ~KH*KW x HBM blowup.
    patches = _im2col(x_nhwc, kh, kw)                      # (N, OH, OW, K)
    groups = jnp.stack(
        [patches[:, dy::2, dx::2, :].reshape(m, k)
         for dy in (0, 1) for dx in (0, 1)], axis=0)       # (4, M, K)

    tm = min(tile_m, _round_up(m, 8))
    m_pad = _round_up(m, tm)
    if m_pad != m:
        groups = jnp.pad(groups, ((0, 0), (0, m_pad - m), (0, 0)))
    groups = groups.astype(jnp.bfloat16)

    w_flat = w_oihw.reshape(cout, k).T                     # (K, Cout), (cin,kh,kw)
    w_flat = jnp.pad(w_flat, ((0, 0), (0, cout_pad - cout))).astype(jnp.bfloat16)
    b2d = jnp.pad(b.reshape(1, cout).astype(jnp.float32),
                  ((0, 0), (0, cout_pad - cout)))

    out = pl.pallas_call(
        _conv_pool_relu_kernel,
        out_shape=jax.ShapeDtypeStruct((m_pad, cout_pad), jnp.float32),
        grid=(m_pad // tm,),
        in_specs=[
            pl.BlockSpec((4, tm, k), lambda i: (0, i, 0)),
            pl.BlockSpec((k, cout_pad), lambda i: (0, 0)),
            pl.BlockSpec((1, cout_pad), lambda i: (0, 0)),
        ],
        out_specs=pl.BlockSpec((tm, cout_pad), lambda i: (i, 0)),
        compiler_params=pltpu.CompilerParams(
            dimension_semantics=("parallel",)),
    )(groups, w_flat, b2d)
    return out[:m, :cout].reshape(n, ph, pw, cout)


def mlp(x, w_fc1_cols, b_fc1, w_fc2, b_fc2, *, tile_n=256):
    """x: (N, 1024) f32; w_fc1_cols: (1024, 512), columns already in x's order."""
    n, d_in = x.shape
    d_hid = w_fc1_cols.shape[1]
    c = w_fc2.shape[0]
    c_pad = _round_up(c, LANE)

    tn = min(tile_n, _round_up(n, 8))
    n_pad = _round_up(n, tn)
    if n_pad != n:
        x = jnp.pad(x, ((0, n_pad - n), (0, 0)))

    w2 = jnp.pad(w_fc2.T, ((0, 0), (0, c_pad - c))).astype(jnp.bfloat16)
    b2 = jnp.pad(b_fc2.reshape(1, c).astype(jnp.float32),
                 ((0, 0), (0, c_pad - c)))

    out = pl.pallas_call(
        _mlp_kernel,
        out_shape=jax.ShapeDtypeStruct((n_pad, c_pad), jnp.float32),
        grid=(n_pad // tn,),
        in_specs=[
            pl.BlockSpec((tn, d_in), lambda i: (i, 0)),
            pl.BlockSpec((d_in, d_hid), lambda i: (0, 0)),
            pl.BlockSpec((1, d_hid), lambda i: (0, 0)),
            pl.BlockSpec((d_hid, c_pad), lambda i: (0, 0)),
            pl.BlockSpec((1, c_pad), lambda i: (0, 0)),
        ],
        out_specs=pl.BlockSpec((tn, c_pad), lambda i: (i, 0)),
        compiler_params=pltpu.CompilerParams(
            dimension_semantics=("parallel",)),
    )(x.astype(jnp.bfloat16),
      w_fc1_cols.astype(jnp.bfloat16),
      b_fc1.reshape(1, d_hid).astype(jnp.float32),
      w2, b2)
    return out[:n, :c]


@jax.jit
def cnn_mnist_forward(x_nchw, params):
    n = x_nchw.shape[0]
    x = jnp.transpose(x_nchw, (0, 2, 3, 1))                       # NCHW -> NHWC
    h1 = conv_pool_relu(x, params["w_conv1"], params["b_conv1"])  # (N,12,12,32)
    h2 = conv_pool_relu(h1, params["w_conv2"], params["b_conv2"]) # (N, 4, 4,64)
    # NHWC flatten + trace-time column permutation of fc1's weight replaces the
    # runtime channel-major (NCHW) activation transpose between the kernels.
    flat = h2.reshape(n, -1)                                      # (N,1024) (h,w,c) order
    cc = params["w_conv2"].shape[0]
    ph, pw = h2.shape[1], h2.shape[2]
    w_fc1 = params["w_fc1"]                                       # (512, 1024), (c,h,w) cols
    w_fc1_cols = jnp.transpose(
        w_fc1.reshape(w_fc1.shape[0], cc, ph, pw), (0, 2, 3, 1)
    ).reshape(w_fc1.shape[0], -1).T                               # (1024, 512), (h,w,c) rows
    return mlp(flat, w_fc1_cols, params["b_fc1"],
               params["w_fc2"], params["b_fc2"])


# --------------------------- pure-JAX reference ------------------------------

def reference_forward(x, p):
    # Same math, bf16 matmul inputs with f32 accumulation (to match the MXU).
    bf = jnp.bfloat16

    def conv(x, w, b):
        y = jax.lax.conv_general_dilated(
            x.astype(bf), w.astype(bf), (1, 1), "VALID",
            dimension_numbers=("NCHW", "OIHW", "NCHW"),
            preferred_element_type=jnp.float32)
        return y + b.reshape(1, -1, 1, 1)

    def pool(x):
        return jax.lax.reduce_window(
            x, -jnp.inf, jax.lax.max, (1, 1, 2, 2), (1, 1, 2, 2), "VALID")

    h = jax.nn.relu(pool(conv(x, p["w_conv1"], p["b_conv1"])))
    h = jax.nn.relu(pool(conv(h, p["w_conv2"], p["b_conv2"])))
    h = h.reshape(h.shape[0], -1)                                 # NCHW flatten
    h = jax.nn.relu(
        jnp.dot(h.astype(bf), p["w_fc1"].T.astype(bf),
                preferred_element_type=jnp.float32) + p["b_fc1"])
    return jnp.dot(h.astype(bf), p["w_fc2"].T.astype(bf),
                   preferred_element_type=jnp.float32) + p["b_fc2"]


# ---------------------------------- main -------------------------------------

if __name__ == "__main__":
    key = jax.random.PRNGKey(0)
    ks = jax.random.split(key, 9)

    params = {
        # conv1: Conv2d(1, 32, kernel_size=5)  -> weight (32, 1, 5, 5)
        "w_conv1": jax.random.normal(ks[0], (32, 1, 5, 5), jnp.float32) * (1.0 / 25.0) ** 0.5,
        "b_conv1": jax.random.normal(ks[1], (32,), jnp.float32) * 0.05,
        # conv2: Conv2d(32, 64, kernel_size=5) -> weight (64, 32, 5, 5)
        "w_conv2": jax.random.normal(ks[2], (64, 32, 5, 5), jnp.float32) * (1.0 / 800.0) ** 0.5,
        "b_conv2": jax.random.normal(ks[3], (64,), jnp.float32) * 0.05,
        # fc1: Linear(1024, 512) -> weight (512, 1024)
        "w_fc1": jax.random.normal(ks[4], (512, 1024), jnp.float32) * (1.0 / 1024.0) ** 0.5,
        "b_fc1": jax.random.normal(ks[5], (512,), jnp.float32) * 0.05,
        # fc2: Linear(512, num_classes) -> weight (C, 512)
        "w_fc2": jax.random.normal(ks[6], (NUM_CLASSES, 512), jnp.float32) * (1.0 / 512.0) ** 0.5,
        "b_fc2": jax.random.normal(ks[7], (NUM_CLASSES,), jnp.float32) * 0.05,
    }

    # MNIST-shaped input (28x28 is required by fc1's 1024 = 64*4*4), small batch.
    x = jax.random.normal(ks[8], (2, 1, 28, 28), jnp.float32)

    out = jax.block_until_ready(cnn_mnist_forward(x, params))
    ref = jax.block_until_ready(reference_forward(x, params))

    assert out.shape == (2, NUM_CLASSES), out.shape
    assert jnp.allclose(out, ref, rtol=2e-2, atol=2e-2), (
        f"mismatch: max abs err {jnp.max(jnp.abs(out - ref))}")
    print("KERNEL_OK")
</pallas_src>

<mosaic_0001>
module attributes {stable_mosaic.version = 11 : i64} {
  func.func @_conv_pool_relu_kernel(%arg0: i32, %arg1: memref<4x288x25xbf16, #tpu.memory_space<vmem>>, %arg2: memref<25x128xbf16, #tpu.memory_space<vmem>>, %arg3: memref<1x128xf32, #tpu.memory_space<vmem>>, %arg4: memref<288x128xf32, #tpu.memory_space<vmem>>) attributes {dimension_semantics = [#tpu.dimension_semantics<parallel>], iteration_bounds = array<i64: 1>, scalar_prefetch = 0 : i64, scratch_operands = 0 : i64, tpu.core_type = #tpu.core_type<tc>, window_params = [{transform_indices = @transform_0, window_bounds = array<i64: 4, 288, 25>}, {pipeline_mode = #tpu.pipeline_mode<synchronous>, transform_indices = @transform_1, window_bounds = array<i64: 25, 128>}, {pipeline_mode = #tpu.pipeline_mode<synchronous>, transform_indices = @transform_2, window_bounds = array<i64: 1, 128>}, {transform_indices = @transform_3, window_bounds = array<i64: 288, 128>}]} {
    %c0 = arith.constant 0 : index
    %c0_0 = arith.constant 0 : index
    %0 = vector.load %arg2[%c0, %c0_0] : memref<25x128xbf16, #tpu.memory_space<vmem>>, vector<25x128xbf16>
    %c0_1 = arith.constant 0 : index
    %c0_2 = arith.constant 0 : index
    %c0_3 = arith.constant 0 : index
    %1 = vector.load %arg1[%c0_1, %c0_2, %c0_3] : memref<4x288x25xbf16, #tpu.memory_space<vmem>>, vector<1x288x25xbf16>
    %2 = vector.shape_cast %1 : vector<1x288x25xbf16> to vector<288x25xbf16>
    %cst = arith.constant dense<0.000000e+00> : vector<288x128xf32>
    %3 = tpu.matmul %2, %0, %cst {dimension_numbers = #tpu.dot_dimension_numbers<[1], [0], [0], [1], [0, 0, 1, 1], [], []>} : vector<288x25xbf16>, vector<25x128xbf16>, vector<288x128xf32> -> vector<288x128xf32>
    %c1 = arith.constant 1 : index
    %c0_4 = arith.constant 0 : index
    %c0_5 = arith.constant 0 : index
    %4 = vector.load %arg1[%c1, %c0_4, %c0_5] : memref<4x288x25xbf16, #tpu.memory_space<vmem>>, vector<1x288x25xbf16>
    %5 = vector.shape_cast %4 : vector<1x288x25xbf16> to vector<288x25xbf16>
    %cst_6 = arith.constant dense<0.000000e+00> : vector<288x128xf32>
    %6 = tpu.matmul %5, %0, %cst_6 {dimension_numbers = #tpu.dot_dimension_numbers<[1], [0], [0], [1], [0, 0, 1, 1], [], []>} : vector<288x25xbf16>, vector<25x128xbf16>, vector<288x128xf32> -> vector<288x128xf32>
    %7 = arith.maximumf %3, %6 : vector<288x128xf32>
    %c2 = arith.constant 2 : index
    %c0_7 = arith.constant 0 : index
    %c0_8 = arith.constant 0 : index
    %8 = vector.load %arg1[%c2, %c0_7, %c0_8] : memref<4x288x25xbf16, #tpu.memory_space<vmem>>, vector<1x288x25xbf16>
    %9 = vector.shape_cast %8 : vector<1x288x25xbf16> to vector<288x25xbf16>
    %cst_9 = arith.constant dense<0.000000e+00> : vector<288x128xf32>
    %10 = tpu.matmul %9, %0, %cst_9 {dimension_numbers = #tpu.dot_dimension_numbers<[1], [0], [0], [1], [0, 0, 1, 1], [], []>} : vector<288x25xbf16>, vector<25x128xbf16>, vector<288x128xf32> -> vector<288x128xf32>
    %11 = arith.maximumf %7, %10 : vector<288x128xf32>
    %c3 = arith.constant 3 : index
    %c0_10 = arith.constant 0 : index
    %c0_11 = arith.constant 0 : index
    %12 = vector.load %arg1[%c3, %c0_10, %c0_11] : memref<4x288x25xbf16, #tpu.memory_space<vmem>>, vector<1x288x25xbf16>
    %13 = vector.shape_cast %12 : vector<1x288x25xbf16> to vector<288x25xbf16>
    %cst_12 = arith.constant dense<0.000000e+00> : vector<288x128xf32>
    %14 = tpu.matmul %13, %0, %cst_12 {dimension_numbers = #tpu.dot_dimension_numbers<[1], [0], [0], [1], [0, 0, 1, 1], [], []>} : vector<288x25xbf16>, vector<25x128xbf16>, vector<288x128xf32> -> vector<288x128xf32>
    %15 = arith.maximumf %11, %14 : vector<288x128xf32>
    %c0_13 = arith.constant 0 : index
    %c0_14 = arith.constant 0 : index
    %16 = vector.load %arg3[%c0_13, %c0_14] : memref<1x128xf32, #tpu.memory_space<vmem>>, vector<1x128xf32>
    %17 = vector.broadcast %16 : vector<1x128xf32> to vector<288x128xf32>
    %18 = arith.addf %15, %17 : vector<288x128xf32>
    %cst_15 = arith.constant 0.000000e+00 : f32
    %19 = vector.broadcast %cst_15 : f32 to vector<288x128xf32>
    %20 = arith.maximumf %18, %19 : vector<288x128xf32>
    %c0_16 = arith.constant 0 : index
    %c0_17 = arith.constant 0 : index
    %21 = vector.load %arg4[%c0_16, %c0_17] : memref<288x128xf32, #tpu.memory_space<vmem>>, vector<288x128xf32>
    tpu.vector_store %arg4[%c0_16, %c0_17], %20 {strides = array<i32>} : memref<288x128xf32, #tpu.memory_space<vmem>>, vector<288x128xf32>,
    return
  }
  func.func @transform_0(%arg0: i32) -> (i32, i32, i32) {
    %c0_i32 = arith.constant 0 : i32
    %c0_i32_0 = arith.constant 0 : i32
    %c0_i32_1 = arith.constant 0 : i32
    return %c0_i32, %arg0, %c0_i32_0 : i32, i32, i32
  }
  func.func @transform_1(%arg0: i32) -> (i32, i32) {
    %c0_i32 = arith.constant 0 : i32
    %c0_i32_0 = arith.constant 0 : i32
    %c0_i32_1 = arith.constant 0 : i32
    return %c0_i32, %c0_i32_0 : i32, i32
  }
  func.func @transform_2(%arg0: i32) -> (i32, i32) {
    %c0_i32 = arith.constant 0 : i32
    %c0_i32_0 = arith.constant 0 : i32
    %c0_i32_1 = arith.constant 0 : i32
    return %c0_i32, %c0_i32_0 : i32, i32
  }
  func.func @transform_3(%arg0: i32) -> (i32, i32) {
    %c0_i32 = arith.constant 0 : i32
    %c0_i32_0 = arith.constant 0 : i32
    return %arg0, %c0_i32 : i32, i32
  }
}

module attributes {stable_mosaic.version = 11 : i64} {
  func.func @_conv_pool_relu_kernel(%arg0: i32, %arg1: memref<4x32x800xbf16, #tpu.memory_space<vmem>>, %arg2: memref<800x128xbf16, #tpu.memory_space<vmem>>, %arg3: memref<1x128xf32, #tpu.memory_space<vmem>>, %arg4: memref<32x128xf32, #tpu.memory_space<vmem>>) attributes {dimension_semantics = [#tpu.dimension_semantics<parallel>], iteration_bounds = array<i64: 1>, scalar_prefetch = 0 : i64, scratch_operands = 0 : i64, tpu.core_type = #tpu.core_type<tc>, window_params = [{transform_indices = @transform_0, window_bounds = array<i64: 4, 32, 800>}, {pipeline_mode = #tpu.pipeline_mode<synchronous>, transform_indices = @transform_1, window_bounds = array<i64: 800, 128>}, {pipeline_mode = #tpu.pipeline_mode<synchronous>, transform_indices = @transform_2, window_bounds = array<i64: 1, 128>}, {transform_indices = @transform_3, window_bounds = array<i64: 32, 128>}]} {
    %c0 = arith.constant 0 : index
    %c0_0 = arith.constant 0 : index
    %0 = vector.load %arg2[%c0, %c0_0] : memref<800x128xbf16, #tpu.memory_space<vmem>>, vector<800x128xbf16>
    %c0_1 = arith.constant 0 : index
    %c0_2 = arith.constant 0 : index
    %c0_3 = arith.constant 0 : index
    %1 = vector.load %arg1[%c0_1, %c0_2, %c0_3] : memref<4x32x800xbf16, #tpu.memory_space<vmem>>, vector<1x32x800xbf16>
    %2 = vector.shape_cast %1 : vector<1x32x800xbf16> to vector<32x800xbf16>
    %cst = arith.constant dense<0.000000e+00> : vector<32x128xf32>
    %3 = tpu.matmul %2, %0, %cst {dimension_numbers = #tpu.dot_dimension_numbers<[1], [0], [0], [1], [0, 0, 1, 1], [], []>} : vector<32x800xbf16>, vector<800x128xbf16>, vector<32x128xf32> -> vector<32x128xf32>
    %c1 = arith.constant 1 : index
    %c0_4 = arith.constant 0 : index
    %c0_5 = arith.constant 0 : index
    %4 = vector.load %arg1[%c1, %c0_4, %c0_5] : memref<4x32x800xbf16, #tpu.memory_space<vmem>>, vector<1x32x800xbf16>
    %5 = vector.shape_cast %4 : vector<1x32x800xbf16> to vector<32x800xbf16>
    %cst_6 = arith.constant dense<0.000000e+00> : vector<32x128xf32>
    %6 = tpu.matmul %5, %0, %cst_6 {dimension_numbers = #tpu.dot_dimension_numbers<[1], [0], [0], [1], [0, 0, 1, 1], [], []>} : vector<32x800xbf16>, vector<800x128xbf16>, vector<32x128xf32> -> vector<32x128xf32>
    %7 = arith.maximumf %3, %6 : vector<32x128xf32>
    %c2 = arith.constant 2 : index
    %c0_7 = arith.constant 0 : index
    %c0_8 = arith.constant 0 : index
    %8 = vector.load %arg1[%c2, %c0_7, %c0_8] : memref<4x32x800xbf16, #tpu.memory_space<vmem>>, vector<1x32x800xbf16>
    %9 = vector.shape_cast %8 : vector<1x32x800xbf16> to vector<32x800xbf16>
    %cst_9 = arith.constant dense<0.000000e+00> : vector<32x128xf32>
    %10 = tpu.matmul %9, %0, %cst_9 {dimension_numbers = #tpu.dot_dimension_numbers<[1], [0], [0], [1], [0, 0, 1, 1], [], []>} : vector<32x800xbf16>, vector<800x128xbf16>, vector<32x128xf32> -> vector<32x128xf32>
    %11 = arith.maximumf %7, %10 : vector<32x128xf32>
    %c3 = arith.constant 3 : index
    %c0_10 = arith.constant 0 : index
    %c0_11 = arith.constant 0 : index
    %12 = vector.load %arg1[%c3, %c0_10, %c0_11] : memref<4x32x800xbf16, #tpu.memory_space<vmem>>, vector<1x32x800xbf16>
    %13 = vector.shape_cast %12 : vector<1x32x800xbf16> to vector<32x800xbf16>
    %cst_12 = arith.constant dense<0.000000e+00> : vector<32x128xf32>
    %14 = tpu.matmul %13, %0, %cst_12 {dimension_numbers = #tpu.dot_dimension_numbers<[1], [0], [0], [1], [0, 0, 1, 1], [], []>} : vector<32x800xbf16>, vector<800x128xbf16>, vector<32x128xf32> -> vector<32x128xf32>
    %15 = arith.maximumf %11, %14 : vector<32x128xf32>
    %c0_13 = arith.constant 0 : index
    %c0_14 = arith.constant 0 : index
    %16 = vector.load %arg3[%c0_13, %c0_14] : memref<1x128xf32, #tpu.memory_space<vmem>>, vector<1x128xf32>
    %17 = vector.broadcast %16 : vector<1x128xf32> to vector<32x128xf32>
    %18 = arith.addf %15, %17 : vector<32x128xf32>
    %cst_15 = arith.constant 0.000000e+00 : f32
    %19 = vector.broadcast %cst_15 : f32 to vector<32x128xf32>
    %20 = arith.maximumf %18, %19 : vector<32x128xf32>
    %c0_16 = arith.constant 0 : index
    %c0_17 = arith.constant 0 : index
    %21 = vector.load %arg4[%c0_16, %c0_17] : memref<32x128xf32, #tpu.memory_space<vmem>>, vector<32x128xf32>
    tpu.vector_store %arg4[%c0_16, %c0_17], %20 {strides = array<i32>} : memref<32x128xf32, #tpu.memory_space<vmem>>, vector<32x128xf32>,
    return
  }
  func.func @transform_0(%arg0: i32) -> (i32, i32, i32) {
    %c0_i32 = arith.constant 0 : i32
    %c0_i32_0 = arith.constant 0 : i32
    %c0_i32_1 = arith.constant 0 : i32
    return %c0_i32, %arg0, %c0_i32_0 : i32, i32, i32
  }
  func.func @transform_1(%arg0: i32) -> (i32, i32) {
    %c0_i32 = arith.constant 0 : i32
    %c0_i32_0 = arith.constant 0 : i32
    %c0_i32_1 = arith.constant 0 : i32
    return %c0_i32, %c0_i32_0 : i32, i32
  }
  func.func @transform_2(%arg0: i32) -> (i32, i32) {
    %c0_i32 = arith.constant 0 : i32
    %c0_i32_0 = arith.constant 0 : i32
    %c0_i32_1 = arith.constant 0 : i32
    return %c0_i32, %c0_i32_0 : i32, i32
  }
  func.func @transform_3(%arg0: i32) -> (i32, i32) {
    %c0_i32 = arith.constant 0 : i32
    %c0_i32_0 = arith.constant 0 : i32
    return %arg0, %c0_i32 : i32, i32
  }
}

module attributes {stable_mosaic.version = 11 : i64} {
  func.func @_mlp_kernel(%arg0: i32, %arg1: memref<8x1024xbf16, #tpu.memory_space<vmem>>, %arg2: memref<1024x512xbf16, #tpu.memory_space<vmem>>, %arg3: memref<1x512xf32, #tpu.memory_space<vmem>>, %arg4: memref<512x128xbf16, #tpu.memory_space<vmem>>, %arg5: memref<1x128xf32, #tpu.memory_space<vmem>>, %arg6: memref<8x128xf32, #tpu.memory_space<vmem>>) attributes {dimension_semantics = [#tpu.dimension_semantics<parallel>], iteration_bounds = array<i64: 1>, scalar_prefetch = 0 : i64, scratch_operands = 0 : i64, tpu.core_type = #tpu.core_type<tc>, window_params = [{transform_indices = @transform_0, window_bounds = array<i64: 8, 1024>}, {pipeline_mode = #tpu.pipeline_mode<synchronous>, transform_indices = @transform_1, window_bounds = array<i64: 1024, 512>}, {pipeline_mode = #tpu.pipeline_mode<synchronous>, transform_indices = @transform_2, window_bounds = array<i64: 1, 512>}, {pipeline_mode = #tpu.pipeline_mode<synchronous>, transform_indices = @transform_3, window_bounds = array<i64: 512, 128>}, {pipeline_mode = #tpu.pipeline_mode<synchronous>, transform_indices = @transform_4, window_bounds = array<i64: 1, 128>}, {transform_indices = @transform_5, window_bounds = array<i64: 8, 128>}]} {
    %c0 = arith.constant 0 : index
    %c0_0 = arith.constant 0 : index
    %0 = vector.load %arg1[%c0, %c0_0] : memref<8x1024xbf16, #tpu.memory_space<vmem>>, vector<8x1024xbf16>
    %c0_1 = arith.constant 0 : index
    %c0_2 = arith.constant 0 : index
    %1 = vector.load %arg2[%c0_1, %c0_2] : memref<1024x512xbf16, #tpu.memory_space<vmem>>, vector<1024x512xbf16>
    %cst = arith.constant dense<0.000000e+00> : vector<8x512xf32>
    %2 = tpu.matmul %0, %1, %cst {dimension_numbers = #tpu.dot_dimension_numbers<[1], [0], [0], [1], [0, 0, 1, 1], [], []>} : vector<8x1024xbf16>, vector<1024x512xbf16>, vector<8x512xf32> -> vector<8x512xf32>
    %c0_3 = arith.constant 0 : index
    %c0_4 = arith.constant 0 : index
    %3 = vector.load %arg3[%c0_3, %c0_4] : memref<1x512xf32, #tpu.memory_space<vmem>>, vector<1x512xf32>
    %4 = vector.broadcast %3 : vector<1x512xf32> to vector<8x512xf32>
    %5 = arith.addf %2, %4 : vector<8x512xf32>
    %cst_5 = arith.constant 0.000000e+00 : f32
    %6 = vector.broadcast %cst_5 : f32 to vector<8x512xf32>
    %7 = arith.maximumf %5, %6 : vector<8x512xf32>
    %8 = arith.truncf %7 : vector<8x512xf32> to vector<8x512xbf16>
    %c0_6 = arith.constant 0 : index
    %c0_7 = arith.constant 0 : index
    %9 = vector.load %arg4[%c0_6, %c0_7] : memref<512x128xbf16, #tpu.memory_space<vmem>>, vector<512x128xbf16>
    %cst_8 = arith.constant dense<0.000000e+00> : vector<8x128xf32>
    %10 = tpu.matmul %8, %9, %cst_8 {dimension_numbers = #tpu.dot_dimension_numbers<[1], [0], [0], [1], [0, 0, 1, 1], [], []>} : vector<8x512xbf16>, vector<512x128xbf16>, vector<8x128xf32> -> vector<8x128xf32>
    %c0_9 = arith.constant 0 : index
    %c0_10 = arith.constant 0 : index
    %11 = vector.load %arg5[%c0_9, %c0_10] : memref<1x128xf32, #tpu.memory_space<vmem>>, vector<1x128xf32>
    %12 = vector.broadcast %11 : vector<1x128xf32> to vector<8x128xf32>
    %13 = arith.addf %10, %12 : vector<8x128xf32>
    %c0_11 = arith.constant 0 : index
    %c0_12 = arith.constant 0 : index
    %14 = vector.load %arg6[%c0_11, %c0_12] : memref<8x128xf32, #tpu.memory_space<vmem>>, vector<8x128xf32>
    tpu.vector_store %arg6[%c0_11, %c0_12], %13 {strides = array<i32>} : memref<8x128xf32, #tpu.memory_space<vmem>>, vector<8x128xf32>,
    return
  }
  func.func @transform_0(%arg0: i32) -> (i32, i32) {
    %c0_i32 = arith.constant 0 : i32
    %c0_i32_0 = arith.constant 0 : i32
    return %arg0, %c0_i32 : i32, i32
  }
  func.func @transform_1(%arg0: i32) -> (i32, i32) {
    %c0_i32 = arith.constant 0 : i32
    %c0_i32_0 = arith.constant 0 : i32
    %c0_i32_1 = arith.constant 0 : i32
    return %c0_i32, %c0_i32_0 : i32, i32
  }
  func.func @transform_2(%arg0: i32) -> (i32, i32) {
    %c0_i32 = arith.constant 0 : i32
    %c0_i32_0 = arith.constant 0 : i32
    %c0_i32_1 = arith.constant 0 : i32
    return %c0_i32, %c0_i32_0 : i32, i32
  }
  func.func @transform_3(%arg0: i32) -> (i32, i32) {
    %c0_i32 = arith.constant 0 : i32
    %c0_i32_0 = arith.constant 0 : i32
    %c0_i32_1 = arith.constant 0 : i32
    return %c0_i32, %c0_i32_0 : i32, i32
  }
  func.func @transform_4(%arg0: i32) -> (i32, i32) {
    %c0_i32 = arith.constant 0 : i32
    %c0_i32_0 = arith.constant 0 : i32
    %c0_i32_1 = arith.constant 0 : i32
    return %c0_i32, %c0_i32_0 : i32, i32
  }
  func.func @transform_5(%arg0: i32) -> (i32, i32) {
    %c0_i32 = arith.constant 0 : i32
    %c0_i32_0 = arith.constant 0 : i32
    return %arg0, %c0_i32 : i32, i32
  }
}

</mosaic_0001>

<llo_original>
// kernel: cnn_mnist_forward.3
$region0: #{cnn_mnist_forward.3}
  #allocation0 [shape = 'u32[]', space=smem, size = 0x4, offset = 0x4, fixed_abs, tag = 'smem constant byte address 0x4 - core index']
  #allocation1 [shape = 'u32[72,128]{1,0:T(1,128)}', space=vmem, size = 0x9000, scoped, tag = 'internal scratch']
  %s0 = inlined_call_operand.vmem [shape: bf16[4,288,25], index: 0, kind: input, shape index: {}]
  %s1 = inlined_call_operand.vmem [shape: bf16[25,128], index: 1, kind: input, shape index: {}]
  %s2 = inlined_call_operand.vmem [shape: f32[1,128], index: 2, kind: input, shape index: {}]
  %s3 = inlined_call_operand.vmem [shape: f32[288,128], index: 3, kind: output, shape index: {}]
  %s4 = sld [smem:[#allocation0]]
  $region22: #{cnn_mnist_forward.3} parent=0
    _
  %s6 = ssub.s32 1, %s4
  %s7 = scalar_select 0, %s6, %s4
  // Predicated region
  $region2: #{cnn_mnist_forward.3} parent=0 // pred_check
    _
  $region3: #{cnn_mnist_forward.3} parent=0 // pred_check_branch
    %9 = sbr.rel (0) target = $region5
  $region4: #{cnn_mnist_forward.3} parent=0 // pred_region
    _
  $region5: #{cnn_mnist_forward.3} parent=0 // pred_fallthru
    _
  // Predicated region
  $region6: #{cnn_mnist_forward.3} parent=0 // pred_check
    _
  $region7: #{cnn_mnist_forward.3} parent=0 // pred_check_branch
    %11 = sbr.rel (0) target = $region9
  $region8: #{cnn_mnist_forward.3} parent=0 // pred_region
    _
  $region9: #{cnn_mnist_forward.3} parent=0 // pred_fallthru
    _
  // Predicated region
  $region10: #{cnn_mnist_forward.3} parent=0 // pred_check
    _
  $region11: #{cnn_mnist_forward.3} parent=0 // pred_check_branch
    %13 = sbr.rel (0) target = $region13
  $region12: #{cnn_mnist_forward.3} parent=0 // pred_region
    _
  $region13: #{cnn_mnist_forward.3} parent=0 // pred_fallthru
    _
  %v15 = vld [vmem:[%s1] sm:$0xf]
  %v16 = vld [vmem:[%s1 + $0x4] sm:$0xf]
  %v17 = vld [vmem:[%s1 + $0x8] sm:$0xf]
  %v18 = vld [vmem:[%s1 + $0xc] sm:$0x1]
  %v19 = vld [vmem:[%s0] sm:$0xf]
  %v20 = vld [vmem:[%s0 + $0x4] sm:$0xf]
  %v21 = vld [vmem:[%s0 + $0x8] sm:$0xf]
  %v22 = vld [vmem:[%s0 + $0xc] sm:$0xf]
  %v23 = vld [vmem:[%s0 + $0x10] sm:$0xf]
  %v24 = vld [vmem:[%s0 + $0x14] sm:$0xf]
  %v25 = vld [vmem:[%s0 + $0x18] sm:$0xf]
  %v26 = vld [vmem:[%s0 + $0x1c] sm:$0xf]
  %v27 = vld [vmem:[%s0 + $0x20] sm:$0xf]
  %v28 = vld [vmem:[%s0 + $0x24] sm:$0xf]
  %v29 = vld [vmem:[%s0 + $0x28] sm:$0xf]
  %v30 = vld [vmem:[%s0 + $0x2c] sm:$0xf]
  %v31 = vld [vmem:[%s0 + $0x30] sm:$0xf]
  %v32 = vld [vmem:[%s0 + $0x34] sm:$0xf]
  %v33 = vld [vmem:[%s0 + $0x38] sm:$0xf]
  %v34 = vld [vmem:[%s0 + $0x3c] sm:$0xf]
  %v35 = vld [vmem:[%s0 + $0x40] sm:$0xf]
  %v36 = vld [vmem:[%s0 + $0x44] sm:$0xf]
  %v37 = vld [vmem:[%s0 + $0x48] sm:$0xf]
  %v38 = vld [vmem:[%s0 + $0x4c] sm:$0xf]
  %v39 = vld [vmem:[%s0 + $0x50] sm:$0xf]
  %v40 = vld [vmem:[%s0 + $0x54] sm:$0xf]
  %v41 = vld [vmem:[%s0 + $0x58] sm:$0xf]
  %v42 = vld [vmem:[%s0 + $0x5c] sm:$0xf]
  %v43 = vld [vmem:[%s0 + $0x60] sm:$0xf]
  %v44 = vld [vmem:[%s0 + $0x64] sm:$0xf]
  %v45 = vld [vmem:[%s0 + $0x68] sm:$0xf]
  %v46 = vld [vmem:[%s0 + $0x6c] sm:$0xf]
  %v47 = vld [vmem:[%s0 + $0x70] sm:$0xf]
  %v48 = vld [vmem:[%s0 + $0x74] sm:$0xf]
  %v49 = vld [vmem:[%s0 + $0x78] sm:$0xf]
  %v50 = vld [vmem:[%s0 + $0x7c] sm:$0xf]
  %v51 = vld [vmem:[%s0 + $0x80] sm:$0xf]
  %v52 = vld [vmem:[%s0 + $0x84] sm:$0xf]
  %v53 = vld [vmem:[%s0 + $0x88] sm:$0xf]
  %v54 = vld [vmem:[%s0 + $0x8c] sm:$0xf]
  %v91 = vunpack.c.l.b16 %v19
  %v92 = vunpack.c.l.b16 %v20
  %v93 = vunpack.c.l.b16 %v21
  %v94 = vunpack.c.l.b16 %v22
  %v95 = vunpack.c.l.b16 %v23
  %v96 = vunpack.c.l.b16 %v24
  %v97 = vunpack.c.l.b16 %v25
  %v98 = vunpack.c.l.b16 %v26
  %v99 = vunpack.c.l.b16 %v27
  %v100 = vunpack.c.l.b16 %v28
  %v101 = vunpack.c.l.b16 %v29
  %v102 = vunpack.c.l.b16 %v30
  %v103 = vunpack.c.l.b16 %v31
  %v104 = vunpack.c.l.b16 %v32
  %v105 = vunpack.c.l.b16 %v33
  %v106 = vunpack.c.l.b16 %v34
  %v107 = vunpack.c.l.b16 %v35
  %v108 = vunpack.c.l.b16 %v36
  %v109 = vunpack.c.l.b16 %v37
  %v110 = vunpack.c.l.b16 %v38
  %v111 = vunpack.c.l.b16 %v39
  %v112 = vunpack.c.l.b16 %v40
  %v113 = vunpack.c.l.b16 %v41
  %v114 = vunpack.c.l.b16 %v42
  %v115 = vunpack.c.l.b16 %v43
  %v116 = vunpack.c.l.b16 %v44
  %v117 = vunpack.c.l.b16 %v45
  %v118 = vunpack.c.l.b16 %v46
  %v119 = vunpack.c.l.b16 %v47
  %v120 = vunpack.c.l.b16 %v48
  %v121 = vunpack.c.l.b16 %v49
  %v122 = vunpack.c.l.b16 %v50
  %v123 = vunpack.c.l.b16 %v51
  %v124 = vunpack.c.l.b16 %v52
  %v125 = vunpack.c.l.b16 %v53
  %v126 = vunpack.c.l.b16 %v54
  %v127 = vpack.c.b16 %v92, %v91
  %v128 = vpack.c.b16 %v94, %v93
  %v129 = vpack.c.b16 %v96, %v95
  %v130 = vpack.c.b16 %v98, %v97
  %v131 = vpack.c.b16 %v100, %v99
  %v132 = vpack.c.b16 %v102, %v101
  %v133 = vpack.c.b16 %v104, %v103
  %v134 = vpack.c.b16 %v106, %v105
  %v135 = vpack.c.b16 %v108, %v107
  %v136 = vpack.c.b16 %v110, %v109
  %v137 = vpack.c.b16 %v112, %v111
  %v138 = vpack.c.b16 %v114, %v113
  %v139 = vpack.c.b16 %v116, %v115
  %v140 = vpack.c.b16 %v118, %v117
  %v141 = vpack.c.b16 %v120, %v119
  %v142 = vpack.c.b16 %v122, %v121
  %v143 = vpack.c.b16 %v124, %v123
  %v144 = vpack.c.b16 %v126, %v125
  %v149 = vunpack.c.l.b16 %v15
  %v150 = vunpack.c.l.b16 %v16
  %v151 = vunpack.c.l.b16 %v17
  %v152 = vunpack.c.l.b16 %v18
  %v153 = vpack.c.b16 %v150, %v149
  %v154 = vpack.c.b16 %v152, %v151
  %vm156 = vcmask 203776
  %v158 = vsel %vm156, %v127, 0
  %v161 = vsel %vm156, %v128, 0
  %v164 = vsel %vm156, %v129, 0
  %v167 = vsel %vm156, %v130, 0
  %v170 = vsel %vm156, %v131, 0
  %v173 = vsel %vm156, %v132, 0
  %v176 = vsel %vm156, %v133, 0
  %v179 = vsel %vm156, %v134, 0
  %v182 = vsel %vm156, %v135, 0
  %v185 = vsel %vm156, %v136, 0
  %v188 = vsel %vm156, %v137, 0
  %v191 = vsel %vm156, %v138, 0
  %v194 = vsel %vm156, %v139, 0
  %v197 = vsel %vm156, %v140, 0
  %v200 = vsel %vm156, %v141, 0
  %v203 = vsel %vm156, %v142, 0
  %v206 = vsel %vm156, %v143, 0
  %v209 = vsel %vm156, %v144, 0
  %vm211 = vcmask 1043456
  %vm212 = vcmask 1044480
  %v213 = vsel %vm211, 4294967295, 65535
  %v214 = vsel %vm212, %v213, 0
  %v216 = vand.u32 %v154, %v214
  %218 = vmatpush.bf16.msra.mxu0 0
  %219 = vmatpush.bf16.msra.mxu0 0
  %220 = vmatpush.bf16.msra.mxu0 0
  %221 = vmatpush.bf16.msra.mxu0 0
  %222 = vmatpush.bf16.msra.mxu0 0
  %223 = vmatpush.bf16.msra.mxu0 0
  %224 = vmatpush.bf16.msra.mxu0 %v216
  %225 = vmatpush.bf16.msra.mxu0 %v153
  %226 = vmatmul.bf16.gmra.mxu0 %v158
  %v227 = vpop.f32.mrf.mxu0
  %v228 = vadd.f32 0.0, %v227
  %v229 = vpop.f32.mrf.mxu0
  %v230 = vadd.f32 0.0, %v229
  %231 = vmatmul.bf16.gmra.mxu0 %v161
  %v232 = vpop.f32.mrf.mxu0
  %v233 = vadd.f32 0.0, %v232
  %v234 = vpop.f32.mrf.mxu0
  %v235 = vadd.f32 0.0, %v234
  %236 = vmatmul.bf16.gmra.mxu0 %v164
  %v237 = vpop.f32.mrf.mxu0
  %v238 = vadd.f32 0.0, %v237
  %v239 = vpop.f32.mrf.mxu0
  %v240 = vadd.f32 0.0, %v239
  %241 = vmatmul.bf16.gmra.mxu0 %v167
  %v242 = vpop.f32.mrf.mxu0
  %v243 = vadd.f32 0.0, %v242
  %v244 = vpop.f32.mrf.mxu0
  %v245 = vadd.f32 0.0, %v244
  %246 = vmatmul.bf16.gmra.mxu0 %v170
  %v247 = vpop.f32.mrf.mxu0
  %v248 = vadd.f32 0.0, %v247
  %v249 = vpop.f32.mrf.mxu0
  %v250 = vadd.f32 0.0, %v249
  %251 = vmatmul.bf16.gmra.mxu0 %v173
  %v252 = vpop.f32.mrf.mxu0
  %v253 = vadd.f32 0.0, %v252
  %v254 = vpop.f32.mrf.mxu0
  %v255 = vadd.f32 0.0, %v254
  %256 = vmatmul.bf16.gmra.mxu0 %v176
  %v257 = vpop.f32.mrf.mxu0
  %v258 = vadd.f32 0.0, %v257
  %v259 = vpop.f32.mrf.mxu0
  %v260 = vadd.f32 0.0, %v259
  %261 = vmatmul.bf16.gmra.mxu0 %v179
  %v262 = vpop.f32.mrf.mxu0
  %v263 = vadd.f32 0.0, %v262
  %v264 = vpop.f32.mrf.mxu0
  %v265 = vadd.f32 0.0, %v264
  %266 = vmatmul.bf16.gmra.mxu0 %v182
  %v267 = vpop.f32.mrf.mxu0
  %v268 = vadd.f32 0.0, %v267
  %v269 = vpop.f32.mrf.mxu0
  %v270 = vadd.f32 0.0, %v269
  %271 = vmatmul.bf16.gmra.mxu0 %v185
  %v272 = vpop.f32.mrf.mxu0
  %v273 = vadd.f32 0.0, %v272
  %v274 = vpop.f32.mrf.mxu0
  %v275 = vadd.f32 0.0, %v274
  %276 = vmatmul.bf16.gmra.mxu0 %v188
  %v277 = vpop.f32.mrf.mxu0
  %v278 = vadd.f32 0.0, %v277
  %v279 = vpop.f32.mrf.mxu0
  %v280 = vadd.f32 0.0, %v279
  %281 = vmatmul.bf16.gmra.mxu0 %v191
  %v282 = vpop.f32.mrf.mxu0
  %v283 = vadd.f32 0.0, %v282
  %v284 = vpop.f32.mrf.mxu0
  %v285 = vadd.f32 0.0, %v284
  %286 = vmatmul.bf16.gmra.mxu0 %v194
  %v287 = vpop.f32.mrf.mxu0
  %v288 = vadd.f32 0.0, %v287
  %v289 = vpop.f32.mrf.mxu0
  %v290 = vadd.f32 0.0, %v289
  %291 = vmatmul.bf16.gmra.mxu0 %v197
  %v292 = vpop.f32.mrf.mxu0
  %v293 = vadd.f32 0.0, %v292
  %v294 = vpop.f32.mrf.mxu0
  %v295 = vadd.f32 0.0, %v294
  %296 = vmatmul.bf16.gmra.mxu0 %v200
  %v297 = vpop.f32.mrf.mxu0
  %v298 = vadd.f32 0.0, %v297
  %v299 = vpop.f32.mrf.mxu0
  %v300 = vadd.f32 0.0, %v299
  %301 = vmatmul.bf16.gmra.mxu0 %v203
  %v302 = vpop.f32.mrf.mxu0
  %v303 = vadd.f32 0.0, %v302
  %v304 = vpop.f32.mrf.mxu0
  %v305 = vadd.f32 0.0, %v304
  %306 = vmatmul.bf16.gmra.mxu0 %v206
  %v307 = vpop.f32.mrf.mxu0
  %v308 = vadd.f32 0.0, %v307
  %v309 = vpop.f32.mrf.mxu0
  %v310 = vadd.f32 0.0, %v309
  %311 = vmatmul.bf16.gmra.mxu0 %v209
  %v312 = vpop.f32.mrf.mxu0
  %v313 = vadd.f32 0.0, %v312
  %v314 = vpop.f32.mrf.mxu0
  %v315 = vadd.f32 0.0, %v314
  %316 = vdwg.mxu0
  %s317 = scalar_lea.vmem %s0, 144
  %v318 = vld [vmem:[%s317] sm:$0xf]
  %v319 = vld [vmem:[%s317 + $0x4] sm:$0xf]
  %v320 = vld [vmem:[%s317 + $0x8] sm:$0xf]
  %v321 = vld [vmem:[%s317 + $0xc] sm:$0xf]
  %v322 = vld [vmem:[%s317 + $0x10] sm:$0xf]
  %v323 = vld [vmem:[%s317 + $0x14] sm:$0xf]
  %v324 = vld [vmem:[%s317 + $0x18] sm:$0xf]
  %v325 = vld [vmem:[%s317 + $0x1c] sm:$0xf]
  %v326 = vld [vmem:[%s317 + $0x20] sm:$0xf]
  %v327 = vld [vmem:[%s317 + $0x24] sm:$0xf]
  %v328 = vld [vmem:[%s317 + $0x28] sm:$0xf]
  %v329 = vld [vmem:[%s317 + $0x2c] sm:$0xf]
  %v330 = vld [vmem:[%s317 + $0x30] sm:$0xf]
  %v331 = vld [vmem:[%s317 + $0x34] sm:$0xf]
  %v332 = vld [vmem:[%s317 + $0x38] sm:$0xf]
  %v333 = vld [vmem:[%s317 + $0x3c] sm:$0xf]
  %v334 = vld [vmem:[%s317 + $0x40] sm:$0xf]
  %v335 = vld [vmem:[%s317 + $0x44] sm:$0xf]
  %v336 = vld [vmem:[%s317 + $0x48] sm:$0xf]
  %v337 = vld [vmem:[%s317 + $0x4c] sm:$0xf]
  %v338 = vld [vmem:[%s317 + $0x50] sm:$0xf]
  %v339 = vld [vmem:[%s317 + $0x54] sm:$0xf]
  %v340 = vld [vmem:[%s317 + $0x58] sm:$0xf]
  %v341 = vld [vmem:[%s317 + $0x5c] sm:$0xf]
  %v342 = vld [vmem:[%s317 + $0x60] sm:$0xf]
  %v343 = vld [vmem:[%s317 + $0x64] sm:$0xf]
  %v344 = vld [vmem:[%s317 + $0x68] sm:$0xf]
  %v345 = vld [vmem:[%s317 + $0x6c] sm:$0xf]
  %v346 = vld [vmem:[%s317 + $0x70] sm:$0xf]
  %v347 = vld [vmem:[%s317 + $0x74] sm:$0xf]
  %v348 = vld [vmem:[%s317 + $0x78] sm:$0xf]
  %v349 = vld [vmem:[%s317 + $0x7c] sm:$0xf]
  %v350 = vld [vmem:[%s317 + $0x80] sm:$0xf]
  %v351 = vld [vmem:[%s317 + $0x84] sm:$0xf]
  %v352 = vld [vmem:[%s317 + $0x88] sm:$0xf]
  %v353 = vld [vmem:[%s317 + $0x8c] sm:$0xf]
  %v390 = vunpack.c.l.b16 %v318
  %v391 = vunpack.c.l.b16 %v319
  %v392 = vunpack.c.l.b16 %v320
  %v393 = vunpack.c.l.b16 %v321
  %v394 = vunpack.c.l.b16 %v322
  %v395 = vunpack.c.l.b16 %v323
  %v396 = vunpack.c.l.b16 %v324
  %v397 = vunpack.c.l.b16 %v325
  %v398 = vunpack.c.l.b16 %v326
  %v399 = vunpack.c.l.b16 %v327
  %v400 = vunpack.c.l.b16 %v328
  %v401 = vunpack.c.l.b16 %v329
  %v402 = vunpack.c.l.b16 %v330
  %v403 = vunpack.c.l.b16 %v331
  %v404 = vunpack.c.l.b16 %v332
  %v405 = vunpack.c.l.b16 %v333
  %v406 = vunpack.c.l.b16 %v334
  %v407 = vunpack.c.l.b16 %v335
  %v408 = vunpack.c.l.b16 %v336
  %v409 = vunpack.c.l.b16 %v337
  %v410 = vunpack.c.l.b16 %v338
  %v411 = vunpack.c.l.b16 %v339
  %v412 = vunpack.c.l.b16 %v340
  %v413 = vunpack.c.l.b16 %v341
  %v414 = vunpack.c.l.b16 %v342
  %v415 = vunpack.c.l.b16 %v343
  %v416 = vunpack.c.l.b16 %v344
  %v417 = vunpack.c.l.b16 %v345
  %v418 = vunpack.c.l.b16 %v346
  %v419 = vunpack.c.l.b16 %v347
  %v420 = vunpack.c.l.b16 %v348
  %v421 = vunpack.c.l.b16 %v349
  %v422 = vunpack.c.l.b16 %v350
  %v423 = vunpack.c.l.b16 %v351
  %v424 = vunpack.c.l.b16 %v352
  %v425 = vunpack.c.l.b16 %v353
  %v426 = vpack.c.b16 %v391, %v390
  %v427 = vpack.c.b16 %v393, %v392
  %v428 = vpack.c.b16 %v395, %v394
  %v429 = vpack.c.b16 %v397, %v396
  %v430 = vpack.c.b16 %v399, %v398
  %v431 = vpack.c.b16 %v401, %v400
  %v432 = vpack.c.b16 %v403, %v402
  %v433 = vpack.c.b16 %v405, %v404
  %v434 = vpack.c.b16 %v407, %v406
  %v435 = vpack.c.b16 %v409, %v408
  %v436 = vpack.c.b16 %v411, %v410
  %v437 = vpack.c.b16 %v413, %v412
  %v438 = vpack.c.b16 %v415, %v414
  %v439 = vpack.c.b16 %v417, %v416
  %v440 = vpack.c.b16 %v419, %v418
  %v441 = vpack.c.b16 %v421, %v420
  %v442 = vpack.c.b16 %v423, %v422
  %v443 = vpack.c.b16 %v425, %v424
  %v445 = vsel %vm156, %v426, 0
  %v448 = vsel %vm156, %v427, 0
  %v451 = vsel %vm156, %v428, 0
  %v454 = vsel %vm156, %v429, 0
  %v457 = vsel %vm156, %v430, 0
  %v460 = vsel %vm156, %v431, 0
  %v463 = vsel %vm156, %v432, 0
  %v466 = vsel %vm156, %v433, 0
  %v469 = vsel %vm156, %v434, 0
  %v472 = vsel %vm156, %v435, 0
  %v475 = vsel %vm156, %v436, 0
  %v478 = vsel %vm156, %v437, 0
  %v481 = vsel %vm156, %v438, 0
  %v484 = vsel %vm156, %v439, 0
  %v487 = vsel %vm156, %v440, 0
  %v490 = vsel %vm156, %v441, 0
  %v493 = vsel %vm156, %v442, 0
  %v496 = vsel %vm156, %v443, 0
  %498 = vmatpush.bf16.msra.mxu0 0
  %499 = vmatpush.bf16.msra.mxu0 0
  %500 = vmatpush.bf16.msra.mxu0 0
  %501 = vmatpush.bf16.msra.mxu0 0
  %502 = vmatpush.bf16.msra.mxu0 0
  %503 = vmatpush.bf16.msra.mxu0 0
  %504 = vmatpush.bf16.msra.mxu0 %v216
  %505 = vmatpush.bf16.msra.mxu0 %v153
  %506 = vmatmul.bf16.gmra.mxu0 %v445
  %v507 = vpop.f32.mrf.mxu0
  %v508 = vadd.f32 0.0, %v507
  %v509 = vpop.f32.mrf.mxu0
  %v510 = vadd.f32 0.0, %v509
  %511 = vmatmul.bf16.gmra.mxu0 %v448
  %v512 = vpop.f32.mrf.mxu0
  %v513 = vadd.f32 0.0, %v512
  %v514 = vpop.f32.mrf.mxu0
  %v515 = vadd.f32 0.0, %v514
  %516 = vmatmul.bf16.gmra.mxu0 %v451
  %v517 = vpop.f32.mrf.mxu0
  %v518 = vadd.f32 0.0, %v517
  %v519 = vpop.f32.mrf.mxu0
  %v520 = vadd.f32 0.0, %v519
  %521 = vmatmul.bf16.gmra.mxu0 %v454
  %v522 = vpop.f32.mrf.mxu0
  %v523 = vadd.f32 0.0, %v522
  %v524 = vpop.f32.mrf.mxu0
  %v525 = vadd.f32 0.0, %v524
  %526 = vmatmul.bf16.gmra.mxu0 %v457
  %v527 = vpop.f32.mrf.mxu0
  %v528 = vadd.f32 0.0, %v527
  %v529 = vpop.f32.mrf.mxu0
  %v530 = vadd.f32 0.0, %v529
  %531 = vmatmul.bf16.gmra.mxu0 %v460
  %v532 = vpop.f32.mrf.mxu0
  %v533 = vadd.f32 0.0, %v532
  %v534 = vpop.f32.mrf.mxu0
  %v535 = vadd.f32 0.0, %v534
  %536 = vmatmul.bf16.gmra.mxu0 %v463
  %v537 = vpop.f32.mrf.mxu0
  %v538 = vadd.f32 0.0, %v537
  %v539 = vpop.f32.mrf.mxu0
  %v540 = vadd.f32 0.0, %v539
  %541 = vmatmul.bf16.gmra.mxu0 %v466
  %v542 = vpop.f32.mrf.mxu0
  %v543 = vadd.f32 0.0, %v542
  %v544 = vpop.f32.mrf.mxu0
  %v545 = vadd.f32 0.0, %v544
  %546 = vmatmul.bf16.gmra.mxu0 %v469
  %v547 = vpop.f32.mrf.mxu0
  %v548 = vadd.f32 0.0, %v547
  %v549 = vpop.f32.mrf.mxu0
  %v550 = vadd.f32 0.0, %v549
  %551 = vmatmul.bf16.gmra.mxu0 %v472
  %v552 = vpop.f32.mrf.mxu0
  %v553 = vadd.f32 0.0, %v552
  %v554 = vpop.f32.mrf.mxu0
  %v555 = vadd.f32 0.0, %v554
  %556 = vmatmul.bf16.gmra.mxu0 %v475
  %v557 = vpop.f32.mrf.mxu0
  %v558 = vadd.f32 0.0, %v557
  %v559 = vpop.f32.mrf.mxu0
  %v560 = vadd.f32 0.0, %v559
  %561 = vmatmul.bf16.gmra.mxu0 %v478
  %v562 = vpop.f32.mrf.mxu0
  %v563 = vadd.f32 0.0, %v562
  %v564 = vpop.f32.mrf.mxu0
  %v565 = vadd.f32 0.0, %v564
  %566 = vmatmul.bf16.gmra.mxu0 %v481
  %v567 = vpop.f32.mrf.mxu0
  %v568 = vadd.f32 0.0, %v567
  %v569 = vpop.f32.mrf.mxu0
  %v570 = vadd.f32 0.0, %v569
  %571 = vmatmul.bf16.gmra.mxu0 %v484
  %v572 = vpop.f32.mrf.mxu0
  %v573 = vadd.f32 0.0, %v572
  %v574 = vpop.f32.mrf.mxu0
  %v575 = vadd.f32 0.0, %v574
  %576 = vmatmul.bf16.gmra.mxu0 %v487
  %v577 = vpop.f32.mrf.mxu0
  %v578 = vadd.f32 0.0, %v577
  %v579 = vpop.f32.mrf.mxu0
  %v580 = vadd.f32 0.0, %v579
  %581 = vmatmul.bf16.gmra.mxu0 %v490
  %v582 = vpop.f32.mrf.mxu0
  %v583 = vadd.f32 0.0, %v582
  %v584 = vpop.f32.mrf.mxu0
  %v585 = vadd.f32 0.0, %v584
  %586 = vmatmul.bf16.gmra.mxu0 %v493
  %v587 = vpop.f32.mrf.mxu0
  %v588 = vadd.f32 0.0, %v587
  %v589 = vpop.f32.mrf.mxu0
  %v590 = vadd.f32 0.0, %v589
  %591 = vmatmul.bf16.gmra.mxu0 %v496
  %v592 = vpop.f32.mrf.mxu0
  %v593 = vadd.f32 0.0, %v592
  %v594 = vpop.f32.mrf.mxu0
  %v595 = vadd.f32 0.0, %v594
  %596 = vdwg.mxu0
  %v597 = vmax.f32 %v228, %v508
  %v598 = vmax.f32 %v230, %v510
  %v599 = vmax.f32 %v233, %v513
  %v600 = vmax.f32 %v235, %v515
  %v601 = vmax.f32 %v238, %v518
  %v602 = vmax.f32 %v240, %v520
  %v603 = vmax.f32 %v243, %v523
  %v604 = vmax.f32 %v245, %v525
  %v605 = vmax.f32 %v248, %v528
  %v606 = vmax.f32 %v250, %v530
  %v607 = vmax.f32 %v253, %v533
  %v608 = vmax.f32 %v255, %v535
  %v609 = vmax.f32 %v258, %v538
  %v610 = vmax.f32 %v260, %v540
  %v611 = vmax.f32 %v263, %v543
  %v612 = vmax.f32 %v265, %v545
  %v613 = vmax.f32 %v268, %v548
  %v614 = vmax.f32 %v270, %v550
  %v615 = vmax.f32 %v273, %v553
  %v616 = vmax.f32 %v275, %v555
  %v617 = vmax.f32 %v278, %v558
  %v618 = vmax.f32 %v280, %v560
  %v619 = vmax.f32 %v283, %v563
  %v620 = vmax.f32 %v285, %v565
  %v621 = vmax.f32 %v288, %v568
  %v622 = vmax.f32 %v290, %v570
  %v623 = vmax.f32 %v293, %v573
  %v624 = vmax.f32 %v295, %v575
  %v625 = vmax.f32 %v298, %v578
  %v626 = vmax.f32 %v300, %v580
  %v627 = vmax.f32 %v303, %v583
  %v628 = vmax.f32 %v305, %v585
  %v629 = vmax.f32 %v308, %v588
  %v630 = vmax.f32 %v310, %v590
  %v631 = vmax.f32 %v313, %v593
  %v632 = vmax.f32 %v315, %v595
  %s633 = scalar_lea.vmem %s0, 288
  %v634 = vld [vmem:[%s633] sm:$0xf]
  %v635 = vld [vmem:[%s633 + $0x4] sm:$0xf]
  %v636 = vld [vmem:[%s633 + $0x8] sm:$0xf]
  %v637 = vld [vmem:[%s633 + $0xc] sm:$0xf]
  %v638 = vld [vmem:[%s633 + $0x10] sm:$0xf]
  %v639 = vld [vmem:[%s633 + $0x14] sm:$0xf]
  %v640 = vld [vmem:[%s633 + $0x18] sm:$0xf]
  %v641 = vld [vmem:[%s633 + $0x1c] sm:$0xf]
  %v642 = vld [vmem:[%s633 + $0x20] sm:$0xf]
  %v643 = vld [vmem:[%s633 + $0x24] sm:$0xf]
  %v644 = vld [vmem:[%s633 + $0x28] sm:$0xf]
  %v645 = vld [vmem:[%s633 + $0x2c] sm:$0xf]
  %v646 = vld [vmem:[%s633 + $0x30] sm:$0xf]
  %v647 = vld [vmem:[%s633 + $0x34] sm:$0xf]
  %v648 = vld [vmem:[%s633 + $0x38] sm:$0xf]
  %v649 = vld [vmem:[%s633 + $0x3c] sm:$0xf]
  %v650 = vld [vmem:[%s633 + $0x40] sm:$0xf]
  %v651 = vld [vmem:[%s633 + $0x44] sm:$0xf]
  %v652 = vld [vmem:[%s633 + $0x48] sm:$0xf]
  %v653 = vld [vmem:[%s633 + $0x4c] sm:$0xf]
  %v654 = vld [vmem:[%s633 + $0x50] sm:$0xf]
  %v655 = vld [vmem:[%s633 + $0x54] sm:$0xf]
  %v656 = vld [vmem:[%s633 + $0x58] sm:$0xf]
  %v657 = vld [vmem:[%s633 + $0x5c] sm:$0xf]
  %v658 = vld [vmem:[%s633 + $0x60] sm:$0xf]
  %v659 = vld [vmem:[%s633 + $0x64] sm:$0xf]
  %v660 = vld [vmem:[%s633 + $0x68] sm:$0xf]
  %v661 = vld [vmem:[%s633 + $0x6c] sm:$0xf]
  %v662 = vld [vmem:[%s633 + $0x70] sm:$0xf]
  %v663 = vld [vmem:[%s633 + $0x74] sm:$0xf]
  %v664 = vld [vmem:[%s633 + $0x78] sm:$0xf]
  %v665 = vld [vmem:[%s633 + $0x7c] sm:$0xf]
  %v666 = vld [vmem:[%s633 + $0x80] sm:$0xf]
  %v667 = vld [vmem:[%s633 + $0x84] sm:$0xf]
  %v668 = vld [vmem:[%s633 + $0x88] sm:$0xf]
  %v669 = vld [vmem:[%s633 + $0x8c] sm:$0xf]
  %v706 = vunpack.c.l.b16 %v634
  %v707 = vunpack.c.l.b16 %v635
  %v708 = vunpack.c.l.b16 %v636
  %v709 = vunpack.c.l.b16 %v637
  %v710 = vunpack.c.l.b16 %v638
  %v711 = vunpack.c.l.b16 %v639
  %v712 = vunpack.c.l.b16 %v640
  %v713 = vunpack.c.l.b16 %v641
  %v714 = vunpack.c.l.b16 %v642
  %v715 = vunpack.c.l.b16 %v643
  %v716 = vunpack.c.l.b16 %v644
  %v717 = vunpack.c.l.b16 %v645
  %v718 = vunpack.c.l.b16 %v646
  %v719 = vunpack.c.l.b16 %v647
  %v720 = vunpack.c.l.b16 %v648
  %v721 = vunpack.c.l.b16 %v649
  %v722 = vunpack.c.l.b16 %v650
  %v723 = vunpack.c.l.b16 %v651
  %v724 = vunpack.c.l.b16 %v652
  %v725 = vunpack.c.l.b16 %v653
  %v726 = vunpack.c.l.b16 %v654
  %v727 = vunpack.c.l.b16 %v655
  %v728 = vunpack.c.l.b16 %v656
  %v729 = vunpack.c.l.b16 %v657
  %v730 = vunpack.c.l.b16 %v658
  %v731 = vunpack.c.l.b16 %v659
  %v732 = vunpack.c.l.b16 %v660
  %v733 = vunpack.c.l.b16 %v661
  %v734 = vunpack.c.l.b16 %v662
  %v735 = vunpack.c.l.b16 %v663
  %v736 = vunpack.c.l.b16 %v664
  %v737 = vunpack.c.l.b16 %v665
  %v738 = vunpack.c.l.b16 %v666
  %v739 = vunpack.c.l.b16 %v667
  %v740 = vunpack.c.l.b16 %v668
  %v741 = vunpack.c.l.b16 %v669
  %v742 = vpack.c.b16 %v707, %v706
  %v743 = vpack.c.b16 %v709, %v708
  %v744 = vpack.c.b16 %v711, %v710
  %v745 = vpack.c.b16 %v713, %v712
  %v746 = vpack.c.b16 %v715, %v714
  %v747 = vpack.c.b16 %v717, %v716
  %v748 = vpack.c.b16 %v719, %v718
  %v749 = vpack.c.b16 %v721, %v720
  %v750 = vpack.c.b16 %v723, %v722
  %v751 = vpack.c.b16 %v725, %v724
  %v752 = vpack.c.b16 %v727, %v726
  %v753 = vpack.c.b16 %v729, %v728
  %v754 = vpack.c.b16 %v731, %v730
  %v755 = vpack.c.b16 %v733, %v732
  %v756 = vpack.c.b16 %v735, %v734
  %v757 = vpack.c.b16 %v737, %v736
  %v758 = vpack.c.b16 %v739, %v738
  %v759 = vpack.c.b16 %v741, %v740
  %v761 = vsel %vm156, %v742, 0
  %v764 = vsel %vm156, %v743, 0
  %v767 = vsel %vm156, %v744, 0
  %v770 = vsel %vm156, %v745, 0
  %v773 = vsel %vm156, %v746, 0
  %v776 = vsel %vm156, %v747, 0
  %v779 = vsel %vm156, %v748, 0
  %v782 = vsel %vm156, %v749, 0
  %v785 = vsel %vm156, %v750, 0
  %v788 = vsel %vm156, %v751, 0
  %v791 = vsel %vm156, %v752, 0
  %v794 = vsel %vm156, %v753, 0
  %v797 = vsel %vm156, %v754, 0
  %v800 = vsel %vm156, %v755, 0
  %v803 = vsel %vm156, %v756, 0
  %v806 = vsel %vm156, %v757, 0
  %v809 = vsel %vm156, %v758, 0
  %v812 = vsel %vm156, %v759, 0
  %814 = vmatpush.bf16.msra.mxu0 0
  %815 = vmatpush.bf16.msra.mxu0 0
  %816 = vmatpush.bf16.msra.mxu0 0
  %817 = vmatpush.bf16.msra.mxu0 0
  %818 = vmatpush.bf16.msra.mxu0 0
  %819 = vmatpush.bf16.msra.mxu0 0
  %820 = vmatpush.bf16.msra.mxu0 %v216
  %821 = vmatpush.bf16.msra.mxu0 %v153
  %822 = vmatmul.bf16.gmra.mxu0 %v761
  %v823 = vpop.f32.mrf.mxu0
  %v824 = vadd.f32 0.0, %v823
  %v825 = vpop.f32.mrf.mxu0
  %v826 = vadd.f32 0.0, %v825
  %827 = vmatmul.bf16.gmra.mxu0 %v764
  %v828 = vpop.f32.mrf.mxu0
  %v829 = vadd.f32 0.0, %v828
  %v830 = vpop.f32.mrf.mxu0
  %v831 = vadd.f32 0.0, %v830
  %832 = vmatmul.bf16.gmra.mxu0 %v767
  %v833 = vpop.f32.mrf.mxu0
  %v834 = vadd.f32 0.0, %v833
  %v835 = vpop.f32.mrf.mxu0
  %v836 = vadd.f32 0.0, %v835
  %837 = vmatmul.bf16.gmra.mxu0 %v770
  %v838 = vpop.f32.mrf.mxu0
  %v839 = vadd.f32 0.0, %v838
  %v840 = vpop.f32.mrf.mxu0
  %v841 = vadd.f32 0.0, %v840
  %842 = vmatmul.bf16.gmra.mxu0 %v773
  %v843 = vpop.f32.mrf.mxu0
  %v844 = vadd.f32 0.0, %v843
  %v845 = vpop.f32.mrf.mxu0
  %v846 = vadd.f32 0.0, %v845
  %847 = vmatmul.bf16.gmra.mxu0 %v776
  %v848 = vpop.f32.mrf.mxu0
  %v849 = vadd.f32 0.0, %v848
  %v850 = vpop.f32.mrf.mxu0
  %v851 = vadd.f32 0.0, %v850
  %852 = vmatmul.bf16.gmra.mxu0 %v779
  %v853 = vpop.f32.mrf.mxu0
  %v854 = vadd.f32 0.0, %v853
  %v855 = vpop.f32.mrf.mxu0
  %v856 = vadd.f32 0.0, %v855
  %857 = vmatmul.bf16.gmra.mxu0 %v782
  %v858 = vpop.f32.mrf.mxu0
  %v859 = vadd.f32 0.0, %v858
  %v860 = vpop.f32.mrf.mxu0
  %v861 = vadd.f32 0.0, %v860
  %862 = vmatmul.bf16.gmra.mxu0 %v785
  %v863 = vpop.f32.mrf.mxu0
  %v864 = vadd.f32 0.0, %v863
  %v865 = vpop.f32.mrf.mxu0
  %v866 = vadd.f32 0.0, %v865
  %867 = vmatmul.bf16.gmra.mxu0 %v788
  %v868 = vpop.f32.mrf.mxu0
  %v869 = vadd.f32 0.0, %v868
  %v870 = vpop.f32.mrf.mxu0
  %v871 = vadd.f32 0.0, %v870
  %872 = vmatmul.bf16.gmra.mxu0 %v791
  %v873 = vpop.f32.mrf.mxu0
  %v874 = vadd.f32 0.0, %v873
  %v875 = vpop.f32.mrf.mxu0
  %v876 = vadd.f32 0.0, %v875
  %877 = vmatmul.bf16.gmra.mxu0 %v794
  %v878 = vpop.f32.mrf.mxu0
  %v879 = vadd.f32 0.0, %v878
  %v880 = vpop.f32.mrf.mxu0
  %v881 = vadd.f32 0.0, %v880
  %882 = vmatmul.bf16.gmra.mxu0 %v797
  %v883 = vpop.f32.mrf.mxu0
  %v884 = vadd.f32 0.0, %v883
  %v885 = vpop.f32.mrf.mxu0
  %v886 = vadd.f32 0.0, %v885
  %887 = vmatmul.bf16.gmra.mxu0 %v800
  %v888 = vpop.f32.mrf.mxu0
  %v889 = vadd.f32 0.0, %v888
  %v890 = vpop.f32.mrf.mxu0
  %v891 = vadd.f32 0.0, %v890
  %892 = vmatmul.bf16.gmra.mxu0 %v803
  %v893 = vpop.f32.mrf.mxu0
  %v894 = vadd.f32 0.0, %v893
  %v895 = vpop.f32.mrf.mxu0
  %v896 = vadd.f32 0.0, %v895
  %897 = vmatmul.bf16.gmra.mxu0 %v806
  %v898 = vpop.f32.mrf.mxu0
  %v899 = vadd.f32 0.0, %v898
  %v900 = vpop.f32.mrf.mxu0
  %v901 = vadd.f32 0.0, %v900
  %902 = vmatmul.bf16.gmra.mxu0 %v809
  %v903 = vpop.f32.mrf.mxu0
  %v904 = vadd.f32 0.0, %v903
  %v905 = vpop.f32.mrf.mxu0
  %v906 = vadd.f32 0.0, %v905
  %907 = vmatmul.bf16.gmra.mxu0 %v812
  %v908 = vpop.f32.mrf.mxu0
  %v909 = vadd.f32 0.0, %v908
  %v910 = vpop.f32.mrf.mxu0
  %v911 = vadd.f32 0.0, %v910
  %912 = vdwg.mxu0
  %v913 = vmax.f32 %v597, %v824
  %v914 = vmax.f32 %v598, %v826
  %v915 = vmax.f32 %v599, %v829
  %v916 = vmax.f32 %v600, %v831
  %v917 = vmax.f32 %v601, %v834
  %v918 = vmax.f32 %v602, %v836
  %v919 = vmax.f32 %v603, %v839
  %v920 = vmax.f32 %v604, %v841
  %v921 = vmax.f32 %v605, %v844
  %v922 = vmax.f32 %v606, %v846
  %v923 = vmax.f32 %v607, %v849
  %v924 = vmax.f32 %v608, %v851
  %v925 = vmax.f32 %v609, %v854
  %v926 = vmax.f32 %v610, %v856
  %v927 = vmax.f32 %v611, %v859
  %v928 = vmax.f32 %v612, %v861
  %v929 = vmax.f32 %v613, %v864
  %v930 = vmax.f32 %v614, %v866
  %v931 = vmax.f32 %v615, %v869
  %v932 = vmax.f32 %v616, %v871
  %v933 = vmax.f32 %v617, %v874
  %v934 = vmax.f32 %v618, %v876
  %v935 = vmax.f32 %v619, %v879
  %v936 = vmax.f32 %v620, %v881
  %v937 = vmax.f32 %v621, %v884
  %v938 = vmax.f32 %v622, %v886
  %v939 = vmax.f32 %v623, %v889
  %v940 = vmax.f32 %v624, %v891
  %v941 = vmax.f32 %v625, %v894
  %v942 = vmax.f32 %v626, %v896
  %v943 = vmax.f32 %v627, %v899
  %v944 = vmax.f32 %v628, %v901
  %v945 = vmax.f32 %v629, %v904
  %v946 = vmax.f32 %v630, %v906
  %v947 = vmax.f32 %v631, %v909
  %v948 = vmax.f32 %v632, %v911
  %s949 = scalar_lea.vmem %s0, 432
  %v950 = vld [vmem:[%s949] sm:$0xf]
  %v951 = vld [vmem:[%s949 + $0x4] sm:$0xf]
  %v952 = vld [vmem:[%s949 + $0x8] sm:$0xf]
  %v953 = vld [vmem:[%s949 + $0xc] sm:$0xf]
  %v954 = vld [vmem:[%s949 + $0x10] sm:$0xf]
  %v955 = vld [vmem:[%s949 + $0x14] sm:$0xf]
  %v956 = vld [vmem:[%s949 + $0x18] sm:$0xf]
  %v957 = vld [vmem:[%s949 + $0x1c] sm:$0xf]
  %v958 = vld [vmem:[%s949 + $0x20] sm:$0xf]
  %v959 = vld [vmem:[%s949 + $0x24] sm:$0xf]
  %v960 = vld [vmem:[%s949 + $0x28] sm:$0xf]
  %v961 = vld [vmem:[%s949 + $0x2c] sm:$0xf]
  %v962 = vld [vmem:[%s949 + $0x30] sm:$0xf]
  %v963 = vld [vmem:[%s949 + $0x34] sm:$0xf]
  %v964 = vld [vmem:[%s949 + $0x38] sm:$0xf]
  %v965 = vld [vmem:[%s949 + $0x3c] sm:$0xf]
  %v966 = vld [vmem:[%s949 + $0x40] sm:$0xf]
  %v967 = vld [vmem:[%s949 + $0x44] sm:$0xf]
  %v968 = vld [vmem:[%s949 + $0x48] sm:$0xf]
  %v969 = vld [vmem:[%s949 + $0x4c] sm:$0xf]
  %v970 = vld [vmem:[%s949 + $0x50] sm:$0xf]
  %v971 = vld [vmem:[%s949 + $0x54] sm:$0xf]
  %v972 = vld [vmem:[%s949 + $0x58] sm:$0xf]
  %v973 = vld [vmem:[%s949 + $0x5c] sm:$0xf]
  %v974 = vld [vmem:[%s949 + $0x60] sm:$0xf]
  %v975 = vld [vmem:[%s949 + $0x64] sm:$0xf]
  %v976 = vld [vmem:[%s949 + $0x68] sm:$0xf]
  %v977 = vld [vmem:[%s949 + $0x6c] sm:$0xf]
  %v978 = vld [vmem:[%s949 + $0x70] sm:$0xf]
  %v979 = vld [vmem:[%s949 + $0x74] sm:$0xf]
  %v980 = vld [vmem:[%s949 + $0x78] sm:$0xf]
  %v981 = vld [vmem:[%s949 + $0x7c] sm:$0xf]
  %v982 = vld [vmem:[%s949 + $0x80] sm:$0xf]
  %v983 = vld [vmem:[%s949 + $0x84] sm:$0xf]
  %v984 = vld [vmem:[%s949 + $0x88] sm:$0xf]
  %v985 = vld [vmem:[%s949 + $0x8c] sm:$0xf]
  %v1022 = vunpack.c.l.b16 %v950
  %v1023 = vunpack.c.l.b16 %v951
  %v1024 = vunpack.c.l.b16 %v952
  %v1025 = vunpack.c.l.b16 %v953
  %v1026 = vunpack.c.l.b16 %v954
  %v1027 = vunpack.c.l.b16 %v955
  %v1028 = vunpack.c.l.b16 %v956
  %v1029 = vunpack.c.l.b16 %v957
  %v1030 = vunpack.c.l.b16 %v958
  %v1031 = vunpack.c.l.b16 %v959
  %v1032 = vunpack.c.l.b16 %v960
  %v1033 = vunpack.c.l.b16 %v961
  %v1034 = vunpack.c.l.b16 %v962
  %v1035 = vunpack.c.l.b16 %v963
  %v1036 = vunpack.c.l.b16 %v964
  %v1037 = vunpack.c.l.b16 %v965
  %v1038 = vunpack.c.l.b16 %v966
  %v1039 = vunpack.c.l.b16 %v967
  %v1040 = vunpack.c.l.b16 %v968
  %v1041 = vunpack.c.l.b16 %v969
  %v1042 = vunpack.c.l.b16 %v970
  %v1043 = vunpack.c.l.b16 %v971
  %v1044 = vunpack.c.l.b16 %v972
  %v1045 = vunpack.c.l.b16 %v973
  %v1046 = vunpack.c.l.b16 %v974
  %v1047 = vunpack.c.l.b16 %v975
  %v1048 = vunpack.c.l.b16 %v976
  %v1049 = vunpack.c.l.b16 %v977
  %v1050 = vunpack.c.l.b16 %v978
  %v1051 = vunpack.c.l.b16 %v979
  %v1052 = vunpack.c.l.b16 %v980
  %v1053 = vunpack.c.l.b16 %v981
  %v1054 = vunpack.c.l.b16 %v982
  %v1055 = vunpack.c.l.b16 %v983
  %v1056 = vunpack.c.l.b16 %v984
  %v1057 = vunpack.c.l.b16 %v985
  %v1058 = vpack.c.b16 %v1023, %v1022
  %v1059 = vpack.c.b16 %v1025, %v1024
  %v1060 = vpack.c.b16 %v1027, %v1026
  %v1061 = vpack.c.b16 %v1029, %v1028
  %v1062 = vpack.c.b16 %v1031, %v1030
  %v1063 = vpack.c.b16 %v1033, %v1032
  %v1064 = vpack.c.b16 %v1035, %v1034
  %v1065 = vpack.c.b16 %v1037, %v1036
  %v1066 = vpack.c.b16 %v1039, %v1038
  %v1067 = vpack.c.b16 %v1041, %v1040
  %v1068 = vpack.c.b16 %v1043, %v1042
  %v1069 = vpack.c.b16 %v1045, %v1044
  %v1070 = vpack.c.b16 %v1047, %v1046
  %v1071 = vpack.c.b16 %v1049, %v1048
  %v1072 = vpack.c.b16 %v1051, %v1050
  %v1073 = vpack.c.b16 %v1053, %v1052
  %v1074 = vpack.c.b16 %v1055, %v1054
  %v1075 = vpack.c.b16 %v1057, %v1056
  %v1077 = vsel %vm156, %v1058, 0
  %v1080 = vsel %vm156, %v1059, 0
  %v1083 = vsel %vm156, %v1060, 0
  %v1086 = vsel %vm156, %v1061, 0
  %v1089 = vsel %vm156, %v1062, 0
  %v1092 = vsel %vm156, %v1063, 0
  %v1095 = vsel %vm156, %v1064, 0
  %v1098 = vsel %vm156, %v1065, 0
  %v1101 = vsel %vm156, %v1066, 0
  %v1104 = vsel %vm156, %v1067, 0
  %v1107 = vsel %vm156, %v1068, 0
  %v1110 = vsel %vm156, %v1069, 0
  %v1113 = vsel %vm156, %v1070, 0
  %v1116 = vsel %vm156, %v1071, 0
  %v1119 = vsel %vm156, %v1072, 0
  %v1122 = vsel %vm156, %v1073, 0
  %v1125 = vsel %vm156, %v1074, 0
  %v1128 = vsel %vm156, %v1075, 0
  %1130 = vmatpush.bf16.msra.mxu0 0
  %1131 = vmatpush.bf16.msra.mxu0 0
  %1132 = vmatpush.bf16.msra.mxu0 0
  %1133 = vmatpush.bf16.msra.mxu0 0
  %1134 = vmatpush.bf16.msra.mxu0 0
  %1135 = vmatpush.bf16.msra.mxu0 0
  %1136 = vmatpush.bf16.msra.mxu0 %v216
  %1137 = vmatpush.bf16.msra.mxu0 %v153
  %1138 = vmatmul.bf16.gmra.mxu0 %v1077
  %v1139 = vpop.f32.mrf.mxu0
  %v1140 = vadd.f32 0.0, %v1139
  %v1141 = vpop.f32.mrf.mxu0
  %v1142 = vadd.f32 0.0, %v1141
  %1143 = vmatmul.bf16.gmra.mxu0 %v1080
  %v1144 = vpop.f32.mrf.mxu0
  %v1145 = vadd.f32 0.0, %v1144
  %v1146 = vpop.f32.mrf.mxu0
  %v1147 = vadd.f32 0.0, %v1146
  %1148 = vmatmul.bf16.gmra.mxu0 %v1083
  %v1149 = vpop.f32.mrf.mxu0
  %v1150 = vadd.f32 0.0, %v1149
  %v1151 = vpop.f32.mrf.mxu0
  %v1152 = vadd.f32 0.0, %v1151
  %1153 = vmatmul.bf16.gmra.mxu0 %v1086
  %v1154 = vpop.f32.mrf.mxu0
  %v1155 = vadd.f32 0.0, %v1154
  %v1156 = vpop.f32.mrf.mxu0
  %v1157 = vadd.f32 0.0, %v1156
  %1158 = vmatmul.bf16.gmra.mxu0 %v1089
  %v1159 = vpop.f32.mrf.mxu0
  %v1160 = vadd.f32 0.0, %v1159
  %v1161 = vpop.f32.mrf.mxu0
  %v1162 = vadd.f32 0.0, %v1161
  %1163 = vmatmul.bf16.gmra.mxu0 %v1092
  %v1164 = vpop.f32.mrf.mxu0
  %v1165 = vadd.f32 0.0, %v1164
  %v1166 = vpop.f32.mrf.mxu0
  %v1167 = vadd.f32 0.0, %v1166
  %1168 = vmatmul.bf16.gmra.mxu0 %v1095
  %v1169 = vpop.f32.mrf.mxu0
  %v1170 = vadd.f32 0.0, %v1169
  %v1171 = vpop.f32.mrf.mxu0
  %v1172 = vadd.f32 0.0, %v1171
  %1173 = vmatmul.bf16.gmra.mxu0 %v1098
  %v1174 = vpop.f32.mrf.mxu0
  %v1175 = vadd.f32 0.0, %v1174
  %v1176 = vpop.f32.mrf.mxu0
  %v1177 = vadd.f32 0.0, %v1176
  %1178 = vmatmul.bf16.gmra.mxu0 %v1101
  %v1179 = vpop.f32.mrf.mxu0
  %v1180 = vadd.f32 0.0, %v1179
  %v1181 = vpop.f32.mrf.mxu0
  %v1182 = vadd.f32 0.0, %v1181
  %1183 = vmatmul.bf16.gmra.mxu0 %v1104
  %v1184 = vpop.f32.mrf.mxu0
  %v1185 = vadd.f32 0.0, %v1184
  %v1186 = vpop.f32.mrf.mxu0
  %v1187 = vadd.f32 0.0, %v1186
  %1188 = vmatmul.bf16.gmra.mxu0 %v1107
  %v1189 = vpop.f32.mrf.mxu0
  %v1190 = vadd.f32 0.0, %v1189
  %v1191 = vpop.f32.mrf.mxu0
  %v1192 = vadd.f32 0.0, %v1191
  %1193 = vmatmul.bf16.gmra.mxu0 %v1110
  %v1194 = vpop.f32.mrf.mxu0
  %v1195 = vadd.f32 0.0, %v1194
  %v1196 = vpop.f32.mrf.mxu0
  %v1197 = vadd.f32 0.0, %v1196
  %1198 = vmatmul.bf16.gmra.mxu0 %v1113
  %v1199 = vpop.f32.mrf.mxu0
  %v1200 = vadd.f32 0.0, %v1199
  %v1201 = vpop.f32.mrf.mxu0
  %v1202 = vadd.f32 0.0, %v1201
  %1203 = vmatmul.bf16.gmra.mxu0 %v1116
  %v1204 = vpop.f32.mrf.mxu0
  %v1205 = vadd.f32 0.0, %v1204
  %v1206 = vpop.f32.mrf.mxu0
  %v1207 = vadd.f32 0.0, %v1206
  %1208 = vmatmul.bf16.gmra.mxu0 %v1119
  %v1209 = vpop.f32.mrf.mxu0
  %v1210 = vadd.f32 0.0, %v1209
  %v1211 = vpop.f32.mrf.mxu0
  %v1212 = vadd.f32 0.0, %v1211
  %1213 = vmatmul.bf16.gmra.mxu0 %v1122
  %v1214 = vpop.f32.mrf.mxu0
  %v1215 = vadd.f32 0.0, %v1214
  %v1216 = vpop.f32.mrf.mxu0
  %v1217 = vadd.f32 0.0, %v1216
  %1218 = vmatmul.bf16.gmra.mxu0 %v1125
  %v1219 = vpop.f32.mrf.mxu0
  %v1220 = vadd.f32 0.0, %v1219
  %v1221 = vpop.f32.mrf.mxu0
  %v1222 = vadd.f32 0.0, %v1221
  %1223 = vmatmul.bf16.gmra.mxu0 %v1128
  %v1224 = vpop.f32.mrf.mxu0
  %v1225 = vadd.f32 0.0, %v1224
  %v1226 = vpop.f32.mrf.mxu0
  %v1227 = vadd.f32 0.0, %v1226
  %1228 = vdwg.mxu0
  %v1229 = vmax.f32 %v913, %v1140
  %v1230 = vmax.f32 %v914, %v1142
  %v1231 = vmax.f32 %v915, %v1145
  %v1232 = vmax.f32 %v916, %v1147
  %v1233 = vmax.f32 %v917, %v1150
  %v1234 = vmax.f32 %v918, %v1152
  %v1235 = vmax.f32 %v919, %v1155
  %v1236 = vmax.f32 %v920, %v1157
  %v1237 = vmax.f32 %v921, %v1160
  %v1238 = vmax.f32 %v922, %v1162
  %v1239 = vmax.f32 %v923, %v1165
  %v1240 = vmax.f32 %v924, %v1167
  %v1241 = vmax.f32 %v925, %v1170
  %v1242 = vmax.f32 %v926, %v1172
  %v1243 = vmax.f32 %v927, %v1175
  %v1244 = vmax.f32 %v928, %v1177
  %v1245 = vmax.f32 %v929, %v1180
  %v1246 = vmax.f32 %v930, %v1182
  %v1247 = vmax.f32 %v931, %v1185
  %v1248 = vmax.f32 %v932, %v1187
  %v1249 = vmax.f32 %v933, %v1190
  %v1250 = vmax.f32 %v934, %v1192
  %v1251 = vmax.f32 %v935, %v1195
  %v1252 = vmax.f32 %v936, %v1197
  %v1253 = vmax.f32 %v937, %v1200
  %v1254 = vmax.f32 %v938, %v1202
  %v1255 = vmax.f32 %v939, %v1205
  %v1256 = vmax.f32 %v940, %v1207
  %v1257 = vmax.f32 %v941, %v1210
  %v1258 = vmax.f32 %v942, %v1212
  %v1259 = vmax.f32 %v943, %v1215
  %v1260 = vmax.f32 %v944, %v1217
  %v1261 = vmax.f32 %v945, %v1220
  %v1262 = vmax.f32 %v946, %v1222
  %v1263 = vmax.f32 %v947, %v1225
  %v1264 = vmax.f32 %v948, %v1227
  %v1265 = vld [vmem:[%s2] sm:$0x1]
  %v1267 = vperm.slane %v1265, 0
  %v1269 = vadd.f32 %v1229, %v1267
  %v1270 = vadd.f32 %v1230, %v1267
  %v1271 = vadd.f32 %v1231, %v1267
  %v1272 = vadd.f32 %v1232, %v1267
  %v1273 = vadd.f32 %v1233, %v1267
  %v1274 = vadd.f32 %v1234, %v1267
  %v1275 = vadd.f32 %v1235, %v1267
  %v1276 = vadd.f32 %v1236, %v1267
  %v1277 = vadd.f32 %v1237, %v1267
  %v1278 = vadd.f32 %v1238, %v1267
  %v1279 = vadd.f32 %v1239, %v1267
  %v1280 = vadd.f32 %v1240, %v1267
  %v1281 = vadd.f32 %v1241, %v1267
  %v1282 = vadd.f32 %v1242, %v1267
  %v1283 = vadd.f32 %v1243, %v1267
  %v1284 = vadd.f32 %v1244, %v1267
  %v1285 = vadd.f32 %v1245, %v1267
  %v1286 = vadd.f32 %v1246, %v1267
  %v1287 = vadd.f32 %v1247, %v1267
  %v1288 = vadd.f32 %v1248, %v1267
  %v1289 = vadd.f32 %v1249, %v1267
  %v1290 = vadd.f32 %v1250, %v1267
  %v1291 = vadd.f32 %v1251, %v1267
  %v1292 = vadd.f32 %v1252, %v1267
  %v1293 = vadd.f32 %v1253, %v1267
  %v1294 = vadd.f32 %v1254, %v1267
  %v1295 = vadd.f32 %v1255, %v1267
  %v1296 = vadd.f32 %v1256, %v1267
  %v1297 = vadd.f32 %v1257, %v1267
  %v1298 = vadd.f32 %v1258, %v1267
  %v1299 = vadd.f32 %v1259, %v1267
  %v1300 = vadd.f32 %v1260, %v1267
  %v1301 = vadd.f32 %v1261, %v1267
  %v1302 = vadd.f32 %v1262, %v1267
  %v1303 = vadd.f32 %v1263, %v1267
  %v1304 = vadd.f32 %v1264, %v1267
  %v1305 = vmax.f32 %v1269, 0.0
  %v1306 = vmax.f32 %v1270, 0.0
  %v1307 = vmax.f32 %v1271, 0.0
  %v1308 = vmax.f32 %v1272, 0.0
  %v1309 = vmax.f32 %v1273, 0.0
  %v1310 = vmax.f32 %v1274, 0.0
  %v1311 = vmax.f32 %v1275, 0.0
  %v1312 = vmax.f32 %v1276, 0.0
  %v1313 = vmax.f32 %v1277, 0.0
  %v1314 = vmax.f32 %v1278, 0.0
  %v1315 = vmax.f32 %v1279, 0.0
  %v1316 = vmax.f32 %v1280, 0.0
  %v1317 = vmax.f32 %v1281, 0.0
  %v1318 = vmax.f32 %v1282, 0.0
  %v1319 = vmax.f32 %v1283, 0.0
  %v1320 = vmax.f32 %v1284, 0.0
  %v1321 = vmax.f32 %v1285, 0.0
  %v1322 = vmax.f32 %v1286, 0.0
  %v1323 = vmax.f32 %v1287, 0.0
  %v1324 = vmax.f32 %v1288, 0.0
  %v1325 = vmax.f32 %v1289, 0.0
  %v1326 = vmax.f32 %v1290, 0.0
  %v1327 = vmax.f32 %v1291, 0.0
  %v1328 = vmax.f32 %v1292, 0.0
  %v1329 = vmax.f32 %v1293, 0.0
  %v1330 = vmax.f32 %v1294, 0.0
  %v1331 = vmax.f32 %v1295, 0.0
  %v1332 = vmax.f32 %v1296, 0.0
  %v1333 = vmax.f32 %v1297, 0.0
  %v1334 = vmax.f32 %v1298, 0.0
  %v1335 = vmax.f32 %v1299, 0.0
  %v1336 = vmax.f32 %v1300, 0.0
  %v1337 = vmax.f32 %v1301, 0.0
  %v1338 = vmax.f32 %v1302, 0.0
  %v1339 = vmax.f32 %v1303, 0.0
  %v1340 = vmax.f32 %v1304, 0.0
  %1341 = vst [vmem:[%s3] sm:$0xff] %v1305
  %1342 = vst [vmem:[%s3 + $0x8] sm:$0xff] %v1306
  %1343 = vst [vmem:[%s3 + $0x10] sm:$0xff] %v1307
  %1344 = vst [vmem:[%s3 + $0x18] sm:$0xff] %v1308
  %1345 = vst [vmem:[%s3 + $0x20] sm:$0xff] %v1309
  %1346 = vst [vmem:[%s3 + $0x28] sm:$0xff] %v1310
  %1347 = vst [vmem:[%s3 + $0x30] sm:$0xff] %v1311
  %1348 = vst [vmem:[%s3 + $0x38] sm:$0xff] %v1312
  %1349 = vst [vmem:[%s3 + $0x40] sm:$0xff] %v1313
  %1350 = vst [vmem:[%s3 + $0x48] sm:$0xff] %v1314
  %1351 = vst [vmem:[%s3 + $0x50] sm:$0xff] %v1315
  %1352 = vst [vmem:[%s3 + $0x58] sm:$0xff] %v1316
  %1353 = vst [vmem:[%s3 + $0x60] sm:$0xff] %v1317
  %1354 = vst [vmem:[%s3 + $0x68] sm:$0xff] %v1318
  %1355 = vst [vmem:[%s3 + $0x70] sm:$0xff] %v1319
  %1356 = vst [vmem:[%s3 + $0x78] sm:$0xff] %v1320
  %1357 = vst [vmem:[%s3 + $0x80] sm:$0xff] %v1321
  %1358 = vst [vmem:[%s3 + $0x88] sm:$0xff] %v1322
  %1359 = vst [vmem:[%s3 + $0x90] sm:$0xff] %v1323
  %1360 = vst [vmem:[%s3 + $0x98] sm:$0xff] %v1324
  %1361 = vst [vmem:[%s3 + $0xa0] sm:$0xff] %v1325
  %1362 = vst [vmem:[%s3 + $0xa8] sm:$0xff] %v1326
  %1363 = vst [vmem:[%s3 + $0xb0] sm:$0xff] %v1327
  %1364 = vst [vmem:[%s3 + $0xb8] sm:$0xff] %v1328
  %1365 = vst [vmem:[%s3 + $0xc0] sm:$0xff] %v1329
  %1366 = vst [vmem:[%s3 + $0xc8] sm:$0xff] %v1330
  %1367 = vst [vmem:[%s3 + $0xd0] sm:$0xff] %v1331
  %1368 = vst [vmem:[%s3 + $0xd8] sm:$0xff] %v1332
  %1369 = vst [vmem:[%s3 + $0xe0] sm:$0xff] %v1333
  %1370 = vst [vmem:[%s3 + $0xe8] sm:$0xff] %v1334
  %1371 = vst [vmem:[%s3 + $0xf0] sm:$0xff] %v1335
  %1372 = vst [vmem:[%s3 + $0xf8] sm:$0xff] %v1336
  %1373 = vst [vmem:[%s3 + $0x100] sm:$0xff] %v1337
  %1374 = vst [vmem:[%s3 + $0x108] sm:$0xff] %v1338
  %1375 = vst [vmem:[%s3 + $0x110] sm:$0xff] %v1339
  %1376 = vst [vmem:[%s3 + $0x118] sm:$0xff] %v1340
  // Predicated region
  $region14: #{cnn_mnist_forward.3} parent=0 // pred_check
    _
  $region15: #{cnn_mnist_forward.3} parent=0 // pred_check_branch
    %1378 = sbr.rel (0) target = $region17
  $region16: #{cnn_mnist_forward.3} parent=0 // pred_region
    _
  $region17: #{cnn_mnist_forward.3} parent=0 // pred_fallthru
    _
  // Predicated region
  $region18: #{cnn_mnist_forward.3} parent=0 // pred_check
    _
  $region19: #{cnn_mnist_forward.3} parent=0 // pred_check_branch
    %1380 = sbr.rel (0) target = $region21
  $region20: #{cnn_mnist_forward.3} parent=0 // pred_region
    _
  $region21: #{cnn_mnist_forward.3} parent=0 // pred_fallthru
    _

// kernel: cnn_mnist_forward.4
$region0: #{cnn_mnist_forward.4}
  #allocation0 [shape = 'u32[]', space=smem, size = 0x4, offset = 0x4, fixed_abs, tag = 'smem constant byte address 0x4 - core index']
  #allocation1 [shape = 'u32[72,128]{1,0:T(1,128)}', space=vmem, size = 0x9000, scoped, tag = 'internal scratch']
  %s0 = inlined_call_operand.vmem [shape: bf16[4,32,800], index: 0, kind: input, shape index: {}]
  %s1 = inlined_call_operand.vmem [shape: bf16[800,128], index: 1, kind: input, shape index: {}]
  %s2 = inlined_call_operand.vmem [shape: f32[1,128], index: 2, kind: input, shape index: {}]
  %s3 = inlined_call_operand.vmem [shape: f32[32,128], index: 3, kind: output, shape index: {}]
  %s4 = sld [smem:[#allocation0]]
  $region22: #{cnn_mnist_forward.4} parent=0
    _
  %s6 = ssub.s32 1, %s4
  %s7 = scalar_select 0, %s6, %s4
  // Predicated region
  $region2: #{cnn_mnist_forward.4} parent=0 // pred_check
    _
  $region3: #{cnn_mnist_forward.4} parent=0 // pred_check_branch
    %9 = sbr.rel (0) target = $region5
  $region4: #{cnn_mnist_forward.4} parent=0 // pred_region
    _
  $region5: #{cnn_mnist_forward.4} parent=0 // pred_fallthru
    _
  // Predicated region
  $region6: #{cnn_mnist_forward.4} parent=0 // pred_check
    _
  $region7: #{cnn_mnist_forward.4} parent=0 // pred_check_branch
    %11 = sbr.rel (0) target = $region9
  $region8: #{cnn_mnist_forward.4} parent=0 // pred_region
    _
  $region9: #{cnn_mnist_forward.4} parent=0 // pred_fallthru
    _
  // Predicated region
  $region10: #{cnn_mnist_forward.4} parent=0 // pred_check
    _
  $region11: #{cnn_mnist_forward.4} parent=0 // pred_check_branch
    %13 = sbr.rel (0) target = $region13
  $region12: #{cnn_mnist_forward.4} parent=0 // pred_region
    _
  $region13: #{cnn_mnist_forward.4} parent=0 // pred_fallthru
    _
  %v15 = vld [vmem:[%s1] sm:$0xf]
  %v16 = vld [vmem:[%s1 + $0x4] sm:$0xf]
  %v17 = vld [vmem:[%s1 + $0x8] sm:$0xf]
  %v18 = vld [vmem:[%s1 + $0xc] sm:$0xf]
  %v19 = vld [vmem:[%s1 + $0x10] sm:$0xf]
  %v20 = vld [vmem:[%s1 + $0x14] sm:$0xf]
  %v21 = vld [vmem:[%s1 + $0x18] sm:$0xf]
  %v22 = vld [vmem:[%s1 + $0x1c] sm:$0xf]
  %v23 = vld [vmem:[%s1 + $0x20] sm:$0xf]
  %v24 = vld [vmem:[%s1 + $0x24] sm:$0xf]
  %v25 = vld [vmem:[%s1 + $0x28] sm:$0xf]
  %v26 = vld [vmem:[%s1 + $0x2c] sm:$0xf]
  %v27 = vld [vmem:[%s1 + $0x30] sm:$0xf]
  %v28 = vld [vmem:[%s1 + $0x34] sm:$0xf]
  %v29 = vld [vmem:[%s1 + $0x38] sm:$0xf]
  %v30 = vld [vmem:[%s1 + $0x3c] sm:$0xf]
  %v31 = vld [vmem:[%s1 + $0x40] sm:$0xf]
  %v32 = vld [vmem:[%s1 + $0x44] sm:$0xf]
  %v33 = vld [vmem:[%s1 + $0x48] sm:$0xf]
  %v34 = vld [vmem:[%s1 + $0x4c] sm:$0xf]
  %v35 = vld [vmem:[%s1 + $0x50] sm:$0xf]
  %v36 = vld [vmem:[%s1 + $0x54] sm:$0xf]
  %v37 = vld [vmem:[%s1 + $0x58] sm:$0xf]
  %v38 = vld [vmem:[%s1 + $0x5c] sm:$0xf]
  %v39 = vld [vmem:[%s1 + $0x60] sm:$0xf]
  %v40 = vld [vmem:[%s1 + $0x64] sm:$0xf]
  %v41 = vld [vmem:[%s1 + $0x68] sm:$0xf]
  %v42 = vld [vmem:[%s1 + $0x6c] sm:$0xf]
  %v43 = vld [vmem:[%s1 + $0x70] sm:$0xf]
  %v44 = vld [vmem:[%s1 + $0x74] sm:$0xf]
  %v45 = vld [vmem:[%s1 + $0x78] sm:$0xf]
  %v46 = vld [vmem:[%s1 + $0x7c] sm:$0xf]
  %v47 = vld [vmem:[%s1 + $0x80] sm:$0xf]
  %v48 = vld [vmem:[%s1 + $0x84] sm:$0xf]
  %v49 = vld [vmem:[%s1 + $0x88] sm:$0xf]
  %v50 = vld [vmem:[%s1 + $0x8c] sm:$0xf]
  %v51 = vld [vmem:[%s1 + $0x90] sm:$0xf]
  %v52 = vld [vmem:[%s1 + $0x94] sm:$0xf]
  %v53 = vld [vmem:[%s1 + $0x98] sm:$0xf]
  %v54 = vld [vmem:[%s1 + $0x9c] sm:$0xf]
  %v55 = vld [vmem:[%s1 + $0xa0] sm:$0xf]
  %v56 = vld [vmem:[%s1 + $0xa4] sm:$0xf]
  %v57 = vld [vmem:[%s1 + $0xa8] sm:$0xf]
  %v58 = vld [vmem:[%s1 + $0xac] sm:$0xf]
  %v59 = vld [vmem:[%s1 + $0xb0] sm:$0xf]
  %v60 = vld [vmem:[%s1 + $0xb4] sm:$0xf]
  %v61 = vld [vmem:[%s1 + $0xb8] sm:$0xf]
  %v62 = vld [vmem:[%s1 + $0xbc] sm:$0xf]
  %v63 = vld [vmem:[%s1 + $0xc0] sm:$0xf]
  %v64 = vld [vmem:[%s1 + $0xc4] sm:$0xf]
  %v65 = vld [vmem:[%s1 + $0xc8] sm:$0xf]
  %v66 = vld [vmem:[%s1 + $0xcc] sm:$0xf]
  %v67 = vld [vmem:[%s1 + $0xd0] sm:$0xf]
  %v68 = vld [vmem:[%s1 + $0xd4] sm:$0xf]
  %v69 = vld [vmem:[%s1 + $0xd8] sm:$0xf]
  %v70 = vld [vmem:[%s1 + $0xdc] sm:$0xf]
  %v71 = vld [vmem:[%s1 + $0xe0] sm:$0xf]
  %v72 = vld [vmem:[%s1 + $0xe4] sm:$0xf]
  %v73 = vld [vmem:[%s1 + $0xe8] sm:$0xf]
  %v74 = vld [vmem:[%s1 + $0xec] sm:$0xf]
  %v75 = vld [vmem:[%s1 + $0xf0] sm:$0xf]
  %v76 = vld [vmem:[%s1 + $0xf4] sm:$0xf]
  %v77 = vld [vmem:[%s1 + $0xf8] sm:$0xf]
  %v78 = vld [vmem:[%s1 + $0xfc] sm:$0xf]
  %v79 = vld [vmem:[%s1 + $0x100] sm:$0xf]
  %v80 = vld [vmem:[%s1 + $0x104] sm:$0xf]
  %v81 = vld [vmem:[%s1 + $0x108] sm:$0xf]
  %v82 = vld [vmem:[%s1 + $0x10c] sm:$0xf]
  %v83 = vld [vmem:[%s1 + $0x110] sm:$0xf]
  %v84 = vld [vmem:[%s1 + $0x114] sm:$0xf]
  %v85 = vld [vmem:[%s1 + $0x118] sm:$0xf]
  %v86 = vld [vmem:[%s1 + $0x11c] sm:$0xf]
  %v87 = vld [vmem:[%s1 + $0x120] sm:$0xf]
  %v88 = vld [vmem:[%s1 + $0x124] sm:$0xf]
  %v89 = vld [vmem:[%s1 + $0x128] sm:$0xf]
  %v90 = vld [vmem:[%s1 + $0x12c] sm:$0xf]
  %v91 = vld [vmem:[%s1 + $0x130] sm:$0xf]
  %v92 = vld [vmem:[%s1 + $0x134] sm:$0xf]
  %v93 = vld [vmem:[%s1 + $0x138] sm:$0xf]
  %v94 = vld [vmem:[%s1 + $0x13c] sm:$0xf]
  %v95 = vld [vmem:[%s1 + $0x140] sm:$0xf]
  %v96 = vld [vmem:[%s1 + $0x144] sm:$0xf]
  %v97 = vld [vmem:[%s1 + $0x148] sm:$0xf]
  %v98 = vld [vmem:[%s1 + $0x14c] sm:$0xf]
  %v99 = vld [vmem:[%s1 + $0x150] sm:$0xf]
  %v100 = vld [vmem:[%s1 + $0x154] sm:$0xf]
  %v101 = vld [vmem:[%s1 + $0x158] sm:$0xf]
  %v102 = vld [vmem:[%s1 + $0x15c] sm:$0xf]
  %v103 = vld [vmem:[%s1 + $0x160] sm:$0xf]
  %v104 = vld [vmem:[%s1 + $0x164] sm:$0xf]
  %v105 = vld [vmem:[%s1 + $0x168] sm:$0xf]
  %v106 = vld [vmem:[%s1 + $0x16c] sm:$0xf]
  %v107 = vld [vmem:[%s1 + $0x170] sm:$0xf]
  %v108 = vld [vmem:[%s1 + $0x174] sm:$0xf]
  %v109 = vld [vmem:[%s1 + $0x178] sm:$0xf]
  %v110 = vld [vmem:[%s1 + $0x17c] sm:$0xf]
  %v111 = vld [vmem:[%s1 + $0x180] sm:$0xf]
  %v112 = vld [vmem:[%s1 + $0x184] sm:$0xf]
  %v113 = vld [vmem:[%s1 + $0x188] sm:$0xf]
  %v114 = vld [vmem:[%s1 + $0x18c] sm:$0xf]
  %v115 = vld [vmem:[%s0] sm:$0xff]
  %v116 = vld [vmem:[%s0 + $0x8] sm:$0xff]
  %v117 = vld [vmem:[%s0 + $0x10] sm:$0xff]
  %v118 = vld [vmem:[%s0 + $0x18] sm:$0xf]
  %v119 = vld [vmem:[%s0 + $0x1c] sm:$0xff]
  %v120 = vld [vmem:[%s0 + $0x24] sm:$0xff]
  %v121 = vld [vmem:[%s0 + $0x2c] sm:$0xff]
  %v122 = vld [vmem:[%s0 + $0x34] sm:$0xf]
  %v123 = vld [vmem:[%s0 + $0x38] sm:$0xff]
  %v124 = vld [vmem:[%s0 + $0x40] sm:$0xff]
  %v125 = vld [vmem:[%s0 + $0x48] sm:$0xff]
  %v126 = vld [vmem:[%s0 + $0x50] sm:$0xf]
  %v127 = vld [vmem:[%s0 + $0x54] sm:$0xff]
  %v128 = vld [vmem:[%s0 + $0x5c] sm:$0xff]
  %v129 = vld [vmem:[%s0 + $0x64] sm:$0xff]
  %v130 = vld [vmem:[%s0 + $0x6c] sm:$0xf]
  %v147 = vunpack.c.l.b16 %v115
  %v148 = vunpack.c.h.b16 %v115
  %v149 = vunpack.c.l.b16 %v116
  %v150 = vunpack.c.h.b16 %v116
  %v151 = vunpack.c.l.b16 %v117
  %v152 = vunpack.c.h.b16 %v117
  %v153 = vunpack.c.l.b16 %v118
  %v154 = vunpack.c.l.b16 %v119
  %v155 = vunpack.c.h.b16 %v119
  %v156 = vunpack.c.l.b16 %v120
  %v157 = vunpack.c.h.b16 %v120
  %v158 = vunpack.c.l.b16 %v121
  %v159 = vunpack.c.h.b16 %v121
  %v160 = vunpack.c.l.b16 %v122
  %v161 = vunpack.c.l.b16 %v123
  %v162 = vunpack.c.h.b16 %v123
  %v163 = vunpack.c.l.b16 %v124
  %v164 = vunpack.c.h.b16 %v124
  %v165 = vunpack.c.l.b16 %v125
  %v166 = vunpack.c.h.b16 %v125
  %v167 = vunpack.c.l.b16 %v126
  %v168 = vunpack.c.l.b16 %v127
  %v169 = vunpack.c.h.b16 %v127
  %v170 = vunpack.c.l.b16 %v128
  %v171 = vunpack.c.h.b16 %v128
  %v172 = vunpack.c.l.b16 %v129
  %v173 = vunpack.c.h.b16 %v129
  %v174 = vunpack.c.l.b16 %v130
  %v175 = vpack.c.b16 %v154, %v147
  %v176 = vpack.c.b16 %v155, %v148
  %v177 = vpack.c.b16 %v156, %v149
  %v178 = vpack.c.b16 %v157, %v150
  %v179 = vpack.c.b16 %v158, %v151
  %v180 = vpack.c.b16 %v159, %v152
  %v181 = vpack.c.b16 %v160, %v153
  %v182 = vpack.c.b16 %v168, %v161
  %v183 = vpack.c.b16 %v169, %v162
  %v184 = vpack.c.b16 %v170, %v163
  %v185 = vpack.c.b16 %v171, %v164
  %v186 = vpack.c.b16 %v172, %v165
  %v187 = vpack.c.b16 %v173, %v166
  %v188 = vpack.c.b16 %v174, %v167
  %v301 = vunpack.c.l.b16 %v15
  %v302 = vunpack.c.l.b16 %v16
  %v303 = vunpack.c.l.b16 %v17
  %v304 = vunpack.c.l.b16 %v18
  %v305 = vunpack.c.l.b16 %v19
  %v306 = vunpack.c.l.b16 %v20
  %v307 = vunpack.c.l.b16 %v21
  %v308 = vunpack.c.l.b16 %v22
  %v309 = vunpack.c.l.b16 %v23
  %v310 = vunpack.c.l.b16 %v24
  %v311 = vunpack.c.l.b16 %v25
  %v312 = vunpack.c.l.b16 %v26
  %v313 = vunpack.c.l.b16 %v27
  %v314 = vunpack.c.l.b16 %v28
  %v315 = vunpack.c.l.b16 %v29
  %v316 = vunpack.c.l.b16 %v30
  %v317 = vunpack.c.l.b16 %v31
  %v318 = vunpack.c.l.b16 %v32
  %v319 = vunpack.c.l.b16 %v33
  %v320 = vunpack.c.l.b16 %v34
  %v321 = vunpack.c.l.b16 %v35
  %v322 = vunpack.c.l.b16 %v36
  %v323 = vunpack.c.l.b16 %v37
  %v324 = vunpack.c.l.b16 %v38
  %v325 = vunpack.c.l.b16 %v39
  %v326 = vunpack.c.l.b16 %v40
  %v327 = vunpack.c.l.b16 %v41
  %v328 = vunpack.c.l.b16 %v42
  %v329 = vunpack.c.l.b16 %v43
  %v330 = vunpack.c.l.b16 %v44
  %v331 = vunpack.c.l.b16 %v45
  %v332 = vunpack.c.l.b16 %v46
  %v333 = vunpack.c.l.b16 %v47
  %v334 = vunpack.c.l.b16 %v48
  %v335 = vunpack.c.l.b16 %v49
  %v336 = vunpack.c.l.b16 %v50
  %v337 = vunpack.c.l.b16 %v51
  %v338 = vunpack.c.l.b16 %v52
  %v339 = vunpack.c.l.b16 %v53
  %v340 = vunpack.c.l.b16 %v54
  %v341 = vunpack.c.l.b16 %v55
  %v342 = vunpack.c.l.b16 %v56
  %v343 = vunpack.c.l.b16 %v57
  %v344 = vunpack.c.l.b16 %v58
  %v345 = vunpack.c.l.b16 %v59
  %v346 = vunpack.c.l.b16 %v60
  %v347 = vunpack.c.l.b16 %v61
  %v348 = vunpack.c.l.b16 %v62
  %v349 = vunpack.c.l.b16 %v63
  %v350 = vunpack.c.l.b16 %v64
  %v351 = vunpack.c.l.b16 %v65
  %v352 = vunpack.c.l.b16 %v66
  %v353 = vunpack.c.l.b16 %v67
  %v354 = vunpack.c.l.b16 %v68
  %v355 = vunpack.c.l.b16 %v69
  %v356 = vunpack.c.l.b16 %v70
  %v357 = vunpack.c.l.b16 %v71
  %v358 = vunpack.c.l.b16 %v72
  %v359 = vunpack.c.l.b16 %v73
  %v360 = vunpack.c.l.b16 %v74
  %v361 = vunpack.c.l.b16 %v75
  %v362 = vunpack.c.l.b16 %v76
  %v363 = vunpack.c.l.b16 %v77
  %v364 = vunpack.c.l.b16 %v78
  %v365 = vunpack.c.l.b16 %v79
  %v366 = vunpack.c.l.b16 %v80
  %v367 = vunpack.c.l.b16 %v81
  %v368 = vunpack.c.l.b16 %v82
  %v369 = vunpack.c.l.b16 %v83
  %v370 = vunpack.c.l.b16 %v84
  %v371 = vunpack.c.l.b16 %v85
  %v372 = vunpack.c.l.b16 %v86
  %v373 = vunpack.c.l.b16 %v87
  %v374 = vunpack.c.l.b16 %v88
  %v375 = vunpack.c.l.b16 %v89
  %v376 = vunpack.c.l.b16 %v90
  %v377 = vunpack.c.l.b16 %v91
  %v378 = vunpack.c.l.b16 %v92
  %v379 = vunpack.c.l.b16 %v93
  %v380 = vunpack.c.l.b16 %v94
  %v381 = vunpack.c.l.b16 %v95
  %v382 = vunpack.c.l.b16 %v96
  %v383 = vunpack.c.l.b16 %v97
  %v384 = vunpack.c.l.b16 %v98
  %v385 = vunpack.c.l.b16 %v99
  %v386 = vunpack.c.l.b16 %v100
  %v387 = vunpack.c.l.b16 %v101
  %v388 = vunpack.c.l.b16 %v102
  %v389 = vunpack.c.l.b16 %v103
  %v390 = vunpack.c.l.b16 %v104
  %v391 = vunpack.c.l.b16 %v105
  %v392 = vunpack.c.l.b16 %v106
  %v393 = vunpack.c.l.b16 %v107
  %v394 = vunpack.c.l.b16 %v108
  %v395 = vunpack.c.l.b16 %v109
  %v396 = vunpack.c.l.b16 %v110
  %v397 = vunpack.c.l.b16 %v111
  %v398 = vunpack.c.l.b16 %v112
  %v399 = vunpack.c.l.b16 %v113
  %v400 = vunpack.c.l.b16 %v114
  %v401 = vpack.c.b16 %v302, %v301
  %v402 = vpack.c.b16 %v304, %v303
  %v403 = vpack.c.b16 %v306, %v305
  %v404 = vpack.c.b16 %v308, %v307
  %v405 = vpack.c.b16 %v310, %v309
  %v406 = vpack.c.b16 %v312, %v311
  %v407 = vpack.c.b16 %v314, %v313
  %v408 = vpack.c.b16 %v316, %v315
  %v409 = vpack.c.b16 %v318, %v317
  %v410 = vpack.c.b16 %v320, %v319
  %v411 = vpack.c.b16 %v322, %v321
  %v412 = vpack.c.b16 %v324, %v323
  %v413 = vpack.c.b16 %v326, %v325
  %v414 = vpack.c.b16 %v328, %v327
  %v415 = vpack.c.b16 %v330, %v329
  %v416 = vpack.c.b16 %v332, %v331
  %v417 = vpack.c.b16 %v334, %v333
  %v418 = vpack.c.b16 %v336, %v335
  %v419 = vpack.c.b16 %v338, %v337
  %v420 = vpack.c.b16 %v340, %v339
  %v421 = vpack.c.b16 %v342, %v341
  %v422 = vpack.c.b16 %v344, %v343
  %v423 = vpack.c.b16 %v346, %v345
  %v424 = vpack.c.b16 %v348, %v347
  %v425 = vpack.c.b16 %v350, %v349
  %v426 = vpack.c.b16 %v352, %v351
  %v427 = vpack.c.b16 %v354, %v353
  %v428 = vpack.c.b16 %v356, %v355
  %v429 = vpack.c.b16 %v358, %v357
  %v430 = vpack.c.b16 %v360, %v359
  %v431 = vpack.c.b16 %v362, %v361
  %v432 = vpack.c.b16 %v364, %v363
  %v433 = vpack.c.b16 %v366, %v365
  %v434 = vpack.c.b16 %v368, %v367
  %v435 = vpack.c.b16 %v370, %v369
  %v436 = vpack.c.b16 %v372, %v371
  %v437 = vpack.c.b16 %v374, %v373
  %v438 = vpack.c.b16 %v376, %v375
  %v439 = vpack.c.b16 %v378, %v377
  %v440 = vpack.c.b16 %v380, %v379
  %v441 = vpack.c.b16 %v382, %v381
  %v442 = vpack.c.b16 %v384, %v383
  %v443 = vpack.c.b16 %v386, %v385
  %v444 = vpack.c.b16 %v388, %v387
  %v445 = vpack.c.b16 %v390, %v389
  %v446 = vpack.c.b16 %v392, %v391
  %v447 = vpack.c.b16 %v394, %v393
  %v448 = vpack.c.b16 %v396, %v395
  %v449 = vpack.c.b16 %v398, %v397
  %v450 = vpack.c.b16 %v400, %v399
  %vm501 = vcmask 261120
  %v503 = vsel %vm501, %v181, 0
  %v506 = vsel %vm501, %v188, 0
  %508 = vmatpush.bf16.msra.mxu0 %v408
  %509 = vmatpush.bf16.msra.mxu0 %v407
  %510 = vmatpush.bf16.msra.mxu0 %v406
  %511 = vmatpush.bf16.msra.mxu0 %v405
  %512 = vmatpush.bf16.msra.mxu0 %v404
  %513 = vmatpush.bf16.msra.mxu0 %v403
  %514 = vmatpush.bf16.msra.mxu0 %v402
  %515 = vmatpush.bf16.msra.mxu0 %v401
  %516 = vmatmul.bf16.gmra.mxu0 %v175
  %v517 = vpop.f32.mrf.mxu0
  %v518 = vadd.f32 0.0, %v517
  %v519 = vpop.f32.mrf.mxu0
  %v520 = vadd.f32 0.0, %v519
  %521 = vmatmul.bf16.gmra.mxu0 %v182
  %v522 = vpop.f32.mrf.mxu0
  %v523 = vadd.f32 0.0, %v522
  %v524 = vpop.f32.mrf.mxu0
  %v525 = vadd.f32 0.0, %v524
  %526 = vdwg.mxu0
  %527 = vmatpush.bf16.msra.mxu0 %v416
  %528 = vmatpush.bf16.msra.mxu0 %v415
  %529 = vmatpush.bf16.msra.mxu0 %v414
  %530 = vmatpush.bf16.msra.mxu0 %v413
  %531 = vmatpush.bf16.msra.mxu0 %v412
  %532 = vmatpush.bf16.msra.mxu0 %v411
  %533 = vmatpush.bf16.msra.mxu0 %v410
  %534 = vmatpush.bf16.msra.mxu0 %v409
  %535 = vmatmul.bf16.gmra.mxu0 %v176
  %v536 = vpop.f32.mrf.mxu0
  %v537 = vadd.f32 %v518, %v536
  %v538 = vpop.f32.mrf.mxu0
  %v539 = vadd.f32 %v520, %v538
  %540 = vmatmul.bf16.gmra.mxu0 %v183
  %v541 = vpop.f32.mrf.mxu0
  %v542 = vadd.f32 %v523, %v541
  %v543 = vpop.f32.mrf.mxu0
  %v544 = vadd.f32 %v525, %v543
  %545 = vdwg.mxu0
  %546 = vmatpush.bf16.msra.mxu0 %v424
  %547 = vmatpush.bf16.msra.mxu0 %v423
  %548 = vmatpush.bf16.msra.mxu0 %v422
  %549 = vmatpush.bf16.msra.mxu0 %v421
  %550 = vmatpush.bf16.msra.mxu0 %v420
  %551 = vmatpush.bf16.msra.mxu0 %v419
  %552 = vmatpush.bf16.msra.mxu0 %v418
  %553 = vmatpush.bf16.msra.mxu0 %v417
  %554 = vmatmul.bf16.gmra.mxu0 %v177
  %v555 = vpop.f32.mrf.mxu0
  %v556 = vadd.f32 %v537, %v555
  %v557 = vpop.f32.mrf.mxu0
  %v558 = vadd.f32 %v539, %v557
  %559 = vmatmul.bf16.gmra.mxu0 %v184
  %v560 = vpop.f32.mrf.mxu0
  %v561 = vadd.f32 %v542, %v560
  %v562 = vpop.f32.mrf.mxu0
  %v563 = vadd.f32 %v544, %v562
  %564 = vdwg.mxu0
  %565 = vmatpush.bf16.msra.mxu0 %v432
  %566 = vmatpush.bf16.msra.mxu0 %v431
  %567 = vmatpush.bf16.msra.mxu0 %v430
  %568 = vmatpush.bf16.msra.mxu0 %v429
  %569 = vmatpush.bf16.msra.mxu0 %v428
  %570 = vmatpush.bf16.msra.mxu0 %v427
  %571 = vmatpush.bf16.msra.mxu0 %v426
  %572 = vmatpush.bf16.msra.mxu0 %v425
  %573 = vmatmul.bf16.gmra.mxu0 %v178
  %v574 = vpop.f32.mrf.mxu0
  %v575 = vadd.f32 %v556, %v574
  %v576 = vpop.f32.mrf.mxu0
  %v577 = vadd.f32 %v558, %v576
  %578 = vmatmul.bf16.gmra.mxu0 %v185
  %v579 = vpop.f32.mrf.mxu0
  %v580 = vadd.f32 %v561, %v579
  %v581 = vpop.f32.mrf.mxu0
  %v582 = vadd.f32 %v563, %v581
  %583 = vdwg.mxu0
  %584 = vmatpush.bf16.msra.mxu0 %v440
  %585 = vmatpush.bf16.msra.mxu0 %v439
  %586 = vmatpush.bf16.msra.mxu0 %v438
  %587 = vmatpush.bf16.msra.mxu0 %v437
  %588 = vmatpush.bf16.msra.mxu0 %v436
  %589 = vmatpush.bf16.msra.mxu0 %v435
  %590 = vmatpush.bf16.msra.mxu0 %v434
  %591 = vmatpush.bf16.msra.mxu0 %v433
  %592 = vmatmul.bf16.gmra.mxu0 %v179
  %v593 = vpop.f32.mrf.mxu0
  %v594 = vadd.f32 %v575, %v593
  %v595 = vpop.f32.mrf.mxu0
  %v596 = vadd.f32 %v577, %v595
  %597 = vmatmul.bf16.gmra.mxu0 %v186
  %v598 = vpop.f32.mrf.mxu0
  %v599 = vadd.f32 %v580, %v598
  %v600 = vpop.f32.mrf.mxu0
  %v601 = vadd.f32 %v582, %v600
  %602 = vdwg.mxu0
  %603 = vmatpush.bf16.msra.mxu0 %v448
  %604 = vmatpush.bf16.msra.mxu0 %v447
  %605 = vmatpush.bf16.msra.mxu0 %v446
  %606 = vmatpush.bf16.msra.mxu0 %v445
  %607 = vmatpush.bf16.msra.mxu0 %v444
  %608 = vmatpush.bf16.msra.mxu0 %v443
  %609 = vmatpush.bf16.msra.mxu0 %v442
  %610 = vmatpush.bf16.msra.mxu0 %v441
  %611 = vmatmul.bf16.gmra.mxu0 %v180
  %v612 = vpop.f32.mrf.mxu0
  %v613 = vadd.f32 %v594, %v612
  %v614 = vpop.f32.mrf.mxu0
  %v615 = vadd.f32 %v596, %v614
  %616 = vmatmul.bf16.gmra.mxu0 %v187
  %v617 = vpop.f32.mrf.mxu0
  %v618 = vadd.f32 %v599, %v617
  %v619 = vpop.f32.mrf.mxu0
  %v620 = vadd.f32 %v601, %v619
  %621 = vdwg.mxu0
  %622 = vmatpush.bf16.msra.mxu0 0
  %623 = vmatpush.bf16.msra.mxu0 0
  %624 = vmatpush.bf16.msra.mxu0 0
  %625 = vmatpush.bf16.msra.mxu0 0
  %626 = vmatpush.bf16.msra.mxu0 0
  %627 = vmatpush.bf16.msra.mxu0 0
  %628 = vmatpush.bf16.msra.mxu0 %v450
  %629 = vmatpush.bf16.msra.mxu0 %v449
  %630 = vmatmul.bf16.gmra.mxu0 %v503
  %v631 = vpop.f32.mrf.mxu0
  %v632 = vadd.f32 %v613, %v631
  %v633 = vpop.f32.mrf.mxu0
  %v634 = vadd.f32 %v615, %v633
  %635 = vmatmul.bf16.gmra.mxu0 %v506
  %v636 = vpop.f32.mrf.mxu0
  %v637 = vadd.f32 %v618, %v636
  %v638 = vpop.f32.mrf.mxu0
  %v639 = vadd.f32 %v620, %v638
  %640 = vdwg.mxu0
  %s641 = scalar_lea.vmem %s0, 112
  %v642 = vld [vmem:[%s641] sm:$0xff]
  %v643 = vld [vmem:[%s641 + $0x8] sm:$0xff]
  %v644 = vld [vmem:[%s641 + $0x10] sm:$0xff]
  %v645 = vld [vmem:[%s641 + $0x18] sm:$0xf]
  %v646 = vld [vmem:[%s641 + $0x1c] sm:$0xff]
  %v647 = vld [vmem:[%s641 + $0x24] sm:$0xff]
  %v648 = vld [vmem:[%s641 + $0x2c] sm:$0xff]
  %v649 = vld [vmem:[%s641 + $0x34] sm:$0xf]
  %v650 = vld [vmem:[%s641 + $0x38] sm:$0xff]
  %v651 = vld [vmem:[%s641 + $0x40] sm:$0xff]
  %v652 = vld [vmem:[%s641 + $0x48] sm:$0xff]
  %v653 = vld [vmem:[%s641 + $0x50] sm:$0xf]
  %v654 = vld [vmem:[%s641 + $0x54] sm:$0xff]
  %v655 = vld [vmem:[%s641 + $0x5c] sm:$0xff]
  %v656 = vld [vmem:[%s641 + $0x64] sm:$0xff]
  %v657 = vld [vmem:[%s641 + $0x6c] sm:$0xf]
  %v674 = vunpack.c.l.b16 %v642
  %v675 = vunpack.c.h.b16 %v642
  %v676 = vunpack.c.l.b16 %v643
  %v677 = vunpack.c.h.b16 %v643
  %v678 = vunpack.c.l.b16 %v644
  %v679 = vunpack.c.h.b16 %v644
  %v680 = vunpack.c.l.b16 %v645
  %v681 = vunpack.c.l.b16 %v646
  %v682 = vunpack.c.h.b16 %v646
  %v683 = vunpack.c.l.b16 %v647
  %v684 = vunpack.c.h.b16 %v647
  %v685 = vunpack.c.l.b16 %v648
  %v686 = vunpack.c.h.b16 %v648
  %v687 = vunpack.c.l.b16 %v649
  %v688 = vunpack.c.l.b16 %v650
  %v689 = vunpack.c.h.b16 %v650
  %v690 = vunpack.c.l.b16 %v651
  %v691 = vunpack.c.h.b16 %v651
  %v692 = vunpack.c.l.b16 %v652
  %v693 = vunpack.c.h.b16 %v652
  %v694 = vunpack.c.l.b16 %v653
  %v695 = vunpack.c.l.b16 %v654
  %v696 = vunpack.c.h.b16 %v654
  %v697 = vunpack.c.l.b16 %v655
  %v698 = vunpack.c.h.b16 %v655
  %v699 = vunpack.c.l.b16 %v656
  %v700 = vunpack.c.h.b16 %v656
  %v701 = vunpack.c.l.b16 %v657
  %v702 = vpack.c.b16 %v681, %v674
  %v703 = vpack.c.b16 %v682, %v675
  %v704 = vpack.c.b16 %v683, %v676
  %v705 = vpack.c.b16 %v684, %v677
  %v706 = vpack.c.b16 %v685, %v678
  %v707 = vpack.c.b16 %v686, %v679
  %v708 = vpack.c.b16 %v687, %v680
  %v709 = vpack.c.b16 %v695, %v688
  %v710 = vpack.c.b16 %v696, %v689
  %v711 = vpack.c.b16 %v697, %v690
  %v712 = vpack.c.b16 %v698, %v691
  %v713 = vpack.c.b16 %v699, %v692
  %v714 = vpack.c.b16 %v700, %v693
  %v715 = vpack.c.b16 %v701, %v694
  %v729 = vsel %vm501, %v708, 0
  %v732 = vsel %vm501, %v715, 0
  %734 = vmatpush.bf16.msra.mxu0 %v408
  %735 = vmatpush.bf16.msra.mxu0 %v407
  %736 = vmatpush.bf16.msra.mxu0 %v406
  %737 = vmatpush.bf16.msra.mxu0 %v405
  %738 = vmatpush.bf16.msra.mxu0 %v404
  %739 = vmatpush.bf16.msra.mxu0 %v403
  %740 = vmatpush.bf16.msra.mxu0 %v402
  %741 = vmatpush.bf16.msra.mxu0 %v401
  %742 = vmatmul.bf16.gmra.mxu0 %v702
  %v743 = vpop.f32.mrf.mxu0
  %v744 = vadd.f32 0.0, %v743
  %v745 = vpop.f32.mrf.mxu0
  %v746 = vadd.f32 0.0, %v745
  %747 = vmatmul.bf16.gmra.mxu0 %v709
  %v748 = vpop.f32.mrf.mxu0
  %v749 = vadd.f32 0.0, %v748
  %v750 = vpop.f32.mrf.mxu0
  %v751 = vadd.f32 0.0, %v750
  %752 = vdwg.mxu0
  %753 = vmatpush.bf16.msra.mxu0 %v416
  %754 = vmatpush.bf16.msra.mxu0 %v415
  %755 = vmatpush.bf16.msra.mxu0 %v414
  %756 = vmatpush.bf16.msra.mxu0 %v413
  %757 = vmatpush.bf16.msra.mxu0 %v412
  %758 = vmatpush.bf16.msra.mxu0 %v411
  %759 = vmatpush.bf16.msra.mxu0 %v410
  %760 = vmatpush.bf16.msra.mxu0 %v409
  %761 = vmatmul.bf16.gmra.mxu0 %v703
  %v762 = vpop.f32.mrf.mxu0
  %v763 = vadd.f32 %v744, %v762
  %v764 = vpop.f32.mrf.mxu0
  %v765 = vadd.f32 %v746, %v764
  %766 = vmatmul.bf16.gmra.mxu0 %v710
  %v767 = vpop.f32.mrf.mxu0
  %v768 = vadd.f32 %v749, %v767
  %v769 = vpop.f32.mrf.mxu0
  %v770 = vadd.f32 %v751, %v769
  %771 = vdwg.mxu0
  %772 = vmatpush.bf16.msra.mxu0 %v424
  %773 = vmatpush.bf16.msra.mxu0 %v423
  %774 = vmatpush.bf16.msra.mxu0 %v422
  %775 = vmatpush.bf16.msra.mxu0 %v421
  %776 = vmatpush.bf16.msra.mxu0 %v420
  %777 = vmatpush.bf16.msra.mxu0 %v419
  %778 = vmatpush.bf16.msra.mxu0 %v418
  %779 = vmatpush.bf16.msra.mxu0 %v417
  %780 = vmatmul.bf16.gmra.mxu0 %v704
  %v781 = vpop.f32.mrf.mxu0
  %v782 = vadd.f32 %v763, %v781
  %v783 = vpop.f32.mrf.mxu0
  %v784 = vadd.f32 %v765, %v783
  %785 = vmatmul.bf16.gmra.mxu0 %v711
  %v786 = vpop.f32.mrf.mxu0
  %v787 = vadd.f32 %v768, %v786
  %v788 = vpop.f32.mrf.mxu0
  %v789 = vadd.f32 %v770, %v788
  %790 = vdwg.mxu0
  %791 = vmatpush.bf16.msra.mxu0 %v432
  %792 = vmatpush.bf16.msra.mxu0 %v431
  %793 = vmatpush.bf16.msra.mxu0 %v430
  %794 = vmatpush.bf16.msra.mxu0 %v429
  %795 = vmatpush.bf16.msra.mxu0 %v428
  %796 = vmatpush.bf16.msra.mxu0 %v427
  %797 = vmatpush.bf16.msra.mxu0 %v426
  %798 = vmatpush.bf16.msra.mxu0 %v425
  %799 = vmatmul.bf16.gmra.mxu0 %v705
  %v800 = vpop.f32.mrf.mxu0
  %v801 = vadd.f32 %v782, %v800
  %v802 = vpop.f32.mrf.mxu0
  %v803 = vadd.f32 %v784, %v802
  %804 = vmatmul.bf16.gmra.mxu0 %v712
  %v805 = vpop.f32.mrf.mxu0
  %v806 = vadd.f32 %v787, %v805
  %v807 = vpop.f32.mrf.mxu0
  %v808 = vadd.f32 %v789, %v807
  %809 = vdwg.mxu0
  %810 = vmatpush.bf16.msra.mxu0 %v440
  %811 = vmatpush.bf16.msra.mxu0 %v439
  %812 = vmatpush.bf16.msra.mxu0 %v438
  %813 = vmatpush.bf16.msra.mxu0 %v437
  %814 = vmatpush.bf16.msra.mxu0 %v436
  %815 = vmatpush.bf16.msra.mxu0 %v435
  %816 = vmatpush.bf16.msra.mxu0 %v434
  %817 = vmatpush.bf16.msra.mxu0 %v433
  %818 = vmatmul.bf16.gmra.mxu0 %v706
  %v819 = vpop.f32.mrf.mxu0
  %v820 = vadd.f32 %v801, %v819
  %v821 = vpop.f32.mrf.mxu0
  %v822 = vadd.f32 %v803, %v821
  %823 = vmatmul.bf16.gmra.mxu0 %v713
  %v824 = vpop.f32.mrf.mxu0
  %v825 = vadd.f32 %v806, %v824
  %v826 = vpop.f32.mrf.mxu0
  %v827 = vadd.f32 %v808, %v826
  %828 = vdwg.mxu0
  %829 = vmatpush.bf16.msra.mxu0 %v448
  %830 = vmatpush.bf16.msra.mxu0 %v447
  %831 = vmatpush.bf16.msra.mxu0 %v446
  %832 = vmatpush.bf16.msra.mxu0 %v445
  %833 = vmatpush.bf16.msra.mxu0 %v444
  %834 = vmatpush.bf16.msra.mxu0 %v443
  %835 = vmatpush.bf16.msra.mxu0 %v442
  %836 = vmatpush.bf16.msra.mxu0 %v441
  %837 = vmatmul.bf16.gmra.mxu0 %v707
  %v838 = vpop.f32.mrf.mxu0
  %v839 = vadd.f32 %v820, %v838
  %v840 = vpop.f32.mrf.mxu0
  %v841 = vadd.f32 %v822, %v840
  %842 = vmatmul.bf16.gmra.mxu0 %v714
  %v843 = vpop.f32.mrf.mxu0
  %v844 = vadd.f32 %v825, %v843
  %v845 = vpop.f32.mrf.mxu0
  %v846 = vadd.f32 %v827, %v845
  %847 = vdwg.mxu0
  %848 = vmatpush.bf16.msra.mxu0 0
  %849 = vmatpush.bf16.msra.mxu0 0
  %850 = vmatpush.bf16.msra.mxu0 0
  %851 = vmatpush.bf16.msra.mxu0 0
  %852 = vmatpush.bf16.msra.mxu0 0
  %853 = vmatpush.bf16.msra.mxu0 0
  %854 = vmatpush.bf16.msra.mxu0 %v450
  %855 = vmatpush.bf16.msra.mxu0 %v449
  %856 = vmatmul.bf16.gmra.mxu0 %v729
  %v857 = vpop.f32.mrf.mxu0
  %v858 = vadd.f32 %v839, %v857
  %v859 = vpop.f32.mrf.mxu0
  %v860 = vadd.f32 %v841, %v859
  %861 = vmatmul.bf16.gmra.mxu0 %v732
  %v862 = vpop.f32.mrf.mxu0
  %v863 = vadd.f32 %v844, %v862
  %v864 = vpop.f32.mrf.mxu0
  %v865 = vadd.f32 %v846, %v864
  %866 = vdwg.mxu0
  %v867 = vmax.f32 %v632, %v858
  %v868 = vmax.f32 %v634, %v860
  %v869 = vmax.f32 %v637, %v863
  %v870 = vmax.f32 %v639, %v865
  %s871 = scalar_lea.vmem %s0, 224
  %v872 = vld [vmem:[%s871] sm:$0xff]
  %v873 = vld [vmem:[%s871 + $0x8] sm:$0xff]
  %v874 = vld [vmem:[%s871 + $0x10] sm:$0xff]
  %v875 = vld [vmem:[%s871 + $0x18] sm:$0xf]
  %v876 = vld [vmem:[%s871 + $0x1c] sm:$0xff]
  %v877 = vld [vmem:[%s871 + $0x24] sm:$0xff]
  %v878 = vld [vmem:[%s871 + $0x2c] sm:$0xff]
  %v879 = vld [vmem:[%s871 + $0x34] sm:$0xf]
  %v880 = vld [vmem:[%s871 + $0x38] sm:$0xff]
  %v881 = vld [vmem:[%s871 + $0x40] sm:$0xff]
  %v882 = vld [vmem:[%s871 + $0x48] sm:$0xff]
  %v883 = vld [vmem:[%s871 + $0x50] sm:$0xf]
  %v884 = vld [vmem:[%s871 + $0x54] sm:$0xff]
  %v885 = vld [vmem:[%s871 + $0x5c] sm:$0xff]
  %v886 = vld [vmem:[%s871 + $0x64] sm:$0xff]
  %v887 = vld [vmem:[%s871 + $0x6c] sm:$0xf]
  %v904 = vunpack.c.l.b16 %v872
  %v905 = vunpack.c.h.b16 %v872
  %v906 = vunpack.c.l.b16 %v873
  %v907 = vunpack.c.h.b16 %v873
  %v908 = vunpack.c.l.b16 %v874
  %v909 = vunpack.c.h.b16 %v874
  %v910 = vunpack.c.l.b16 %v875
  %v911 = vunpack.c.l.b16 %v876
  %v912 = vunpack.c.h.b16 %v876
  %v913 = vunpack.c.l.b16 %v877
  %v914 = vunpack.c.h.b16 %v877
  %v915 = vunpack.c.l.b16 %v878
  %v916 = vunpack.c.h.b16 %v878
  %v917 = vunpack.c.l.b16 %v879
  %v918 = vunpack.c.l.b16 %v880
  %v919 = vunpack.c.h.b16 %v880
  %v920 = vunpack.c.l.b16 %v881
  %v921 = vunpack.c.h.b16 %v881
  %v922 = vunpack.c.l.b16 %v882
  %v923 = vunpack.c.h.b16 %v882
  %v924 = vunpack.c.l.b16 %v883
  %v925 = vunpack.c.l.b16 %v884
  %v926 = vunpack.c.h.b16 %v884
  %v927 = vunpack.c.l.b16 %v885
  %v928 = vunpack.c.h.b16 %v885
  %v929 = vunpack.c.l.b16 %v886
  %v930 = vunpack.c.h.b16 %v886
  %v931 = vunpack.c.l.b16 %v887
  %v932 = vpack.c.b16 %v911, %v904
  %v933 = vpack.c.b16 %v912, %v905
  %v934 = vpack.c.b16 %v913, %v906
  %v935 = vpack.c.b16 %v914, %v907
  %v936 = vpack.c.b16 %v915, %v908
  %v937 = vpack.c.b16 %v916, %v909
  %v938 = vpack.c.b16 %v917, %v910
  %v939 = vpack.c.b16 %v925, %v918
  %v940 = vpack.c.b16 %v926, %v919
  %v941 = vpack.c.b16 %v927, %v920
  %v942 = vpack.c.b16 %v928, %v921
  %v943 = vpack.c.b16 %v929, %v922
  %v944 = vpack.c.b16 %v930, %v923
  %v945 = vpack.c.b16 %v931, %v924
  %v959 = vsel %vm501, %v938, 0
  %v962 = vsel %vm501, %v945, 0
  %964 = vmatpush.bf16.msra.mxu0 %v408
  %965 = vmatpush.bf16.msra.mxu0 %v407
  %966 = vmatpush.bf16.msra.mxu0 %v406
  %967 = vmatpush.bf16.msra.mxu0 %v405
  %968 = vmatpush.bf16.msra.mxu0 %v404
  %969 = vmatpush.bf16.msra.mxu0 %v403
  %970 = vmatpush.bf16.msra.mxu0 %v402
  %971 = vmatpush.bf16.msra.mxu0 %v401
  %972 = vmatmul.bf16.gmra.mxu0 %v932
  %v973 = vpop.f32.mrf.mxu0
  %v974 = vadd.f32 0.0, %v973
  %v975 = vpop.f32.mrf.mxu0
  %v976 = vadd.f32 0.0, %v975
  %977 = vmatmul.bf16.gmra.mxu0 %v939
  %v978 = vpop.f32.mrf.mxu0
  %v979 = vadd.f32 0.0, %v978
  %v980 = vpop.f32.mrf.mxu0
  %v981 = vadd.f32 0.0, %v980
  %982 = vdwg.mxu0
  %983 = vmatpush.bf16.msra.mxu0 %v416
  %984 = vmatpush.bf16.msra.mxu0 %v415
  %985 = vmatpush.bf16.msra.mxu0 %v414
  %986 = vmatpush.bf16.msra.mxu0 %v413
  %987 = vmatpush.bf16.msra.mxu0 %v412
  %988 = vmatpush.bf16.msra.mxu0 %v411
  %989 = vmatpush.bf16.msra.mxu0 %v410
  %990 = vmatpush.bf16.msra.mxu0 %v409
  %991 = vmatmul.bf16.gmra.mxu0 %v933
  %v992 = vpop.f32.mrf.mxu0
  %v993 = vadd.f32 %v974, %v992
  %v994 = vpop.f32.mrf.mxu0
  %v995 = vadd.f32 %v976, %v994
  %996 = vmatmul.bf16.gmra.mxu0 %v940
  %v997 = vpop.f32.mrf.mxu0
  %v998 = vadd.f32 %v979, %v997
  %v999 = vpop.f32.mrf.mxu0
  %v1000 = vadd.f32 %v981, %v999
  %1001 = vdwg.mxu0
  %1002 = vmatpush.bf16.msra.mxu0 %v424
  %1003 = vmatpush.bf16.msra.mxu0 %v423
  %1004 = vmatpush.bf16.msra.mxu0 %v422
  %1005 = vmatpush.bf16.msra.mxu0 %v421
  %1006 = vmatpush.bf16.msra.mxu0 %v420
  %1007 = vmatpush.bf16.msra.mxu0 %v419
  %1008 = vmatpush.bf16.msra.mxu0 %v418
  %1009 = vmatpush.bf16.msra.mxu0 %v417
  %1010 = vmatmul.bf16.gmra.mxu0 %v934
  %v1011 = vpop.f32.mrf.mxu0
  %v1012 = vadd.f32 %v993, %v1011
  %v1013 = vpop.f32.mrf.mxu0
  %v1014 = vadd.f32 %v995, %v1013
  %1015 = vmatmul.bf16.gmra.mxu0 %v941
  %v1016 = vpop.f32.mrf.mxu0
  %v1017 = vadd.f32 %v998, %v1016
  %v1018 = vpop.f32.mrf.mxu0
  %v1019 = vadd.f32 %v1000, %v1018
  %1020 = vdwg.mxu0
  %1021 = vmatpush.bf16.msra.mxu0 %v432
  %1022 = vmatpush.bf16.msra.mxu0 %v431
  %1023 = vmatpush.bf16.msra.mxu0 %v430
  %1024 = vmatpush.bf16.msra.mxu0 %v429
  %1025 = vmatpush.bf16.msra.mxu0 %v428
  %1026 = vmatpush.bf16.msra.mxu0 %v427
  %1027 = vmatpush.bf16.msra.mxu0 %v426
  %1028 = vmatpush.bf16.msra.mxu0 %v425
  %1029 = vmatmul.bf16.gmra.mxu0 %v935
  %v1030 = vpop.f32.mrf.mxu0
  %v1031 = vadd.f32 %v1012, %v1030
  %v1032 = vpop.f32.mrf.mxu0
  %v1033 = vadd.f32 %v1014, %v1032
  %1034 = vmatmul.bf16.gmra.mxu0 %v942
  %v1035 = vpop.f32.mrf.mxu0
  %v1036 = vadd.f32 %v1017, %v1035
  %v1037 = vpop.f32.mrf.mxu0
  %v1038 = vadd.f32 %v1019, %v1037
  %1039 = vdwg.mxu0
  %1040 = vmatpush.bf16.msra.mxu0 %v440
  %1041 = vmatpush.bf16.msra.mxu0 %v439
  %1042 = vmatpush.bf16.msra.mxu0 %v438
  %1043 = vmatpush.bf16.msra.mxu0 %v437
  %1044 = vmatpush.bf16.msra.mxu0 %v436
  %1045 = vmatpush.bf16.msra.mxu0 %v435
  %1046 = vmatpush.bf16.msra.mxu0 %v434
  %1047 = vmatpush.bf16.msra.mxu0 %v433
  %1048 = vmatmul.bf16.gmra.mxu0 %v936
  %v1049 = vpop.f32.mrf.mxu0
  %v1050 = vadd.f32 %v1031, %v1049
  %v1051 = vpop.f32.mrf.mxu0
  %v1052 = vadd.f32 %v1033, %v1051
  %1053 = vmatmul.bf16.gmra.mxu0 %v943
  %v1054 = vpop.f32.mrf.mxu0
  %v1055 = vadd.f32 %v1036, %v1054
  %v1056 = vpop.f32.mrf.mxu0
  %v1057 = vadd.f32 %v1038, %v1056
  %1058 = vdwg.mxu0
  %1059 = vmatpush.bf16.msra.mxu0 %v448
  %1060 = vmatpush.bf16.msra.mxu0 %v447
  %1061 = vmatpush.bf16.msra.mxu0 %v446
  %1062 = vmatpush.bf16.msra.mxu0 %v445
  %1063 = vmatpush.bf16.msra.mxu0 %v444
  %1064 = vmatpush.bf16.msra.mxu0 %v443
  %1065 = vmatpush.bf16.msra.mxu0 %v442
  %1066 = vmatpush.bf16.msra.mxu0 %v441
  %1067 = vmatmul.bf16.gmra.mxu0 %v937
  %v1068 = vpop.f32.mrf.mxu0
  %v1069 = vadd.f32 %v1050, %v1068
  %v1070 = vpop.f32.mrf.mxu0
  %v1071 = vadd.f32 %v1052, %v1070
  %1072 = vmatmul.bf16.gmra.mxu0 %v944
  %v1073 = vpop.f32.mrf.mxu0
  %v1074 = vadd.f32 %v1055, %v1073
  %v1075 = vpop.f32.mrf.mxu0
  %v1076 = vadd.f32 %v1057, %v1075
  %1077 = vdwg.mxu0
  %1078 = vmatpush.bf16.msra.mxu0 0
  %1079 = vmatpush.bf16.msra.mxu0 0
  %1080 = vmatpush.bf16.msra.mxu0 0
  %1081 = vmatpush.bf16.msra.mxu0 0
  %1082 = vmatpush.bf16.msra.mxu0 0
  %1083 = vmatpush.bf16.msra.mxu0 0
  %1084 = vmatpush.bf16.msra.mxu0 %v450
  %1085 = vmatpush.bf16.msra.mxu0 %v449
  %1086 = vmatmul.bf16.gmra.mxu0 %v959
  %v1087 = vpop.f32.mrf.mxu0
  %v1088 = vadd.f32 %v1069, %v1087
  %v1089 = vpop.f32.mrf.mxu0
  %v1090 = vadd.f32 %v1071, %v1089
  %1091 = vmatmul.bf16.gmra.mxu0 %v962
  %v1092 = vpop.f32.mrf.mxu0
  %v1093 = vadd.f32 %v1074, %v1092
  %v1094 = vpop.f32.mrf.mxu0
  %v1095 = vadd.f32 %v1076, %v1094
  %1096 = vdwg.mxu0
  %v1097 = vmax.f32 %v867, %v1088
  %v1098 = vmax.f32 %v868, %v1090
  %v1099 = vmax.f32 %v869, %v1093
  %v1100 = vmax.f32 %v870, %v1095
  %s1101 = scalar_lea.vmem %s0, 336
  %v1102 = vld [vmem:[%s1101] sm:$0xff]
  %v1103 = vld [vmem:[%s1101 + $0x8] sm:$0xff]
  %v1104 = vld [vmem:[%s1101 + $0x10] sm:$0xff]
  %v1105 = vld [vmem:[%s1101 + $0x18] sm:$0xf]
  %v1106 = vld [vmem:[%s1101 + $0x1c] sm:$0xff]
  %v1107 = vld [vmem:[%s1101 + $0x24] sm:$0xff]
  %v1108 = vld [vmem:[%s1101 + $0x2c] sm:$0xff]
  %v1109 = vld [vmem:[%s1101 + $0x34] sm:$0xf]
  %v1110 = vld [vmem:[%s1101 + $0x38] sm:$0xff]
  %v1111 = vld [vmem:[%s1101 + $0x40] sm:$0xff]
  %v1112 = vld [vmem:[%s1101 + $0x48] sm:$0xff]
  %v1113 = vld [vmem:[%s1101 + $0x50] sm:$0xf]
  %v1114 = vld [vmem:[%s1101 + $0x54] sm:$0xff]
  %v1115 = vld [vmem:[%s1101 + $0x5c] sm:$0xff]
  %v1116 = vld [vmem:[%s1101 + $0x64] sm:$0xff]
  %v1117 = vld [vmem:[%s1101 + $0x6c] sm:$0xf]
  %v1134 = vunpack.c.l.b16 %v1102
  %v1135 = vunpack.c.h.b16 %v1102
  %v1136 = vunpack.c.l.b16 %v1103
  %v1137 = vunpack.c.h.b16 %v1103
  %v1138 = vunpack.c.l.b16 %v1104
  %v1139 = vunpack.c.h.b16 %v1104
  %v1140 = vunpack.c.l.b16 %v1105
  %v1141 = vunpack.c.l.b16 %v1106
  %v1142 = vunpack.c.h.b16 %v1106
  %v1143 = vunpack.c.l.b16 %v1107
  %v1144 = vunpack.c.h.b16 %v1107
  %v1145 = vunpack.c.l.b16 %v1108
  %v1146 = vunpack.c.h.b16 %v1108
  %v1147 = vunpack.c.l.b16 %v1109
  %v1148 = vunpack.c.l.b16 %v1110
  %v1149 = vunpack.c.h.b16 %v1110
  %v1150 = vunpack.c.l.b16 %v1111
  %v1151 = vunpack.c.h.b16 %v1111
  %v1152 = vunpack.c.l.b16 %v1112
  %v1153 = vunpack.c.h.b16 %v1112
  %v1154 = vunpack.c.l.b16 %v1113
  %v1155 = vunpack.c.l.b16 %v1114
  %v1156 = vunpack.c.h.b16 %v1114
  %v1157 = vunpack.c.l.b16 %v1115
  %v1158 = vunpack.c.h.b16 %v1115
  %v1159 = vunpack.c.l.b16 %v1116
  %v1160 = vunpack.c.h.b16 %v1116
  %v1161 = vunpack.c.l.b16 %v1117
  %v1162 = vpack.c.b16 %v1141, %v1134
  %v1163 = vpack.c.b16 %v1142, %v1135
  %v1164 = vpack.c.b16 %v1143, %v1136
  %v1165 = vpack.c.b16 %v1144, %v1137
  %v1166 = vpack.c.b16 %v1145, %v1138
  %v1167 = vpack.c.b16 %v1146, %v1139
  %v1168 = vpack.c.b16 %v1147, %v1140
  %v1169 = vpack.c.b16 %v1155, %v1148
  %v1170 = vpack.c.b16 %v1156, %v1149
  %v1171 = vpack.c.b16 %v1157, %v1150
  %v1172 = vpack.c.b16 %v1158, %v1151
  %v1173 = vpack.c.b16 %v1159, %v1152
  %v1174 = vpack.c.b16 %v1160, %v1153
  %v1175 = vpack.c.b16 %v1161, %v1154
  %v1189 = vsel %vm501, %v1168, 0
  %v1192 = vsel %vm501, %v1175, 0
  %1194 = vmatpush.bf16.msra.mxu0 %v408
  %1195 = vmatpush.bf16.msra.mxu0 %v407
  %1196 = vmatpush.bf16.msra.mxu0 %v406
  %1197 = vmatpush.bf16.msra.mxu0 %v405
  %1198 = vmatpush.bf16.msra.mxu0 %v404
  %1199 = vmatpush.bf16.msra.mxu0 %v403
  %1200 = vmatpush.bf16.msra.mxu0 %v402
  %1201 = vmatpush.bf16.msra.mxu0 %v401
  %1202 = vmatmul.bf16.gmra.mxu0 %v1162
  %v1203 = vpop.f32.mrf.mxu0
  %v1204 = vadd.f32 0.0, %v1203
  %v1205 = vpop.f32.mrf.mxu0
  %v1206 = vadd.f32 0.0, %v1205
  %1207 = vmatmul.bf16.gmra.mxu0 %v1169
  %v1208 = vpop.f32.mrf.mxu0
  %v1209 = vadd.f32 0.0, %v1208
  %v1210 = vpop.f32.mrf.mxu0
  %v1211 = vadd.f32 0.0, %v1210
  %1212 = vdwg.mxu0
  %1213 = vmatpush.bf16.msra.mxu0 %v416
  %1214 = vmatpush.bf16.msra.mxu0 %v415
  %1215 = vmatpush.bf16.msra.mxu0 %v414
  %1216 = vmatpush.bf16.msra.mxu0 %v413
  %1217 = vmatpush.bf16.msra.mxu0 %v412
  %1218 = vmatpush.bf16.msra.mxu0 %v411
  %1219 = vmatpush.bf16.msra.mxu0 %v410
  %1220 = vmatpush.bf16.msra.mxu0 %v409
  %1221 = vmatmul.bf16.gmra.mxu0 %v1163
  %v1222 = vpop.f32.mrf.mxu0
  %v1223 = vadd.f32 %v1204, %v1222
  %v1224 = vpop.f32.mrf.mxu0
  %v1225 = vadd.f32 %v1206, %v1224
  %1226 = vmatmul.bf16.gmra.mxu0 %v1170
  %v1227 = vpop.f32.mrf.mxu0
  %v1228 = vadd.f32 %v1209, %v1227
  %v1229 = vpop.f32.mrf.mxu0
  %v1230 = vadd.f32 %v1211, %v1229
  %1231 = vdwg.mxu0
  %1232 = vmatpush.bf16.msra.mxu0 %v424
  %1233 = vmatpush.bf16.msra.mxu0 %v423
  %1234 = vmatpush.bf16.msra.mxu0 %v422
  %1235 = vmatpush.bf16.msra.mxu0 %v421
  %1236 = vmatpush.bf16.msra.mxu0 %v420
  %1237 = vmatpush.bf16.msra.mxu0 %v419
  %1238 = vmatpush.bf16.msra.mxu0 %v418
  %1239 = vmatpush.bf16.msra.mxu0 %v417
  %1240 = vmatmul.bf16.gmra.mxu0 %v1164
  %v1241 = vpop.f32.mrf.mxu0
  %v1242 = vadd.f32 %v1223, %v1241
  %v1243 = vpop.f32.mrf.mxu0
  %v1244 = vadd.f32 %v1225, %v1243
  %1245 = vmatmul.bf16.gmra.mxu0 %v1171
  %v1246 = vpop.f32.mrf.mxu0
  %v1247 = vadd.f32 %v1228, %v1246
  %v1248 = vpop.f32.mrf.mxu0
  %v1249 = vadd.f32 %v1230, %v1248
  %1250 = vdwg.mxu0
  %1251 = vmatpush.bf16.msra.mxu0 %v432
  %1252 = vmatpush.bf16.msra.mxu0 %v431
  %1253 = vmatpush.bf16.msra.mxu0 %v430
  %1254 = vmatpush.bf16.msra.mxu0 %v429
  %1255 = vmatpush.bf16.msra.mxu0 %v428
  %1256 = vmatpush.bf16.msra.mxu0 %v427
  %1257 = vmatpush.bf16.msra.mxu0 %v426
  %1258 = vmatpush.bf16.msra.mxu0 %v425
  %1259 = vmatmul.bf16.gmra.mxu0 %v1165
  %v1260 = vpop.f32.mrf.mxu0
  %v1261 = vadd.f32 %v1242, %v1260
  %v1262 = vpop.f32.mrf.mxu0
  %v1263 = vadd.f32 %v1244, %v1262
  %1264 = vmatmul.bf16.gmra.mxu0 %v1172
  %v1265 = vpop.f32.mrf.mxu0
  %v1266 = vadd.f32 %v1247, %v1265
  %v1267 = vpop.f32.mrf.mxu0
  %v1268 = vadd.f32 %v1249, %v1267
  %1269 = vdwg.mxu0
  %1270 = vmatpush.bf16.msra.mxu0 %v440
  %1271 = vmatpush.bf16.msra.mxu0 %v439
  %1272 = vmatpush.bf16.msra.mxu0 %v438
  %1273 = vmatpush.bf16.msra.mxu0 %v437
  %1274 = vmatpush.bf16.msra.mxu0 %v436
  %1275 = vmatpush.bf16.msra.mxu0 %v435
  %1276 = vmatpush.bf16.msra.mxu0 %v434
  %1277 = vmatpush.bf16.msra.mxu0 %v433
  %1278 = vmatmul.bf16.gmra.mxu0 %v1166
  %v1279 = vpop.f32.mrf.mxu0
  %v1280 = vadd.f32 %v1261, %v1279
  %v1281 = vpop.f32.mrf.mxu0
  %v1282 = vadd.f32 %v1263, %v1281
  %1283 = vmatmul.bf16.gmra.mxu0 %v1173
  %v1284 = vpop.f32.mrf.mxu0
  %v1285 = vadd.f32 %v1266, %v1284
  %v1286 = vpop.f32.mrf.mxu0
  %v1287 = vadd.f32 %v1268, %v1286
  %1288 = vdwg.mxu0
  %1289 = vmatpush.bf16.msra.mxu0 %v448
  %1290 = vmatpush.bf16.msra.mxu0 %v447
  %1291 = vmatpush.bf16.msra.mxu0 %v446
  %1292 = vmatpush.bf16.msra.mxu0 %v445
  %1293 = vmatpush.bf16.msra.mxu0 %v444
  %1294 = vmatpush.bf16.msra.mxu0 %v443
  %1295 = vmatpush.bf16.msra.mxu0 %v442
  %1296 = vmatpush.bf16.msra.mxu0 %v441
  %1297 = vmatmul.bf16.gmra.mxu0 %v1167
  %v1298 = vpop.f32.mrf.mxu0
  %v1299 = vadd.f32 %v1280, %v1298
  %v1300 = vpop.f32.mrf.mxu0
  %v1301 = vadd.f32 %v1282, %v1300
  %1302 = vmatmul.bf16.gmra.mxu0 %v1174
  %v1303 = vpop.f32.mrf.mxu0
  %v1304 = vadd.f32 %v1285, %v1303
  %v1305 = vpop.f32.mrf.mxu0
  %v1306 = vadd.f32 %v1287, %v1305
  %1307 = vdwg.mxu0
  %1308 = vmatpush.bf16.msra.mxu0 0
  %1309 = vmatpush.bf16.msra.mxu0 0
  %1310 = vmatpush.bf16.msra.mxu0 0
  %1311 = vmatpush.bf16.msra.mxu0 0
  %1312 = vmatpush.bf16.msra.mxu0 0
  %1313 = vmatpush.bf16.msra.mxu0 0
  %1314 = vmatpush.bf16.msra.mxu0 %v450
  %1315 = vmatpush.bf16.msra.mxu0 %v449
  %1316 = vmatmul.bf16.gmra.mxu0 %v1189
  %v1317 = vpop.f32.mrf.mxu0
  %v1318 = vadd.f32 %v1299, %v1317
  %v1319 = vpop.f32.mrf.mxu0
  %v1320 = vadd.f32 %v1301, %v1319
  %1321 = vmatmul.bf16.gmra.mxu0 %v1192
  %v1322 = vpop.f32.mrf.mxu0
  %v1323 = vadd.f32 %v1304, %v1322
  %v1324 = vpop.f32.mrf.mxu0
  %v1325 = vadd.f32 %v1306, %v1324
  %1326 = vdwg.mxu0
  %v1327 = vmax.f32 %v1097, %v1318
  %v1328 = vmax.f32 %v1098, %v1320
  %v1329 = vmax.f32 %v1099, %v1323
  %v1330 = vmax.f32 %v1100, %v1325
  %v1331 = vld [vmem:[%s2] sm:$0x1]
  %v1333 = vperm.slane %v1331, 0
  %v1335 = vadd.f32 %v1327, %v1333
  %v1336 = vadd.f32 %v1328, %v1333
  %v1337 = vadd.f32 %v1329, %v1333
  %v1338 = vadd.f32 %v1330, %v1333
  %v1339 = vmax.f32 %v1335, 0.0
  %v1340 = vmax.f32 %v1336, 0.0
  %v1341 = vmax.f32 %v1337, 0.0
  %v1342 = vmax.f32 %v1338, 0.0
  %1343 = vst [vmem:[%s3] sm:$0xff] %v1339
  %1344 = vst [vmem:[%s3 + $0x8] sm:$0xff] %v1340
  %1345 = vst [vmem:[%s3 + $0x10] sm:$0xff] %v1341
  %1346 = vst [vmem:[%s3 + $0x18] sm:$0xff] %v1342
  // Predicated region
  $region14: #{cnn_mnist_forward.4} parent=0 // pred_check
    _
  $region15: #{cnn_mnist_forward.4} parent=0 // pred_check_branch
    %1348 = sbr.rel (0) target = $region17
  $region16: #{cnn_mnist_forward.4} parent=0 // pred_region
    _
  $region17: #{cnn_mnist_forward.4} parent=0 // pred_fallthru
    _
  // Predicated region
  $region18: #{cnn_mnist_forward.4} parent=0 // pred_check
    _
  $region19: #{cnn_mnist_forward.4} parent=0 // pred_check_branch
    %1350 = sbr.rel (0) target = $region21
  $region20: #{cnn_mnist_forward.4} parent=0 // pred_region
    _
  $region21: #{cnn_mnist_forward.4} parent=0 // pred_fallthru
    _

// kernel: cnn_mnist_forward.5
$region0: #{cnn_mnist_forward.5}
  #allocation0 [shape = 'u32[]', space=smem, size = 0x4, offset = 0x4, fixed_abs, tag = 'smem constant byte address 0x4 - core index']
  #allocation1 [shape = 'u32[72,128]{1,0:T(1,128)}', space=vmem, size = 0x9000, scoped, tag = 'internal scratch']
  %s0 = inlined_call_operand.vmem [shape: bf16[8,1024], index: 0, kind: input, shape index: {}]
  %s1 = inlined_call_operand.vmem [shape: bf16[1024,512], index: 1, kind: input, shape index: {}]
  %s2 = inlined_call_operand.vmem [shape: f32[1,512], index: 2, kind: input, shape index: {}]
  %s3 = inlined_call_operand.vmem [shape: bf16[512,128], index: 3, kind: input, shape index: {}]
  %s4 = inlined_call_operand.vmem [shape: f32[1,128], index: 4, kind: input, shape index: {}]
  %s5 = inlined_call_operand.vmem [shape: f32[8,128], index: 5, kind: output, shape index: {}]
  %s6 = sld [smem:[#allocation0]]
  $region30: #{cnn_mnist_forward.5} parent=0
    _
  %s8 = ssub.s32 1, %s6
  %s9 = scalar_select 0, %s8, %s6
  // Predicated region
  $region2: #{cnn_mnist_forward.5} parent=0 // pred_check
    _
  $region3: #{cnn_mnist_forward.5} parent=0 // pred_check_branch
    %11 = sbr.rel (0) target = $region5
  $region4: #{cnn_mnist_forward.5} parent=0 // pred_region
    _
  $region5: #{cnn_mnist_forward.5} parent=0 // pred_fallthru
    _
  // Predicated region
  $region6: #{cnn_mnist_forward.5} parent=0 // pred_check
    _
  $region7: #{cnn_mnist_forward.5} parent=0 // pred_check_branch
    %13 = sbr.rel (0) target = $region9
  $region8: #{cnn_mnist_forward.5} parent=0 // pred_region
    _
  $region9: #{cnn_mnist_forward.5} parent=0 // pred_fallthru
    _
  // Predicated region
  $region10: #{cnn_mnist_forward.5} parent=0 // pred_check
    _
  $region11: #{cnn_mnist_forward.5} parent=0 // pred_check_branch
    %15 = sbr.rel (0) target = $region13
  $region12: #{cnn_mnist_forward.5} parent=0 // pred_region
    _
  $region13: #{cnn_mnist_forward.5} parent=0 // pred_fallthru
    _
  // Predicated region
  $region14: #{cnn_mnist_forward.5} parent=0 // pred_check
    _
  $region15: #{cnn_mnist_forward.5} parent=0 // pred_check_branch
    %17 = sbr.rel (0) target = $region17
  $region16: #{cnn_mnist_forward.5} parent=0 // pred_region
    _
  $region17: #{cnn_mnist_forward.5} parent=0 // pred_fallthru
    _
  // Predicated region
  $region18: #{cnn_mnist_forward.5} parent=0 // pred_check
    _
  $region19: #{cnn_mnist_forward.5} parent=0 // pred_check_branch
    %19 = sbr.rel (0) target = $region21
  $region20: #{cnn_mnist_forward.5} parent=0 // pred_region
    _
  $region21: #{cnn_mnist_forward.5} parent=0 // pred_fallthru
    _
  %v20 = vld [vmem:[%s0] sm:$0xff]
  %v21 = vld [vmem:[%s0 + $0x8] sm:$0xff]
  %v22 = vld [vmem:[%s0 + $0x10] sm:$0xff]
  %v23 = vld [vmem:[%s0 + $0x18] sm:$0xff]
  %v24 = vld [vmem:[%s1] sm:$0xff]
  %v25 = vld [vmem:[%s1 + $0x8] sm:$0xff]
  %v26 = vld [vmem:[%s1 + $0x10] sm:$0xff]
  %v27 = vld [vmem:[%s1 + $0x18] sm:$0xff]
  %v28 = vld [vmem:[%s1 + $0x20] sm:$0xff]
  %v29 = vld [vmem:[%s1 + $0x28] sm:$0xff]
  %v30 = vld [vmem:[%s1 + $0x30] sm:$0xff]
  %v31 = vld [vmem:[%s1 + $0x38] sm:$0xff]
  %v32 = vld [vmem:[%s1 + $0x40] sm:$0xff]
  %v33 = vld [vmem:[%s1 + $0x48] sm:$0xff]
  %v34 = vld [vmem:[%s1 + $0x50] sm:$0xff]
  %v35 = vld [vmem:[%s1 + $0x58] sm:$0xff]
  %v36 = vld [vmem:[%s1 + $0x60] sm:$0xff]
  %v37 = vld [vmem:[%s1 + $0x68] sm:$0xff]
  %v38 = vld [vmem:[%s1 + $0x70] sm:$0xff]
  %v39 = vld [vmem:[%s1 + $0x78] sm:$0xff]
  %v40 = vld [vmem:[%s1 + $0x80] sm:$0xff]
  %v41 = vld [vmem:[%s1 + $0x88] sm:$0xff]
  %v42 = vld [vmem:[%s1 + $0x90] sm:$0xff]
  %v43 = vld [vmem:[%s1 + $0x98] sm:$0xff]
  %v44 = vld [vmem:[%s1 + $0xa0] sm:$0xff]
  %v45 = vld [vmem:[%s1 + $0xa8] sm:$0xff]
  %v46 = vld [vmem:[%s1 + $0xb0] sm:$0xff]
  %v47 = vld [vmem:[%s1 + $0xb8] sm:$0xff]
  %v48 = vld [vmem:[%s1 + $0xc0] sm:$0xff]
  %v49 = vld [vmem:[%s1 + $0xc8] sm:$0xff]
  %v50 = vld [vmem:[%s1 + $0xd0] sm:$0xff]
  %v51 = vld [vmem:[%s1 + $0xd8] sm:$0xff]
  %v52 = vld [vmem:[%s1 + $0xe0] sm:$0xff]
  %v53 = vld [vmem:[%s1 + $0xe8] sm:$0xff]
  %v54 = vld [vmem:[%s1 + $0xf0] sm:$0xff]
  %v55 = vld [vmem:[%s1 + $0xf8] sm:$0xff]
  %v56 = vld [vmem:[%s1 + $0x100] sm:$0xff]
  %v57 = vld [vmem:[%s1 + $0x108] sm:$0xff]
  %v58 = vld [vmem:[%s1 + $0x110] sm:$0xff]
  %v59 = vld [vmem:[%s1 + $0x118] sm:$0xff]
  %v60 = vld [vmem:[%s1 + $0x120] sm:$0xff]
  %v61 = vld [vmem:[%s1 + $0x128] sm:$0xff]
  %v62 = vld [vmem:[%s1 + $0x130] sm:$0xff]
  %v63 = vld [vmem:[%s1 + $0x138] sm:$0xff]
  %v64 = vld [vmem:[%s1 + $0x140] sm:$0xff]
  %v65 = vld [vmem:[%s1 + $0x148] sm:$0xff]
  %v66 = vld [vmem:[%s1 + $0x150] sm:$0xff]
  %v67 = vld [vmem:[%s1 + $0x158] sm:$0xff]
  %v68 = vld [vmem:[%s1 + $0x160] sm:$0xff]
  %v69 = vld [vmem:[%s1 + $0x168] sm:$0xff]
  %v70 = vld [vmem:[%s1 + $0x170] sm:$0xff]
  %v71 = vld [vmem:[%s1 + $0x178] sm:$0xff]
  %v72 = vld [vmem:[%s1 + $0x180] sm:$0xff]
  %v73 = vld [vmem:[%s1 + $0x188] sm:$0xff]
  %v74 = vld [vmem:[%s1 + $0x190] sm:$0xff]
  %v75 = vld [vmem:[%s1 + $0x198] sm:$0xff]
  %v76 = vld [vmem:[%s1 + $0x1a0] sm:$0xff]
  %v77 = vld [vmem:[%s1 + $0x1a8] sm:$0xff]
  %v78 = vld [vmem:[%s1 + $0x1b0] sm:$0xff]
  %v79 = vld [vmem:[%s1 + $0x1b8] sm:$0xff]
  %v80 = vld [vmem:[%s1 + $0x1c0] sm:$0xff]
  %v81 = vld [vmem:[%s1 + $0x1c8] sm:$0xff]
  %v82 = vld [vmem:[%s1 + $0x1d0] sm:$0xff]
  %v83 = vld [vmem:[%s1 + $0x1d8] sm:$0xff]
  %v84 = vld [vmem:[%s1 + $0x1e0] sm:$0xff]
  %v85 = vld [vmem:[%s1 + $0x1e8] sm:$0xff]
  %v86 = vld [vmem:[%s1 + $0x1f0] sm:$0xff]
  %v87 = vld [vmem:[%s1 + $0x1f8] sm:$0xff]
  %v88 = vld [vmem:[%s1 + $0x200] sm:$0xff]
  %v89 = vld [vmem:[%s1 + $0x208] sm:$0xff]
  %v90 = vld [vmem:[%s1 + $0x210] sm:$0xff]
  %v91 = vld [vmem:[%s1 + $0x218] sm:$0xff]
  %v92 = vld [vmem:[%s1 + $0x220] sm:$0xff]
  %v93 = vld [vmem:[%s1 + $0x228] sm:$0xff]
  %v94 = vld [vmem:[%s1 + $0x230] sm:$0xff]
  %v95 = vld [vmem:[%s1 + $0x238] sm:$0xff]
  %v96 = vld [vmem:[%s1 + $0x240] sm:$0xff]
  %v97 = vld [vmem:[%s1 + $0x248] sm:$0xff]
  %v98 = vld [vmem:[%s1 + $0x250] sm:$0xff]
  %v99 = vld [vmem:[%s1 + $0x258] sm:$0xff]
  %v100 = vld [vmem:[%s1 + $0x260] sm:$0xff]
  %v101 = vld [vmem:[%s1 + $0x268] sm:$0xff]
  %v102 = vld [vmem:[%s1 + $0x270] sm:$0xff]
  %v103 = vld [vmem:[%s1 + $0x278] sm:$0xff]
  %v104 = vld [vmem:[%s1 + $0x280] sm:$0xff]
  %v105 = vld [vmem:[%s1 + $0x288] sm:$0xff]
  %v106 = vld [vmem:[%s1 + $0x290] sm:$0xff]
  %v107 = vld [vmem:[%s1 + $0x298] sm:$0xff]
  %v108 = vld [vmem:[%s1 + $0x2a0] sm:$0xff]
  %v109 = vld [vmem:[%s1 + $0x2a8] sm:$0xff]
  %v110 = vld [vmem:[%s1 + $0x2b0] sm:$0xff]
  %v111 = vld [vmem:[%s1 + $0x2b8] sm:$0xff]
  %v112 = vld [vmem:[%s1 + $0x2c0] sm:$0xff]
  %v113 = vld [vmem:[%s1 + $0x2c8] sm:$0xff]
  %v114 = vld [vmem:[%s1 + $0x2d0] sm:$0xff]
  %v115 = vld [vmem:[%s1 + $0x2d8] sm:$0xff]
  %v116 = vld [vmem:[%s1 + $0x2e0] sm:$0xff]
  %v117 = vld [vmem:[%s1 + $0x2e8] sm:$0xff]
  %v118 = vld [vmem:[%s1 + $0x2f0] sm:$0xff]
  %v119 = vld [vmem:[%s1 + $0x2f8] sm:$0xff]
  %v120 = vld [vmem:[%s1 + $0x300] sm:$0xff]
  %v121 = vld [vmem:[%s1 + $0x308] sm:$0xff]
  %v122 = vld [vmem:[%s1 + $0x310] sm:$0xff]
  %v123 = vld [vmem:[%s1 + $0x318] sm:$0xff]
  %v124 = vld [vmem:[%s1 + $0x320] sm:$0xff]
  %v125 = vld [vmem:[%s1 + $0x328] sm:$0xff]
  %v126 = vld [vmem:[%s1 + $0x330] sm:$0xff]
  %v127 = vld [vmem:[%s1 + $0x338] sm:$0xff]
  %v128 = vld [vmem:[%s1 + $0x340] sm:$0xff]
  %v129 = vld [vmem:[%s1 + $0x348] sm:$0xff]
  %v130 = vld [vmem:[%s1 + $0x350] sm:$0xff]
  %v131 = vld [vmem:[%s1 + $0x358] sm:$0xff]
  %v132 = vld [vmem:[%s1 + $0x360] sm:$0xff]
  %v133 = vld [vmem:[%s1 + $0x368] sm:$0xff]
  %v134 = vld [vmem:[%s1 + $0x370] sm:$0xff]
  %v135 = vld [vmem:[%s1 + $0x378] sm:$0xff]
  %v136 = vld [vmem:[%s1 + $0x380] sm:$0xff]
  %v137 = vld [vmem:[%s1 + $0x388] sm:$0xff]
  %v138 = vld [vmem:[%s1 + $0x390] sm:$0xff]
  %v139 = vld [vmem:[%s1 + $0x398] sm:$0xff]
  %v140 = vld [vmem:[%s1 + $0x3a0] sm:$0xff]
  %v141 = vld [vmem:[%s1 + $0x3a8] sm:$0xff]
  %v142 = vld [vmem:[%s1 + $0x3b0] sm:$0xff]
  %v143 = vld [vmem:[%s1 + $0x3b8] sm:$0xff]
  %v144 = vld [vmem:[%s1 + $0x3c0] sm:$0xff]
  %v145 = vld [vmem:[%s1 + $0x3c8] sm:$0xff]
  %v146 = vld [vmem:[%s1 + $0x3d0] sm:$0xff]
  %v147 = vld [vmem:[%s1 + $0x3d8] sm:$0xff]
  %v148 = vld [vmem:[%s1 + $0x3e0] sm:$0xff]
  %v149 = vld [vmem:[%s1 + $0x3e8] sm:$0xff]
  %v150 = vld [vmem:[%s1 + $0x3f0] sm:$0xff]
  %v151 = vld [vmem:[%s1 + $0x3f8] sm:$0xff]
  %v152 = vld [vmem:[%s1 + $0x400] sm:$0xff]
  %v153 = vld [vmem:[%s1 + $0x408] sm:$0xff]
  %v154 = vld [vmem:[%s1 + $0x410] sm:$0xff]
  %v155 = vld [vmem:[%s1 + $0x418] sm:$0xff]
  %v156 = vld [vmem:[%s1 + $0x420] sm:$0xff]
  %v157 = vld [vmem:[%s1 + $0x428] sm:$0xff]
  %v158 = vld [vmem:[%s1 + $0x430] sm:$0xff]
  %v159 = vld [vmem:[%s1 + $0x438] sm:$0xff]
  %v160 = vld [vmem:[%s1 + $0x440] sm:$0xff]
  %v161 = vld [vmem:[%s1 + $0x448] sm:$0xff]
  %v162 = vld [vmem:[%s1 + $0x450] sm:$0xff]
  %v163 = vld [vmem:[%s1 + $0x458] sm:$0xff]
  %v164 = vld [vmem:[%s1 + $0x460] sm:$0xff]
  %v165 = vld [vmem:[%s1 + $0x468] sm:$0xff]
  %v166 = vld [vmem:[%s1 + $0x470] sm:$0xff]
  %v167 = vld [vmem:[%s1 + $0x478] sm:$0xff]
  %v168 = vld [vmem:[%s1 + $0x480] sm:$0xff]
  %v169 = vld [vmem:[%s1 + $0x488] sm:$0xff]
  %v170 = vld [vmem:[%s1 + $0x490] sm:$0xff]
  %v171 = vld [vmem:[%s1 + $0x498] sm:$0xff]
  %v172 = vld [vmem:[%s1 + $0x4a0] sm:$0xff]
  %v173 = vld [vmem:[%s1 + $0x4a8] sm:$0xff]
  %v174 = vld [vmem:[%s1 + $0x4b0] sm:$0xff]
  %v175 = vld [vmem:[%s1 + $0x4b8] sm:$0xff]
  %v176 = vld [vmem:[%s1 + $0x4c0] sm:$0xff]
  %v177 = vld [vmem:[%s1 + $0x4c8] sm:$0xff]
  %v178 = vld [vmem:[%s1 + $0x4d0] sm:$0xff]
  %v179 = vld [vmem:[%s1 + $0x4d8] sm:$0xff]
  %v180 = vld [vmem:[%s1 + $0x4e0] sm:$0xff]
  %v181 = vld [vmem:[%s1 + $0x4e8] sm:$0xff]
  %v182 = vld [vmem:[%s1 + $0x4f0] sm:$0xff]
  %v183 = vld [vmem:[%s1 + $0x4f8] sm:$0xff]
  %v184 = vld [vmem:[%s1 + $0x500] sm:$0xff]
  %v185 = vld [vmem:[%s1 + $0x508] sm:$0xff]
  %v186 = vld [vmem:[%s1 + $0x510] sm:$0xff]
  %v187 = vld [vmem:[%s1 + $0x518] sm:$0xff]
  %v188 = vld [vmem:[%s1 + $0x520] sm:$0xff]
  %v189 = vld [vmem:[%s1 + $0x528] sm:$0xff]
  %v190 = vld [vmem:[%s1 + $0x530] sm:$0xff]
  %v191 = vld [vmem:[%s1 + $0x538] sm:$0xff]
  %v192 = vld [vmem:[%s1 + $0x540] sm:$0xff]
  %v193 = vld [vmem:[%s1 + $0x548] sm:$0xff]
  %v194 = vld [vmem:[%s1 + $0x550] sm:$0xff]
  %v195 = vld [vmem:[%s1 + $0x558] sm:$0xff]
  %v196 = vld [vmem:[%s1 + $0x560] sm:$0xff]
  %v197 = vld [vmem:[%s1 + $0x568] sm:$0xff]
  %v198 = vld [vmem:[%s1 + $0x570] sm:$0xff]
  %v199 = vld [vmem:[%s1 + $0x578] sm:$0xff]
  %v200 = vld [vmem:[%s1 + $0x580] sm:$0xff]
  %v201 = vld [vmem:[%s1 + $0x588] sm:$0xff]
  %v202 = vld [vmem:[%s1 + $0x590] sm:$0xff]
  %v203 = vld [vmem:[%s1 + $0x598] sm:$0xff]
  %v204 = vld [vmem:[%s1 + $0x5a0] sm:$0xff]
  %v205 = vld [vmem:[%s1 + $0x5a8] sm:$0xff]
  %v206 = vld [vmem:[%s1 + $0x5b0] sm:$0xff]
  %v207 = vld [vmem:[%s1 + $0x5b8] sm:$0xff]
  %v208 = vld [vmem:[%s1 + $0x5c0] sm:$0xff]
  %v209 = vld [vmem:[%s1 + $0x5c8] sm:$0xff]
  %v210 = vld [vmem:[%s1 + $0x5d0] sm:$0xff]
  %v211 = vld [vmem:[%s1 + $0x5d8] sm:$0xff]
  %v212 = vld [vmem:[%s1 + $0x5e0] sm:$0xff]
  %v213 = vld [vmem:[%s1 + $0x5e8] sm:$0xff]
  %v214 = vld [vmem:[%s1 + $0x5f0] sm:$0xff]
  %v215 = vld [vmem:[%s1 + $0x5f8] sm:$0xff]
  %v216 = vld [vmem:[%s1 + $0x600] sm:$0xff]
  %v217 = vld [vmem:[%s1 + $0x608] sm:$0xff]
  %v218 = vld [vmem:[%s1 + $0x610] sm:$0xff]
  %v219 = vld [vmem:[%s1 + $0x618] sm:$0xff]
  %v220 = vld [vmem:[%s1 + $0x620] sm:$0xff]
  %v221 = vld [vmem:[%s1 + $0x628] sm:$0xff]
  %v222 = vld [vmem:[%s1 + $0x630] sm:$0xff]
  %v223 = vld [vmem:[%s1 + $0x638] sm:$0xff]
  %v224 = vld [vmem:[%s1 + $0x640] sm:$0xff]
  %v225 = vld [vmem:[%s1 + $0x648] sm:$0xff]
  %v226 = vld [vmem:[%s1 + $0x650] sm:$0xff]
  %v227 = vld [vmem:[%s1 + $0x658] sm:$0xff]
  %v228 = vld [vmem:[%s1 + $0x660] sm:$0xff]
  %v229 = vld [vmem:[%s1 + $0x668] sm:$0xff]
  %v230 = vld [vmem:[%s1 + $0x670] sm:$0xff]
  %v231 = vld [vmem:[%s1 + $0x678] sm:$0xff]
  %v232 = vld [vmem:[%s1 + $0x680] sm:$0xff]
  %v233 = vld [vmem:[%s1 + $0x688] sm:$0xff]
  %v234 = vld [vmem:[%s1 + $0x690] sm:$0xff]
  %v235 = vld [vmem:[%s1 + $0x698] sm:$0xff]
  %v236 = vld [vmem:[%s1 + $0x6a0] sm:$0xff]
  %v237 = vld [vmem:[%s1 + $0x6a8] sm:$0xff]
  %v238 = vld [vmem:[%s1 + $0x6b0] sm:$0xff]
  %v239 = vld [vmem:[%s1 + $0x6b8] sm:$0xff]
  %v240 = vld [vmem:[%s1 + $0x6c0] sm:$0xff]
  %v241 = vld [vmem:[%s1 + $0x6c8] sm:$0xff]
  %v242 = vld [vmem:[%s1 + $0x6d0] sm:$0xff]
  %v243 = vld [vmem:[%s1 + $0x6d8] sm:$0xff]
  %v244 = vld [vmem:[%s1 + $0x6e0] sm:$0xff]
  %v245 = vld [vmem:[%s1 + $0x6e8] sm:$0xff]
  %v246 = vld [vmem:[%s1 + $0x6f0] sm:$0xff]
  %v247 = vld [vmem:[%s1 + $0x6f8] sm:$0xff]
  %v248 = vld [vmem:[%s1 + $0x700] sm:$0xff]
  %v249 = vld [vmem:[%s1 + $0x708] sm:$0xff]
  %v250 = vld [vmem:[%s1 + $0x710] sm:$0xff]
  %v251 = vld [vmem:[%s1 + $0x718] sm:$0xff]
  %v252 = vld [vmem:[%s1 + $0x720] sm:$0xff]
  %v253 = vld [vmem:[%s1 + $0x728] sm:$0xff]
  %v254 = vld [vmem:[%s1 + $0x730] sm:$0xff]
  %v255 = vld [vmem:[%s1 + $0x738] sm:$0xff]
  %v256 = vld [vmem:[%s1 + $0x740] sm:$0xff]
  %v257 = vld [vmem:[%s1 + $0x748] sm:$0xff]
  %v258 = vld [vmem:[%s1 + $0x750] sm:$0xff]
  %v259 = vld [vmem:[%s1 + $0x758] sm:$0xff]
  %v260 = vld [vmem:[%s1 + $0x760] sm:$0xff]
  %v261 = vld [vmem:[%s1 + $0x768] sm:$0xff]
  %v262 = vld [vmem:[%s1 + $0x770] sm:$0xff]
  %v263 = vld [vmem:[%s1 + $0x778] sm:$0xff]
  %v264 = vld [vmem:[%s1 + $0x780] sm:$0xff]
  %v265 = vld [vmem:[%s1 + $0x788] sm:$0xff]
  %v266 = vld [vmem:[%s1 + $0x790] sm:$0xff]
  %v267 = vld [vmem:[%s1 + $0x798] sm:$0xff]
  %v268 = vld [vmem:[%s1 + $0x7a0] sm:$0xff]
  %v269 = vld [vmem:[%s1 + $0x7a8] sm:$0xff]
  %v270 = vld [vmem:[%s1 + $0x7b0] sm:$0xff]
  %v271 = vld [vmem:[%s1 + $0x7b8] sm:$0xff]
  %v272 = vld [vmem:[%s1 + $0x7c0] sm:$0xff]
  %v273 = vld [vmem:[%s1 + $0x7c8] sm:$0xff]
  %v274 = vld [vmem:[%s1 + $0x7d0] sm:$0xff]
  %v275 = vld [vmem:[%s1 + $0x7d8] sm:$0xff]
  %v276 = vld [vmem:[%s1 + $0x7e0] sm:$0xff]
  %v277 = vld [vmem:[%s1 + $0x7e8] sm:$0xff]
  %v278 = vld [vmem:[%s1 + $0x7f0] sm:$0xff]
  %v279 = vld [vmem:[%s1 + $0x7f8] sm:$0xff]
  %v280 = vld [vmem:[%s2] sm:$0xf]
  %v282 = vperm.slane %v280, 0
  %v283 = vperm.slane %v280, 1
  %v284 = vperm.slane %v280, 2
  %v285 = vperm.slane %v280, 3
  %v294 = vunpack.c.l.b16 %v20
  %v295 = vunpack.c.h.b16 %v20
  %v296 = vunpack.c.l.b16 %v21
  %v297 = vunpack.c.h.b16 %v21
  %v298 = vunpack.c.l.b16 %v22
  %v299 = vunpack.c.h.b16 %v22
  %v300 = vunpack.c.l.b16 %v23
  %v301 = vunpack.c.h.b16 %v23
  %v302 = vpack.c.b16 %v294, %v294
  %v303 = vpack.c.b16 %v295, %v295
  %v304 = vpack.c.b16 %v296, %v296
  %v305 = vpack.c.b16 %v297, %v297
  %v306 = vpack.c.b16 %v298, %v298
  %v307 = vpack.c.b16 %v299, %v299
  %v308 = vpack.c.b16 %v300, %v300
  %v309 = vpack.c.b16 %v301, %v301
  %v574 = vunpack.c.l.b16 %v24
  %v575 = vunpack.c.h.b16 %v24
  %v576 = vunpack.c.l.b16 %v25
  %v577 = vunpack.c.h.b16 %v25
  %v578 = vunpack.c.l.b16 %v26
  %v579 = vunpack.c.h.b16 %v26
  %v580 = vunpack.c.l.b16 %v27
  %v581 = vunpack.c.h.b16 %v27
  %v582 = vunpack.c.l.b16 %v28
  %v583 = vunpack.c.h.b16 %v28
  %v584 = vunpack.c.l.b16 %v29
  %v585 = vunpack.c.h.b16 %v29
  %v586 = vunpack.c.l.b16 %v30
  %v587 = vunpack.c.h.b16 %v30
  %v588 = vunpack.c.l.b16 %v31
  %v589 = vunpack.c.h.b16 %v31
  %v590 = vunpack.c.l.b16 %v32
  %v591 = vunpack.c.h.b16 %v32
  %v592 = vunpack.c.l.b16 %v33
  %v593 = vunpack.c.h.b16 %v33
  %v594 = vunpack.c.l.b16 %v34
  %v595 = vunpack.c.h.b16 %v34
  %v596 = vunpack.c.l.b16 %v35
  %v597 = vunpack.c.h.b16 %v35
  %v598 = vunpack.c.l.b16 %v36
  %v599 = vunpack.c.h.b16 %v36
  %v600 = vunpack.c.l.b16 %v37
  %v601 = vunpack.c.h.b16 %v37
  %v602 = vunpack.c.l.b16 %v38
  %v603 = vunpack.c.h.b16 %v38
  %v604 = vunpack.c.l.b16 %v39
  %v605 = vunpack.c.h.b16 %v39
  %v606 = vunpack.c.l.b16 %v40
  %v607 = vunpack.c.h.b16 %v40
  %v608 = vunpack.c.l.b16 %v41
  %v609 = vunpack.c.h.b16 %v41
  %v610 = vunpack.c.l.b16 %v42
  %v611 = vunpack.c.h.b16 %v42
  %v612 = vunpack.c.l.b16 %v43
  %v613 = vunpack.c.h.b16 %v43
  %v614 = vunpack.c.l.b16 %v44
  %v615 = vunpack.c.h.b16 %v44
  %v616 = vunpack.c.l.b16 %v45
  %v617 = vunpack.c.h.b16 %v45
  %v618 = vunpack.c.l.b16 %v46
  %v619 = vunpack.c.h.b16 %v46
  %v620 = vunpack.c.l.b16 %v47
  %v621 = vunpack.c.h.b16 %v47
  %v622 = vunpack.c.l.b16 %v48
  %v623 = vunpack.c.h.b16 %v48
  %v624 = vunpack.c.l.b16 %v49
  %v625 = vunpack.c.h.b16 %v49
  %v626 = vunpack.c.l.b16 %v50
  %v627 = vunpack.c.h.b16 %v50
  %v628 = vunpack.c.l.b16 %v51
  %v629 = vunpack.c.h.b16 %v51
  %v630 = vunpack.c.l.b16 %v52
  %v631 = vunpack.c.h.b16 %v52
  %v632 = vunpack.c.l.b16 %v53
  %v633 = vunpack.c.h.b16 %v53
  %v634 = vunpack.c.l.b16 %v54
  %v635 = vunpack.c.h.b16 %v54
  %v636 = vunpack.c.l.b16 %v55
  %v637 = vunpack.c.h.b16 %v55
  %v638 = vunpack.c.l.b16 %v56
  %v639 = vunpack.c.h.b16 %v56
  %v640 = vunpack.c.l.b16 %v57
  %v641 = vunpack.c.h.b16 %v57
  %v642 = vunpack.c.l.b16 %v58
  %v643 = vunpack.c.h.b16 %v58
  %v644 = vunpack.c.l.b16 %v59
  %v645 = vunpack.c.h.b16 %v59
  %v646 = vunpack.c.l.b16 %v60
  %v647 = vunpack.c.h.b16 %v60
  %v648 = vunpack.c.l.b16 %v61
  %v649 = vunpack.c.h.b16 %v61
  %v650 = vunpack.c.l.b16 %v62
  %v651 = vunpack.c.h.b16 %v62
  %v652 = vunpack.c.l.b16 %v63
  %v653 = vunpack.c.h.b16 %v63
  %v654 = vunpack.c.l.b16 %v64
  %v655 = vunpack.c.h.b16 %v64
  %v656 = vunpack.c.l.b16 %v65
  %v657 = vunpack.c.h.b16 %v65
  %v658 = vunpack.c.l.b16 %v66
  %v659 = vunpack.c.h.b16 %v66
  %v660 = vunpack.c.l.b16 %v67
  %v661 = vunpack.c.h.b16 %v67
  %v662 = vunpack.c.l.b16 %v68
  %v663 = vunpack.c.h.b16 %v68
  %v664 = vunpack.c.l.b16 %v69
  %v665 = vunpack.c.h.b16 %v69
  %v666 = vunpack.c.l.b16 %v70
  %v667 = vunpack.c.h.b16 %v70
  %v668 = vunpack.c.l.b16 %v71
  %v669 = vunpack.c.h.b16 %v71
  %v670 = vunpack.c.l.b16 %v72
  %v671 = vunpack.c.h.b16 %v72
  %v672 = vunpack.c.l.b16 %v73
  %v673 = vunpack.c.h.b16 %v73
  %v674 = vunpack.c.l.b16 %v74
  %v675 = vunpack.c.h.b16 %v74
  %v676 = vunpack.c.l.b16 %v75
  %v677 = vunpack.c.h.b16 %v75
  %v678 = vunpack.c.l.b16 %v76
  %v679 = vunpack.c.h.b16 %v76
  %v680 = vunpack.c.l.b16 %v77
  %v681 = vunpack.c.h.b16 %v77
  %v682 = vunpack.c.l.b16 %v78
  %v683 = vunpack.c.h.b16 %v78
  %v684 = vunpack.c.l.b16 %v79
  %v685 = vunpack.c.h.b16 %v79
  %v686 = vunpack.c.l.b16 %v80
  %v687 = vunpack.c.h.b16 %v80
  %v688 = vunpack.c.l.b16 %v81
  %v689 = vunpack.c.h.b16 %v81
  %v690 = vunpack.c.l.b16 %v82
  %v691 = vunpack.c.h.b16 %v82
  %v692 = vunpack.c.l.b16 %v83
  %v693 = vunpack.c.h.b16 %v83
  %v694 = vunpack.c.l.b16 %v84
  %v695 = vunpack.c.h.b16 %v84
  %v696 = vunpack.c.l.b16 %v85
  %v697 = vunpack.c.h.b16 %v85
  %v698 = vunpack.c.l.b16 %v86
  %v699 = vunpack.c.h.b16 %v86
  %v700 = vunpack.c.l.b16 %v87
  %v701 = vunpack.c.h.b16 %v87
  %v702 = vunpack.c.l.b16 %v88
  %v703 = vunpack.c.h.b16 %v88
  %v704 = vunpack.c.l.b16 %v89
  %v705 = vunpack.c.h.b16 %v89
  %v706 = vunpack.c.l.b16 %v90
  %v707 = vunpack.c.h.b16 %v90
  %v708 = vunpack.c.l.b16 %v91
  %v709 = vunpack.c.h.b16 %v91
  %v710 = vunpack.c.l.b16 %v92
  %v711 = vunpack.c.h.b16 %v92
  %v712 = vunpack.c.l.b16 %v93
  %v713 = vunpack.c.h.b16 %v93
  %v714 = vunpack.c.l.b16 %v94
  %v715 = vunpack.c.h.b16 %v94
  %v716 = vunpack.c.l.b16 %v95
  %v717 = vunpack.c.h.b16 %v95
  %v718 = vunpack.c.l.b16 %v96
  %v719 = vunpack.c.h.b16 %v96
  %v720 = vunpack.c.l.b16 %v97
  %v721 = vunpack.c.h.b16 %v97
  %v722 = vunpack.c.l.b16 %v98
  %v723 = vunpack.c.h.b16 %v98
  %v724 = vunpack.c.l.b16 %v99
  %v725 = vunpack.c.h.b16 %v99
  %v726 = vunpack.c.l.b16 %v100
  %v727 = vunpack.c.h.b16 %v100
  %v728 = vunpack.c.l.b16 %v101
  %v729 = vunpack.c.h.b16 %v101
  %v730 = vunpack.c.l.b16 %v102
  %v731 = vunpack.c.h.b16 %v102
  %v732 = vunpack.c.l.b16 %v103
  %v733 = vunpack.c.h.b16 %v103
  %v734 = vunpack.c.l.b16 %v104
  %v735 = vunpack.c.h.b16 %v104
  %v736 = vunpack.c.l.b16 %v105
  %v737 = vunpack.c.h.b16 %v105
  %v738 = vunpack.c.l.b16 %v106
  %v739 = vunpack.c.h.b16 %v106
  %v740 = vunpack.c.l.b16 %v107
  %v741 = vunpack.c.h.b16 %v107
  %v742 = vunpack.c.l.b16 %v108
  %v743 = vunpack.c.h.b16 %v108
  %v744 = vunpack.c.l.b16 %v109
  %v745 = vunpack.c.h.b16 %v109
  %v746 = vunpack.c.l.b16 %v110
  %v747 = vunpack.c.h.b16 %v110
  %v748 = vunpack.c.l.b16 %v111
  %v749 = vunpack.c.h.b16 %v111
  %v750 = vunpack.c.l.b16 %v112
  %v751 = vunpack.c.h.b16 %v112
  %v752 = vunpack.c.l.b16 %v113
  %v753 = vunpack.c.h.b16 %v113
  %v754 = vunpack.c.l.b16 %v114
  %v755 = vunpack.c.h.b16 %v114
  %v756 = vunpack.c.l.b16 %v115
  %v757 = vunpack.c.h.b16 %v115
  %v758 = vunpack.c.l.b16 %v116
  %v759 = vunpack.c.h.b16 %v116
  %v760 = vunpack.c.l.b16 %v117
  %v761 = vunpack.c.h.b16 %v117
  %v762 = vunpack.c.l.b16 %v118
  %v763 = vunpack.c.h.b16 %v118
  %v764 = vunpack.c.l.b16 %v119
  %v765 = vunpack.c.h.b16 %v119
  %v766 = vunpack.c.l.b16 %v120
  %v767 = vunpack.c.h.b16 %v120
  %v768 = vunpack.c.l.b16 %v121
  %v769 = vunpack.c.h.b16 %v121
  %v770 = vunpack.c.l.b16 %v122
  %v771 = vunpack.c.h.b16 %v122
  %v772 = vunpack.c.l.b16 %v123
  %v773 = vunpack.c.h.b16 %v123
  %v774 = vunpack.c.l.b16 %v124
  %v775 = vunpack.c.h.b16 %v124
  %v776 = vunpack.c.l.b16 %v125
  %v777 = vunpack.c.h.b16 %v125
  %v778 = vunpack.c.l.b16 %v126
  %v779 = vunpack.c.h.b16 %v126
  %v780 = vunpack.c.l.b16 %v127
  %v781 = vunpack.c.h.b16 %v127
  %v782 = vunpack.c.l.b16 %v128
  %v783 = vunpack.c.h.b16 %v128
  %v784 = vunpack.c.l.b16 %v129
  %v785 = vunpack.c.h.b16 %v129
  %v786 = vunpack.c.l.b16 %v130
  %v787 = vunpack.c.h.b16 %v130
  %v788 = vunpack.c.l.b16 %v131
  %v789 = vunpack.c.h.b16 %v131
  %v790 = vunpack.c.l.b16 %v132
  %v791 = vunpack.c.h.b16 %v132
  %v792 = vunpack.c.l.b16 %v133
  %v793 = vunpack.c.h.b16 %v133
  %v794 = vunpack.c.l.b16 %v134
  %v795 = vunpack.c.h.b16 %v134
  %v796 = vunpack.c.l.b16 %v135
  %v797 = vunpack.c.h.b16 %v135
  %v798 = vunpack.c.l.b16 %v136
  %v799 = vunpack.c.h.b16 %v136
  %v800 = vunpack.c.l.b16 %v137
  %v801 = vunpack.c.h.b16 %v137
  %v802 = vunpack.c.l.b16 %v138
  %v803 = vunpack.c.h.b16 %v138
  %v804 = vunpack.c.l.b16 %v139
  %v805 = vunpack.c.h.b16 %v139
  %v806 = vunpack.c.l.b16 %v140
  %v807 = vunpack.c.h.b16 %v140
  %v808 = vunpack.c.l.b16 %v141
  %v809 = vunpack.c.h.b16 %v141
  %v810 = vunpack.c.l.b16 %v142
  %v811 = vunpack.c.h.b16 %v142
  %v812 = vunpack.c.l.b16 %v143
  %v813 = vunpack.c.h.b16 %v143
  %v814 = vunpack.c.l.b16 %v144
  %v815 = vunpack.c.h.b16 %v144
  %v816 = vunpack.c.l.b16 %v145
  %v817 = vunpack.c.h.b16 %v145
  %v818 = vunpack.c.l.b16 %v146
  %v819 = vunpack.c.h.b16 %v146
  %v820 = vunpack.c.l.b16 %v147
  %v821 = vunpack.c.h.b16 %v147
  %v822 = vunpack.c.l.b16 %v148
  %v823 = vunpack.c.h.b16 %v148
  %v824 = vunpack.c.l.b16 %v149
  %v825 = vunpack.c.h.b16 %v149
  %v826 = vunpack.c.l.b16 %v150
  %v827 = vunpack.c.h.b16 %v150
  %v828 = vunpack.c.l.b16 %v151
  %v829 = vunpack.c.h.b16 %v151
  %v830 = vunpack.c.l.b16 %v152
  %v831 = vunpack.c.h.b16 %v152
  %v832 = vunpack.c.l.b16 %v153
  %v833 = vunpack.c.h.b16 %v153
  %v834 = vunpack.c.l.b16 %v154
  %v835 = vunpack.c.h.b16 %v154
  %v836 = vunpack.c.l.b16 %v155
  %v837 = vunpack.c.h.b16 %v155
  %v838 = vunpack.c.l.b16 %v156
  %v839 = vunpack.c.h.b16 %v156
  %v840 = vunpack.c.l.b16 %v157
  %v841 = vunpack.c.h.b16 %v157
  %v842 = vunpack.c.l.b16 %v158
  %v843 = vunpack.c.h.b16 %v158
  %v844 = vunpack.c.l.b16 %v159
  %v845 = vunpack.c.h.b16 %v159
  %v846 = vunpack.c.l.b16 %v160
  %v847 = vunpack.c.h.b16 %v160
  %v848 = vunpack.c.l.b16 %v161
  %v849 = vunpack.c.h.b16 %v161
  %v850 = vunpack.c.l.b16 %v162
  %v851 = vunpack.c.h.b16 %v162
  %v852 = vunpack.c.l.b16 %v163
  %v853 = vunpack.c.h.b16 %v163
  %v854 = vunpack.c.l.b16 %v164
  %v855 = vunpack.c.h.b16 %v164
  %v856 = vunpack.c.l.b16 %v165
  %v857 = vunpack.c.h.b16 %v165
  %v858 = vunpack.c.l.b16 %v166
  %v859 = vunpack.c.h.b16 %v166
  %v860 = vunpack.c.l.b16 %v167
  %v861 = vunpack.c.h.b16 %v167
  %v862 = vunpack.c.l.b16 %v168
  %v863 = vunpack.c.h.b16 %v168
  %v864 = vunpack.c.l.b16 %v169
  %v865 = vunpack.c.h.b16 %v169
  %v866 = vunpack.c.l.b16 %v170
  %v867 = vunpack.c.h.b16 %v170
  %v868 = vunpack.c.l.b16 %v171
  %v869 = vunpack.c.h.b16 %v171
  %v870 = vunpack.c.l.b16 %v172
  %v871 = vunpack.c.h.b16 %v172
  %v872 = vunpack.c.l.b16 %v173
  %v873 = vunpack.c.h.b16 %v173
  %v874 = vunpack.c.l.b16 %v174
  %v875 = vunpack.c.h.b16 %v174
  %v876 = vunpack.c.l.b16 %v175
  %v877 = vunpack.c.h.b16 %v175
  %v878 = vunpack.c.l.b16 %v176
  %v879 = vunpack.c.h.b16 %v176
  %v880 = vunpack.c.l.b16 %v177
  %v881 = vunpack.c.h.b16 %v177
  %v882 = vunpack.c.l.b16 %v178
  %v883 = vunpack.c.h.b16 %v178
  %v884 = vunpack.c.l.b16 %v179
  %v885 = vunpack.c.h.b16 %v179
  %v886 = vunpack.c.l.b16 %v180
  %v887 = vunpack.c.h.b16 %v180
  %v888 = vunpack.c.l.b16 %v181
  %v889 = vunpack.c.h.b16 %v181
  %v890 = vunpack.c.l.b16 %v182
  %v891 = vunpack.c.h.b16 %v182
  %v892 = vunpack.c.l.b16 %v183
  %v893 = vunpack.c.h.b16 %v183
  %v894 = vunpack.c.l.b16 %v184
  %v895 = vunpack.c.h.b16 %v184
  %v896 = vunpack.c.l.b16 %v185
  %v897 = vunpack.c.h.b16 %v185
  %v898 = vunpack.c.l.b16 %v186
  %v899 = vunpack.c.h.b16 %v186
  %v900 = vunpack.c.l.b16 %v187
  %v901 = vunpack.c.h.b16 %v187
  %v902 = vunpack.c.l.b16 %v188
  %v903 = vunpack.c.h.b16 %v188
  %v904 = vunpack.c.l.b16 %v189
  %v905 = vunpack.c.h.b16 %v189
  %v906 = vunpack.c.l.b16 %v190
  %v907 = vunpack.c.h.b16 %v190
  %v908 = vunpack.c.l.b16 %v191
  %v909 = vunpack.c.h.b16 %v191
  %v910 = vunpack.c.l.b16 %v192
  %v911 = vunpack.c.h.b16 %v192
  %v912 = vunpack.c.l.b16 %v193
  %v913 = vunpack.c.h.b16 %v193
  %v914 = vunpack.c.l.b16 %v194
  %v915 = vunpack.c.h.b16 %v194
  %v916 = vunpack.c.l.b16 %v195
  %v917 = vunpack.c.h.b16 %v195
  %v918 = vunpack.c.l.b16 %v196
  %v919 = vunpack.c.h.b16 %v196
  %v920 = vunpack.c.l.b16 %v197
  %v921 = vunpack.c.h.b16 %v197
  %v922 = vunpack.c.l.b16 %v198
  %v923 = vunpack.c.h.b16 %v198
  %v924 = vunpack.c.l.b16 %v199
  %v925 = vunpack.c.h.b16 %v199
  %v926 = vunpack.c.l.b16 %v200
  %v927 = vunpack.c.h.b16 %v200
  %v928 = vunpack.c.l.b16 %v201
  %v929 = vunpack.c.h.b16 %v201
  %v930 = vunpack.c.l.b16 %v202
  %v931 = vunpack.c.h.b16 %v202
  %v932 = vunpack.c.l.b16 %v203
  %v933 = vunpack.c.h.b16 %v203
  %v934 = vunpack.c.l.b16 %v204
  %v935 = vunpack.c.h.b16 %v204
  %v936 = vunpack.c.l.b16 %v205
  %v937 = vunpack.c.h.b16 %v205
  %v938 = vunpack.c.l.b16 %v206
  %v939 = vunpack.c.h.b16 %v206
  %v940 = vunpack.c.l.b16 %v207
  %v941 = vunpack.c.h.b16 %v207
  %v942 = vunpack.c.l.b16 %v208
  %v943 = vunpack.c.h.b16 %v208
  %v944 = vunpack.c.l.b16 %v209
  %v945 = vunpack.c.h.b16 %v209
  %v946 = vunpack.c.l.b16 %v210
  %v947 = vunpack.c.h.b16 %v210
  %v948 = vunpack.c.l.b16 %v211
  %v949 = vunpack.c.h.b16 %v211
  %v950 = vunpack.c.l.b16 %v212
  %v951 = vunpack.c.h.b16 %v212
  %v952 = vunpack.c.l.b16 %v213
  %v953 = vunpack.c.h.b16 %v213
  %v954 = vunpack.c.l.b16 %v214
  %v955 = vunpack.c.h.b16 %v214
  %v956 = vunpack.c.l.b16 %v215
  %v957 = vunpack.c.h.b16 %v215
  %v958 = vunpack.c.l.b16 %v216
  %v959 = vunpack.c.h.b16 %v216
  %v960 = vunpack.c.l.b16 %v217
  %v961 = vunpack.c.h.b16 %v217
  %v962 = vunpack.c.l.b16 %v218
  %v963 = vunpack.c.h.b16 %v218
  %v964 = vunpack.c.l.b16 %v219
  %v965 = vunpack.c.h.b16 %v219
  %v966 = vunpack.c.l.b16 %v220
  %v967 = vunpack.c.h.b16 %v220
  %v968 = vunpack.c.l.b16 %v221
  %v969 = vunpack.c.h.b16 %v221
  %v970 = vunpack.c.l.b16 %v222
  %v971 = vunpack.c.h.b16 %v222
  %v972 = vunpack.c.l.b16 %v223
  %v973 = vunpack.c.h.b16 %v223
  %v974 = vunpack.c.l.b16 %v224
  %v975 = vunpack.c.h.b16 %v224
  %v976 = vunpack.c.l.b16 %v225
  %v977 = vunpack.c.h.b16 %v225
  %v978 = vunpack.c.l.b16 %v226
  %v979 = vunpack.c.h.b16 %v226
  %v980 = vunpack.c.l.b16 %v227
  %v981 = vunpack.c.h.b16 %v227
  %v982 = vunpack.c.l.b16 %v228
  %v983 = vunpack.c.h.b16 %v228
  %v984 = vunpack.c.l.b16 %v229
  %v985 = vunpack.c.h.b16 %v229
  %v986 = vunpack.c.l.b16 %v230
  %v987 = vunpack.c.h.b16 %v230
  %v988 = vunpack.c.l.b16 %v231
  %v989 = vunpack.c.h.b16 %v231
  %v990 = vunpack.c.l.b16 %v232
  %v991 = vunpack.c.h.b16 %v232
  %v992 = vunpack.c.l.b16 %v233
  %v993 = vunpack.c.h.b16 %v233
  %v994 = vunpack.c.l.b16 %v234
  %v995 = vunpack.c.h.b16 %v234
  %v996 = vunpack.c.l.b16 %v235
  %v997 = vunpack.c.h.b16 %v235
  %v998 = vunpack.c.l.b16 %v236
  %v999 = vunpack.c.h.b16 %v236
  %v1000 = vunpack.c.l.b16 %v237
  %v1001 = vunpack.c.h.b16 %v237
  %v1002 = vunpack.c.l.b16 %v238
  %v1003 = vunpack.c.h.b16 %v238
  %v1004 = vunpack.c.l.b16 %v239
  %v1005 = vunpack.c.h.b16 %v239
  %v1006 = vunpack.c.l.b16 %v240
  %v1007 = vunpack.c.h.b16 %v240
  %v1008 = vunpack.c.l.b16 %v241
  %v1009 = vunpack.c.h.b16 %v241
  %v1010 = vunpack.c.l.b16 %v242
  %v1011 = vunpack.c.h.b16 %v242
  %v1012 = vunpack.c.l.b16 %v243
  %v1013 = vunpack.c.h.b16 %v243
  %v1014 = vunpack.c.l.b16 %v244
  %v1015 = vunpack.c.h.b16 %v244
  %v1016 = vunpack.c.l.b16 %v245
  %v1017 = vunpack.c.h.b16 %v245
  %v1018 = vunpack.c.l.b16 %v246
  %v1019 = vunpack.c.h.b16 %v246
  %v1020 = vunpack.c.l.b16 %v247
  %v1021 = vunpack.c.h.b16 %v247
  %v1022 = vunpack.c.l.b16 %v248
  %v1023 = vunpack.c.h.b16 %v248
  %v1024 = vunpack.c.l.b16 %v249
  %v1025 = vunpack.c.h.b16 %v249
  %v1026 = vunpack.c.l.b16 %v250
  %v1027 = vunpack.c.h.b16 %v250
  %v1028 = vunpack.c.l.b16 %v251
  %v1029 = vunpack.c.h.b16 %v251
  %v1030 = vunpack.c.l.b16 %v252
  %v1031 = vunpack.c.h.b16 %v252
  %v1032 = vunpack.c.l.b16 %v253
  %v1033 = vunpack.c.h.b16 %v253
  %v1034 = vunpack.c.l.b16 %v254
  %v1035 = vunpack.c.h.b16 %v254
  %v1036 = vunpack.c.l.b16 %v255
  %v1037 = vunpack.c.h.b16 %v255
  %v1038 = vunpack.c.l.b16 %v256
  %v1039 = vunpack.c.h.b16 %v256
  %v1040 = vunpack.c.l.b16 %v257
  %v1041 = vunpack.c.h.b16 %v257
  %v1042 = vunpack.c.l.b16 %v258
  %v1043 = vunpack.c.h.b16 %v258
  %v1044 = vunpack.c.l.b16 %v259
  %v1045 = vunpack.c.h.b16 %v259
  %v1046 = vunpack.c.l.b16 %v260
  %v1047 = vunpack.c.h.b16 %v260
  %v1048 = vunpack.c.l.b16 %v261
  %v1049 = vunpack.c.h.b16 %v261
  %v1050 = vunpack.c.l.b16 %v262
  %v1051 = vunpack.c.h.b16 %v262
  %v1052 = vunpack.c.l.b16 %v263
  %v1053 = vunpack.c.h.b16 %v263
  %v1054 = vunpack.c.l.b16 %v264
  %v1055 = vunpack.c.h.b16 %v264
  %v1056 = vunpack.c.l.b16 %v265
  %v1057 = vunpack.c.h.b16 %v265
  %v1058 = vunpack.c.l.b16 %v266
  %v1059 = vunpack.c.h.b16 %v266
  %v1060 = vunpack.c.l.b16 %v267
  %v1061 = vunpack.c.h.b16 %v267
  %v1062 = vunpack.c.l.b16 %v268
  %v1063 = vunpack.c.h.b16 %v268
  %v1064 = vunpack.c.l.b16 %v269
  %v1065 = vunpack.c.h.b16 %v269
  %v1066 = vunpack.c.l.b16 %v270
  %v1067 = vunpack.c.h.b16 %v270
  %v1068 = vunpack.c.l.b16 %v271
  %v1069 = vunpack.c.h.b16 %v271
  %v1070 = vunpack.c.l.b16 %v272
  %v1071 = vunpack.c.h.b16 %v272
  %v1072 = vunpack.c.l.b16 %v273
  %v1073 = vunpack.c.h.b16 %v273
  %v1074 = vunpack.c.l.b16 %v274
  %v1075 = vunpack.c.h.b16 %v274
  %v1076 = vunpack.c.l.b16 %v275
  %v1077 = vunpack.c.h.b16 %v275
  %v1078 = vunpack.c.l.b16 %v276
  %v1079 = vunpack.c.h.b16 %v276
  %v1080 = vunpack.c.l.b16 %v277
  %v1081 = vunpack.c.h.b16 %v277
  %v1082 = vunpack.c.l.b16 %v278
  %v1083 = vunpack.c.h.b16 %v278
  %v1084 = vunpack.c.l.b16 %v279
  %v1085 = vunpack.c.h.b16 %v279
  %v1086 = vpack.c.b16 %v578, %v574
  %v1087 = vpack.c.b16 %v579, %v575
  %v1088 = vpack.c.b16 %v580, %v576
  %v1089 = vpack.c.b16 %v581, %v577
  %v1090 = vpack.c.b16 %v586, %v582
  %v1091 = vpack.c.b16 %v587, %v583
  %v1092 = vpack.c.b16 %v588, %v584
  %v1093 = vpack.c.b16 %v589, %v585
  %v1094 = vpack.c.b16 %v594, %v590
  %v1095 = vpack.c.b16 %v595, %v591
  %v1096 = vpack.c.b16 %v596, %v592
  %v1097 = vpack.c.b16 %v597, %v593
  %v1098 = vpack.c.b16 %v602, %v598
  %v1099 = vpack.c.b16 %v603, %v599
  %v1100 = vpack.c.b16 %v604, %v600
  %v1101 = vpack.c.b16 %v605, %v601
  %v1102 = vpack.c.b16 %v610, %v606
  %v1103 = vpack.c.b16 %v611, %v607
  %v1104 = vpack.c.b16 %v612, %v608
  %v1105 = vpack.c.b16 %v613, %v609
  %v1106 = vpack.c.b16 %v618, %v614
  %v1107 = vpack.c.b16 %v619, %v615
  %v1108 = vpack.c.b16 %v620, %v616
  %v1109 = vpack.c.b16 %v621, %v617
  %v1110 = vpack.c.b16 %v626, %v622
  %v1111 = vpack.c.b16 %v627, %v623
  %v1112 = vpack.c.b16 %v628, %v624
  %v1113 = vpack.c.b16 %v629, %v625
  %v1114 = vpack.c.b16 %v634, %v630
  %v1115 = vpack.c.b16 %v635, %v631
  %v1116 = vpack.c.b16 %v636, %v632
  %v1117 = vpack.c.b16 %v637, %v633
  %v1118 = vpack.c.b16 %v642, %v638
  %v1119 = vpack.c.b16 %v643, %v639
  %v1120 = vpack.c.b16 %v644, %v640
  %v1121 = vpack.c.b16 %v645, %v641
  %v1122 = vpack.c.b16 %v650, %v646
  %v1123 = vpack.c.b16 %v651, %v647
  %v1124 = vpack.c.b16 %v652, %v648
  %v1125 = vpack.c.b16 %v653, %v649
  %v1126 = vpack.c.b16 %v658, %v654
  %v1127 = vpack.c.b16 %v659, %v655
  %v1128 = vpack.c.b16 %v660, %v656
  %v1129 = vpack.c.b16 %v661, %v657
  %v1130 = vpack.c.b16 %v666, %v662
  %v1131 = vpack.c.b16 %v667, %v663
  %v1132 = vpack.c.b16 %v668, %v664
  %v1133 = vpack.c.b16 %v669, %v665
  %v1134 = vpack.c.b16 %v674, %v670
  %v1135 = vpack.c.b16 %v675, %v671
  %v1136 = vpack.c.b16 %v676, %v672
  %v1137 = vpack.c.b16 %v677, %v673
  %v1138 = vpack.c.b16 %v682, %v678
  %v1139 = vpack.c.b16 %v683, %v679
  %v1140 = vpack.c.b16 %v684, %v680
  %v1141 = vpack.c.b16 %v685, %v681
  %v1142 = vpack.c.b16 %v690, %v686
  %v1143 = vpack.c.b16 %v691, %v687
  %v1144 = vpack.c.b16 %v692, %v688
  %v1145 = vpack.c.b16 %v693, %v689
  %v1146 = vpack.c.b16 %v698, %v694
  %v1147 = vpack.c.b16 %v699, %v695
  %v1148 = vpack.c.b16 %v700, %v696
  %v1149 = vpack.c.b16 %v701, %v697
  %v1150 = vpack.c.b16 %v706, %v702
  %v1151 = vpack.c.b16 %v707, %v703
  %v1152 = vpack.c.b16 %v708, %v704
  %v1153 = vpack.c.b16 %v709, %v705
  %v1154 = vpack.c.b16 %v714, %v710
  %v1155 = vpack.c.b16 %v715, %v711
  %v1156 = vpack.c.b16 %v716, %v712
  %v1157 = vpack.c.b16 %v717, %v713
  %v1158 = vpack.c.b16 %v722, %v718
  %v1159 = vpack.c.b16 %v723, %v719
  %v1160 = vpack.c.b16 %v724, %v720
  %v1161 = vpack.c.b16 %v725, %v721
  %v1162 = vpack.c.b16 %v730, %v726
  %v1163 = vpack.c.b16 %v731, %v727
  %v1164 = vpack.c.b16 %v732, %v728
  %v1165 = vpack.c.b16 %v733, %v729
  %v1166 = vpack.c.b16 %v738, %v734
  %v1167 = vpack.c.b16 %v739, %v735
  %v1168 = vpack.c.b16 %v740, %v736
  %v1169 = vpack.c.b16 %v741, %v737
  %v1170 = vpack.c.b16 %v746, %v742
  %v1171 = vpack.c.b16 %v747, %v743
  %v1172 = vpack.c.b16 %v748, %v744
  %v1173 = vpack.c.b16 %v749, %v745
  %v1174 = vpack.c.b16 %v754, %v750
  %v1175 = vpack.c.b16 %v755, %v751
  %v1176 = vpack.c.b16 %v756, %v752
  %v1177 = vpack.c.b16 %v757, %v753
  %v1178 = vpack.c.b16 %v762, %v758
  %v1179 = vpack.c.b16 %v763, %v759
  %v1180 = vpack.c.b16 %v764, %v760
  %v1181 = vpack.c.b16 %v765, %v761
  %v1182 = vpack.c.b16 %v770, %v766
  %v1183 = vpack.c.b16 %v771, %v767
  %v1184 = vpack.c.b16 %v772, %v768
  %v1185 = vpack.c.b16 %v773, %v769
  %v1186 = vpack.c.b16 %v778, %v774
  %v1187 = vpack.c.b16 %v779, %v775
  %v1188 = vpack.c.b16 %v780, %v776
  %v1189 = vpack.c.b16 %v781, %v777
  %v1190 = vpack.c.b16 %v786, %v782
  %v1191 = vpack.c.b16 %v787, %v783
  %v1192 = vpack.c.b16 %v788, %v784
  %v1193 = vpack.c.b16 %v789, %v785
  %v1194 = vpack.c.b16 %v794, %v790
  %v1195 = vpack.c.b16 %v795, %v791
  %v1196 = vpack.c.b16 %v796, %v792
  %v1197 = vpack.c.b16 %v797, %v793
  %v1198 = vpack.c.b16 %v802, %v798
  %v1199 = vpack.c.b16 %v803, %v799
  %v1200 = vpack.c.b16 %v804, %v800
  %v1201 = vpack.c.b16 %v805, %v801
  %v1202 = vpack.c.b16 %v810, %v806
  %v1203 = vpack.c.b16 %v811, %v807
  %v1204 = vpack.c.b16 %v812, %v808
  %v1205 = vpack.c.b16 %v813, %v809
  %v1206 = vpack.c.b16 %v818, %v814
  %v1207 = vpack.c.b16 %v819, %v815
  %v1208 = vpack.c.b16 %v820, %v816
  %v1209 = vpack.c.b16 %v821, %v817
  %v1210 = vpack.c.b16 %v826, %v822
  %v1211 = vpack.c.b16 %v827, %v823
  %v1212 = vpack.c.b16 %v828, %v824
  %v1213 = vpack.c.b16 %v829, %v825
  %v1214 = vpack.c.b16 %v834, %v830
  %v1215 = vpack.c.b16 %v835, %v831
  %v1216 = vpack.c.b16 %v836, %v832
  %v1217 = vpack.c.b16 %v837, %v833
  %v1218 = vpack.c.b16 %v842, %v838
  %v1219 = vpack.c.b16 %v843, %v839
  %v1220 = vpack.c.b16 %v844, %v840
  %v1221 = vpack.c.b16 %v845, %v841
  %v1222 = vpack.c.b16 %v850, %v846
  %v1223 = vpack.c.b16 %v851, %v847
  %v1224 = vpack.c.b16 %v852, %v848
  %v1225 = vpack.c.b16 %v853, %v849
  %v1226 = vpack.c.b16 %v858, %v854
  %v1227 = vpack.c.b16 %v859, %v855
  %v1228 = vpack.c.b16 %v860, %v856
  %v1229 = vpack.c.b16 %v861, %v857
  %v1230 = vpack.c.b16 %v866, %v862
  %v1231 = vpack.c.b16 %v867, %v863
  %v1232 = vpack.c.b16 %v868, %v864
  %v1233 = vpack.c.b16 %v869, %v865
  %v1234 = vpack.c.b16 %v874, %v870
  %v1235 = vpack.c.b16 %v875, %v871
  %v1236 = vpack.c.b16 %v876, %v872
  %v1237 = vpack.c.b16 %v877, %v873
  %v1238 = vpack.c.b16 %v882, %v878
  %v1239 = vpack.c.b16 %v883, %v879
  %v1240 = vpack.c.b16 %v884, %v880
  %v1241 = vpack.c.b16 %v885, %v881
  %v1242 = vpack.c.b16 %v890, %v886
  %v1243 = vpack.c.b16 %v891, %v887
  %v1244 = vpack.c.b16 %v892, %v888
  %v1245 = vpack.c.b16 %v893, %v889
  %v1246 = vpack.c.b16 %v898, %v894
  %v1247 = vpack.c.b16 %v899, %v895
  %v1248 = vpack.c.b16 %v900, %v896
  %v1249 = vpack.c.b16 %v901, %v897
  %v1250 = vpack.c.b16 %v906, %v902
  %v1251 = vpack.c.b16 %v907, %v903
  %v1252 = vpack.c.b16 %v908, %v904
  %v1253 = vpack.c.b16 %v909, %v905
  %v1254 = vpack.c.b16 %v914, %v910
  %v1255 = vpack.c.b16 %v915, %v911
  %v1256 = vpack.c.b16 %v916, %v912
  %v1257 = vpack.c.b16 %v917, %v913
  %v1258 = vpack.c.b16 %v922, %v918
  %v1259 = vpack.c.b16 %v923, %v919
  %v1260 = vpack.c.b16 %v924, %v920
  %v1261 = vpack.c.b16 %v925, %v921
  %v1262 = vpack.c.b16 %v930, %v926
  %v1263 = vpack.c.b16 %v931, %v927
  %v1264 = vpack.c.b16 %v932, %v928
  %v1265 = vpack.c.b16 %v933, %v929
  %v1266 = vpack.c.b16 %v938, %v934
  %v1267 = vpack.c.b16 %v939, %v935
  %v1268 = vpack.c.b16 %v940, %v936
  %v1269 = vpack.c.b16 %v941, %v937
  %v1270 = vpack.c.b16 %v946, %v942
  %v1271 = vpack.c.b16 %v947, %v943
  %v1272 = vpack.c.b16 %v948, %v944
  %v1273 = vpack.c.b16 %v949, %v945
  %v1274 = vpack.c.b16 %v954, %v950
  %v1275 = vpack.c.b16 %v955, %v951
  %v1276 = vpack.c.b16 %v956, %v952
  %v1277 = vpack.c.b16 %v957, %v953
  %v1278 = vpack.c.b16 %v962, %v958
  %v1279 = vpack.c.b16 %v963, %v959
  %v1280 = vpack.c.b16 %v964, %v960
  %v1281 = vpack.c.b16 %v965, %v961
  %v1282 = vpack.c.b16 %v970, %v966
  %v1283 = vpack.c.b16 %v971, %v967
  %v1284 = vpack.c.b16 %v972, %v968
  %v1285 = vpack.c.b16 %v973, %v969
  %v1286 = vpack.c.b16 %v978, %v974
  %v1287 = vpack.c.b16 %v979, %v975
  %v1288 = vpack.c.b16 %v980, %v976
  %v1289 = vpack.c.b16 %v981, %v977
  %v1290 = vpack.c.b16 %v986, %v982
  %v1291 = vpack.c.b16 %v987, %v983
  %v1292 = vpack.c.b16 %v988, %v984
  %v1293 = vpack.c.b16 %v989, %v985
  %v1294 = vpack.c.b16 %v994, %v990
  %v1295 = vpack.c.b16 %v995, %v991
  %v1296 = vpack.c.b16 %v996, %v992
  %v1297 = vpack.c.b16 %v997, %v993
  %v1298 = vpack.c.b16 %v1002, %v998
  %v1299 = vpack.c.b16 %v1003, %v999
  %v1300 = vpack.c.b16 %v1004, %v1000
  %v1301 = vpack.c.b16 %v1005, %v1001
  %v1302 = vpack.c.b16 %v1010, %v1006
  %v1303 = vpack.c.b16 %v1011, %v1007
  %v1304 = vpack.c.b16 %v1012, %v1008
  %v1305 = vpack.c.b16 %v1013, %v1009
  %v1306 = vpack.c.b16 %v1018, %v1014
  %v1307 = vpack.c.b16 %v1019, %v1015
  %v1308 = vpack.c.b16 %v1020, %v1016
  %v1309 = vpack.c.b16 %v1021, %v1017
  %v1310 = vpack.c.b16 %v1026, %v1022
  %v1311 = vpack.c.b16 %v1027, %v1023
  %v1312 = vpack.c.b16 %v1028, %v1024
  %v1313 = vpack.c.b16 %v1029, %v1025
  %v1314 = vpack.c.b16 %v1034, %v1030
  %v1315 = vpack.c.b16 %v1035, %v1031
  %v1316 = vpack.c.b16 %v1036, %v1032
  %v1317 = vpack.c.b16 %v1037, %v1033
  %v1318 = vpack.c.b16 %v1042, %v1038
  %v1319 = vpack.c.b16 %v1043, %v1039
  %v1320 = vpack.c.b16 %v1044, %v1040
  %v1321 = vpack.c.b16 %v1045, %v1041
  %v1322 = vpack.c.b16 %v1050, %v1046
  %v1323 = vpack.c.b16 %v1051, %v1047
  %v1324 = vpack.c.b16 %v1052, %v1048
  %v1325 = vpack.c.b16 %v1053, %v1049
  %v1326 = vpack.c.b16 %v1058, %v1054
  %v1327 = vpack.c.b16 %v1059, %v1055
  %v1328 = vpack.c.b16 %v1060, %v1056
  %v1329 = vpack.c.b16 %v1061, %v1057
  %v1330 = vpack.c.b16 %v1066, %v1062
  %v1331 = vpack.c.b16 %v1067, %v1063
  %v1332 = vpack.c.b16 %v1068, %v1064
  %v1333 = vpack.c.b16 %v1069, %v1065
  %v1334 = vpack.c.b16 %v1074, %v1070
  %v1335 = vpack.c.b16 %v1075, %v1071
  %v1336 = vpack.c.b16 %v1076, %v1072
  %v1337 = vpack.c.b16 %v1077, %v1073
  %v1338 = vpack.c.b16 %v1082, %v1078
  %v1339 = vpack.c.b16 %v1083, %v1079
  %v1340 = vpack.c.b16 %v1084, %v1080
  %v1341 = vpack.c.b16 %v1085, %v1081
  %1598 = vmatpush.bf16.msra.mxu0 %v1114
  %1599 = vmatpush.bf16.msra.mxu0 %v1110
  %1600 = vmatpush.bf16.msra.mxu0 %v1106
  %1601 = vmatpush.bf16.msra.mxu0 %v1102
  %1602 = vmatpush.bf16.msra.mxu0 %v1098
  %1603 = vmatpush.bf16.msra.mxu0 %v1094
  %1604 = vmatpush.bf16.msra.mxu0 %v1090
  %1605 = vmatpush.bf16.msra.mxu0 %v1086
  %1606 = vmatmul.bf16.gmra.mxu0 %v302
  %v1607 = vpop.f32.mrf.mxu0
  %v1608 = vadd.f32 %v282, %v1607
  %v1609 = vpop.f32.mrf.mxu0
  %1610 = vdwg.mxu0
  %1611 = vmatpush.bf16.msra.mxu0 %v1146
  %1612 = vmatpush.bf16.msra.mxu0 %v1142
  %1613 = vmatpush.bf16.msra.mxu0 %v1138
  %1614 = vmatpush.bf16.msra.mxu0 %v1134
  %1615 = vmatpush.bf16.msra.mxu0 %v1130
  %1616 = vmatpush.bf16.msra.mxu0 %v1126
  %1617 = vmatpush.bf16.msra.mxu0 %v1122
  %1618 = vmatpush.bf16.msra.mxu0 %v1118
  %1619 = vmatmul.bf16.gmra.mxu0 %v303
  %v1620 = vpop.f32.mrf.mxu0
  %v1621 = vadd.f32 %v1608, %v1620
  %v1622 = vpop.f32.mrf.mxu0
  %1623 = vdwg.mxu0
  %1624 = vmatpush.bf16.msra.mxu0 %v1178
  %1625 = vmatpush.bf16.msra.mxu0 %v1174
  %1626 = vmatpush.bf16.msra.mxu0 %v1170
  %1627 = vmatpush.bf16.msra.mxu0 %v1166
  %1628 = vmatpush.bf16.msra.mxu0 %v1162
  %1629 = vmatpush.bf16.msra.mxu0 %v1158
  %1630 = vmatpush.bf16.msra.mxu0 %v1154
  %1631 = vmatpush.bf16.msra.mxu0 %v1150
  %1632 = vmatmul.bf16.gmra.mxu0 %v304
  %v1633 = vpop.f32.mrf.mxu0
  %v1634 = vadd.f32 %v1621, %v1633
  %v1635 = vpop.f32.mrf.mxu0
  %1636 = vdwg.mxu0
  %1637 = vmatpush.bf16.msra.mxu0 %v1210
  %1638 = vmatpush.bf16.msra.mxu0 %v1206
  %1639 = vmatpush.bf16.msra.mxu0 %v1202
  %1640 = vmatpush.bf16.msra.mxu0 %v1198
  %1641 = vmatpush.bf16.msra.mxu0 %v1194
  %1642 = vmatpush.bf16.msra.mxu0 %v1190
  %1643 = vmatpush.bf16.msra.mxu0 %v1186
  %1644 = vmatpush.bf16.msra.mxu0 %v1182
  %1645 = vmatmul.bf16.gmra.mxu0 %v305
  %v1646 = vpop.f32.mrf.mxu0
  %v1647 = vadd.f32 %v1634, %v1646
  %v1648 = vpop.f32.mrf.mxu0
  %1649 = vdwg.mxu0
  %1650 = vmatpush.bf16.msra.mxu0 %v1242
  %1651 = vmatpush.bf16.msra.mxu0 %v1238
  %1652 = vmatpush.bf16.msra.mxu0 %v1234
  %1653 = vmatpush.bf16.msra.mxu0 %v1230
  %1654 = vmatpush.bf16.msra.mxu0 %v1226
  %1655 = vmatpush.bf16.msra.mxu0 %v1222
  %1656 = vmatpush.bf16.msra.mxu0 %v1218
  %1657 = vmatpush.bf16.msra.mxu0 %v1214
  %1658 = vmatmul.bf16.gmra.mxu0 %v306
  %v1659 = vpop.f32.mrf.mxu0
  %v1660 = vadd.f32 %v1647, %v1659
  %v1661 = vpop.f32.mrf.mxu0
  %1662 = vdwg.mxu0
  %1663 = vmatpush.bf16.msra.mxu0 %v1274
  %1664 = vmatpush.bf16.msra.mxu0 %v1270
  %1665 = vmatpush.bf16.msra.mxu0 %v1266
  %1666 = vmatpush.bf16.msra.mxu0 %v1262
  %1667 = vmatpush.bf16.msra.mxu0 %v1258
  %1668 = vmatpush.bf16.msra.mxu0 %v1254
  %1669 = vmatpush.bf16.msra.mxu0 %v1250
  %1670 = vmatpush.bf16.msra.mxu0 %v1246
  %1671 = vmatmul.bf16.gmra.mxu0 %v307
  %v1672 = vpop.f32.mrf.mxu0
  %v1673 = vadd.f32 %v1660, %v1672
  %v1674 = vpop.f32.mrf.mxu0
  %1675 = vdwg.mxu0
  %1676 = vmatpush.bf16.msra.mxu0 %v1306
  %1677 = vmatpush.bf16.msra.mxu0 %v1302
  %1678 = vmatpush.bf16.msra.mxu0 %v1298
  %1679 = vmatpush.bf16.msra.mxu0 %v1294
  %1680 = vmatpush.bf16.msra.mxu0 %v1290
  %1681 = vmatpush.bf16.msra.mxu0 %v1286
  %1682 = vmatpush.bf16.msra.mxu0 %v1282
  %1683 = vmatpush.bf16.msra.mxu0 %v1278
  %1684 = vmatmul.bf16.gmra.mxu0 %v308
  %v1685 = vpop.f32.mrf.mxu0
  %v1686 = vadd.f32 %v1673, %v1685
  %v1687 = vpop.f32.mrf.mxu0
  %1688 = vdwg.mxu0
  %1689 = vmatpush.bf16.msra.mxu0 %v1338
  %1690 = vmatpush.bf16.msra.mxu0 %v1334
  %1691 = vmatpush.bf16.msra.mxu0 %v1330
  %1692 = vmatpush.bf16.msra.mxu0 %v1326
  %1693 = vmatpush.bf16.msra.mxu0 %v1322
  %1694 = vmatpush.bf16.msra.mxu0 %v1318
  %1695 = vmatpush.bf16.msra.mxu0 %v1314
  %1696 = vmatpush.bf16.msra.mxu0 %v1310
  %1697 = vmatmul.bf16.gmra.mxu0 %v309
  %v1698 = vpop.f32.mrf.mxu0
  %v1699 = vadd.f32 %v1686, %v1698
  %v1700 = vpop.f32.mrf.mxu0
  %1701 = vdwg.mxu0
  %1702 = vmatpush.bf16.msra.mxu0 %v1115
  %1703 = vmatpush.bf16.msra.mxu0 %v1111
  %1704 = vmatpush.bf16.msra.mxu0 %v1107
  %1705 = vmatpush.bf16.msra.mxu0 %v1103
  %1706 = vmatpush.bf16.msra.mxu0 %v1099
  %1707 = vmatpush.bf16.msra.mxu0 %v1095
  %1708 = vmatpush.bf16.msra.mxu0 %v1091
  %1709 = vmatpush.bf16.msra.mxu0 %v1087
  %1710 = vmatmul.bf16.gmra.mxu0 %v302
  %v1711 = vpop.f32.mrf.mxu0
  %v1712 = vadd.f32 %v283, %v1711
  %v1713 = vpop.f32.mrf.mxu0
  %1714 = vdwg.mxu0
  %1715 = vmatpush.bf16.msra.mxu0 %v1147
  %1716 = vmatpush.bf16.msra.mxu0 %v1143
  %1717 = vmatpush.bf16.msra.mxu0 %v1139
  %1718 = vmatpush.bf16.msra.mxu0 %v1135
  %1719 = vmatpush.bf16.msra.mxu0 %v1131
  %1720 = vmatpush.bf16.msra.mxu0 %v1127
  %1721 = vmatpush.bf16.msra.mxu0 %v1123
  %1722 = vmatpush.bf16.msra.mxu0 %v1119
  %1723 = vmatmul.bf16.gmra.mxu0 %v303
  %v1724 = vpop.f32.mrf.mxu0
  %v1725 = vadd.f32 %v1712, %v1724
  %v1726 = vpop.f32.mrf.mxu0
  %1727 = vdwg.mxu0
  %1728 = vmatpush.bf16.msra.mxu0 %v1179
  %1729 = vmatpush.bf16.msra.mxu0 %v1175
  %1730 = vmatpush.bf16.msra.mxu0 %v1171
  %1731 = vmatpush.bf16.msra.mxu0 %v1167
  %1732 = vmatpush.bf16.msra.mxu0 %v1163
  %1733 = vmatpush.bf16.msra.mxu0 %v1159
  %1734 = vmatpush.bf16.msra.mxu0 %v1155
  %1735 = vmatpush.bf16.msra.mxu0 %v1151
  %1736 = vmatmul.bf16.gmra.mxu0 %v304
  %v1737 = vpop.f32.mrf.mxu0
  %v1738 = vadd.f32 %v1725, %v1737
  %v1739 = vpop.f32.mrf.mxu0
  %1740 = vdwg.mxu0
  %1741 = vmatpush.bf16.msra.mxu0 %v1211
  %1742 = vmatpush.bf16.msra.mxu0 %v1207
  %1743 = vmatpush.bf16.msra.mxu0 %v1203
  %1744 = vmatpush.bf16.msra.mxu0 %v1199
  %1745 = vmatpush.bf16.msra.mxu0 %v1195
  %1746 = vmatpush.bf16.msra.mxu0 %v1191
  %1747 = vmatpush.bf16.msra.mxu0 %v1187
  %1748 = vmatpush.bf16.msra.mxu0 %v1183
  %1749 = vmatmul.bf16.gmra.mxu0 %v305
  %v1750 = vpop.f32.mrf.mxu0
  %v1751 = vadd.f32 %v1738, %v1750
  %v1752 = vpop.f32.mrf.mxu0
  %1753 = vdwg.mxu0
  %1754 = vmatpush.bf16.msra.mxu0 %v1243
  %1755 = vmatpush.bf16.msra.mxu0 %v1239
  %1756 = vmatpush.bf16.msra.mxu0 %v1235
  %1757 = vmatpush.bf16.msra.mxu0 %v1231
  %1758 = vmatpush.bf16.msra.mxu0 %v1227
  %1759 = vmatpush.bf16.msra.mxu0 %v1223
  %1760 = vmatpush.bf16.msra.mxu0 %v1219
  %1761 = vmatpush.bf16.msra.mxu0 %v1215
  %1762 = vmatmul.bf16.gmra.mxu0 %v306
  %v1763 = vpop.f32.mrf.mxu0
  %v1764 = vadd.f32 %v1751, %v1763
  %v1765 = vpop.f32.mrf.mxu0
  %1766 = vdwg.mxu0
  %1767 = vmatpush.bf16.msra.mxu0 %v1275
  %1768 = vmatpush.bf16.msra.mxu0 %v1271
  %1769 = vmatpush.bf16.msra.mxu0 %v1267
  %1770 = vmatpush.bf16.msra.mxu0 %v1263
  %1771 = vmatpush.bf16.msra.mxu0 %v1259
  %1772 = vmatpush.bf16.msra.mxu0 %v1255
  %1773 = vmatpush.bf16.msra.mxu0 %v1251
  %1774 = vmatpush.bf16.msra.mxu0 %v1247
  %1775 = vmatmul.bf16.gmra.mxu0 %v307
  %v1776 = vpop.f32.mrf.mxu0
  %v1777 = vadd.f32 %v1764, %v1776
  %v1778 = vpop.f32.mrf.mxu0
  %1779 = vdwg.mxu0
  %1780 = vmatpush.bf16.msra.mxu0 %v1307
  %1781 = vmatpush.bf16.msra.mxu0 %v1303
  %1782 = vmatpush.bf16.msra.mxu0 %v1299
  %1783 = vmatpush.bf16.msra.mxu0 %v1295
  %1784 = vmatpush.bf16.msra.mxu0 %v1291
  %1785 = vmatpush.bf16.msra.mxu0 %v1287
  %1786 = vmatpush.bf16.msra.mxu0 %v1283
  %1787 = vmatpush.bf16.msra.mxu0 %v1279
  %1788 = vmatmul.bf16.gmra.mxu0 %v308
  %v1789 = vpop.f32.mrf.mxu0
  %v1790 = vadd.f32 %v1777, %v1789
  %v1791 = vpop.f32.mrf.mxu0
  %1792 = vdwg.mxu0
  %1793 = vmatpush.bf16.msra.mxu0 %v1339
  %1794 = vmatpush.bf16.msra.mxu0 %v1335
  %1795 = vmatpush.bf16.msra.mxu0 %v1331
  %1796 = vmatpush.bf16.msra.mxu0 %v1327
  %1797 = vmatpush.bf16.msra.mxu0 %v1323
  %1798 = vmatpush.bf16.msra.mxu0 %v1319
  %1799 = vmatpush.bf16.msra.mxu0 %v1315
  %1800 = vmatpush.bf16.msra.mxu0 %v1311
  %1801 = vmatmul.bf16.gmra.mxu0 %v309
  %v1802 = vpop.f32.mrf.mxu0
  %v1803 = vadd.f32 %v1790, %v1802
  %v1804 = vpop.f32.mrf.mxu0
  %1805 = vdwg.mxu0
  %1806 = vmatpush.bf16.msra.mxu0 %v1116
  %1807 = vmatpush.bf16.msra.mxu0 %v1112
  %1808 = vmatpush.bf16.msra.mxu0 %v1108
  %1809 = vmatpush.bf16.msra.mxu0 %v1104
  %1810 = vmatpush.bf16.msra.mxu0 %v1100
  %1811 = vmatpush.bf16.msra.mxu0 %v1096
  %1812 = vmatpush.bf16.msra.mxu0 %v1092
  %1813 = vmatpush.bf16.msra.mxu0 %v1088
  %1814 = vmatmul.bf16.gmra.mxu0 %v302
  %v1815 = vpop.f32.mrf.mxu0
  %v1816 = vadd.f32 %v284, %v1815
  %v1817 = vpop.f32.mrf.mxu0
  %1818 = vdwg.mxu0
  %1819 = vmatpush.bf16.msra.mxu0 %v1148
  %1820 = vmatpush.bf16.msra.mxu0 %v1144
  %1821 = vmatpush.bf16.msra.mxu0 %v1140
  %1822 = vmatpush.bf16.msra.mxu0 %v1136
  %1823 = vmatpush.bf16.msra.mxu0 %v1132
  %1824 = vmatpush.bf16.msra.mxu0 %v1128
  %1825 = vmatpush.bf16.msra.mxu0 %v1124
  %1826 = vmatpush.bf16.msra.mxu0 %v1120
  %1827 = vmatmul.bf16.gmra.mxu0 %v303
  %v1828 = vpop.f32.mrf.mxu0
  %v1829 = vadd.f32 %v1816, %v1828
  %v1830 = vpop.f32.mrf.mxu0
  %1831 = vdwg.mxu0
  %1832 = vmatpush.bf16.msra.mxu0 %v1180
  %1833 = vmatpush.bf16.msra.mxu0 %v1176
  %1834 = vmatpush.bf16.msra.mxu0 %v1172
  %1835 = vmatpush.bf16.msra.mxu0 %v1168
  %1836 = vmatpush.bf16.msra.mxu0 %v1164
  %1837 = vmatpush.bf16.msra.mxu0 %v1160
  %1838 = vmatpush.bf16.msra.mxu0 %v1156
  %1839 = vmatpush.bf16.msra.mxu0 %v1152
  %1840 = vmatmul.bf16.gmra.mxu0 %v304
  %v1841 = vpop.f32.mrf.mxu0
  %v1842 = vadd.f32 %v1829, %v1841
  %v1843 = vpop.f32.mrf.mxu0
  %1844 = vdwg.mxu0
  %1845 = vmatpush.bf16.msra.mxu0 %v1212
  %1846 = vmatpush.bf16.msra.mxu0 %v1208
  %1847 = vmatpush.bf16.msra.mxu0 %v1204
  %1848 = vmatpush.bf16.msra.mxu0 %v1200
  %1849 = vmatpush.bf16.msra.mxu0 %v1196
  %1850 = vmatpush.bf16.msra.mxu0 %v1192
  %1851 = vmatpush.bf16.msra.mxu0 %v1188
  %1852 = vmatpush.bf16.msra.mxu0 %v1184
  %1853 = vmatmul.bf16.gmra.mxu0 %v305
  %v1854 = vpop.f32.mrf.mxu0
  %v1855 = vadd.f32 %v1842, %v1854
  %v1856 = vpop.f32.mrf.mxu0
  %1857 = vdwg.mxu0
  %1858 = vmatpush.bf16.msra.mxu0 %v1244
  %1859 = vmatpush.bf16.msra.mxu0 %v1240
  %1860 = vmatpush.bf16.msra.mxu0 %v1236
  %1861 = vmatpush.bf16.msra.mxu0 %v1232
  %1862 = vmatpush.bf16.msra.mxu0 %v1228
  %1863 = vmatpush.bf16.msra.mxu0 %v1224
  %1864 = vmatpush.bf16.msra.mxu0 %v1220
  %1865 = vmatpush.bf16.msra.mxu0 %v1216
  %1866 = vmatmul.bf16.gmra.mxu0 %v306
  %v1867 = vpop.f32.mrf.mxu0
  %v1868 = vadd.f32 %v1855, %v1867
  %v1869 = vpop.f32.mrf.mxu0
  %1870 = vdwg.mxu0
  %1871 = vmatpush.bf16.msra.mxu0 %v1276
  %1872 = vmatpush.bf16.msra.mxu0 %v1272
  %1873 = vmatpush.bf16.msra.mxu0 %v1268
  %1874 = vmatpush.bf16.msra.mxu0 %v1264
  %1875 = vmatpush.bf16.msra.mxu0 %v1260
  %1876 = vmatpush.bf16.msra.mxu0 %v1256
  %1877 = vmatpush.bf16.msra.mxu0 %v1252
  %1878 = vmatpush.bf16.msra.mxu0 %v1248
  %1879 = vmatmul.bf16.gmra.mxu0 %v307
  %v1880 = vpop.f32.mrf.mxu0
  %v1881 = vadd.f32 %v1868, %v1880
  %v1882 = vpop.f32.mrf.mxu0
  %1883 = vdwg.mxu0
  %1884 = vmatpush.bf16.msra.mxu0 %v1308
  %1885 = vmatpush.bf16.msra.mxu0 %v1304
  %1886 = vmatpush.bf16.msra.mxu0 %v1300
  %1887 = vmatpush.bf16.msra.mxu0 %v1296
  %1888 = vmatpush.bf16.msra.mxu0 %v1292
  %1889 = vmatpush.bf16.msra.mxu0 %v1288
  %1890 = vmatpush.bf16.msra.mxu0 %v1284
  %1891 = vmatpush.bf16.msra.mxu0 %v1280
  %1892 = vmatmul.bf16.gmra.mxu0 %v308
  %v1893 = vpop.f32.mrf.mxu0
  %v1894 = vadd.f32 %v1881, %v1893
  %v1895 = vpop.f32.mrf.mxu0
  %1896 = vdwg.mxu0
  %1897 = vmatpush.bf16.msra.mxu0 %v1340
  %1898 = vmatpush.bf16.msra.mxu0 %v1336
  %1899 = vmatpush.bf16.msra.mxu0 %v1332
  %1900 = vmatpush.bf16.msra.mxu0 %v1328
  %1901 = vmatpush.bf16.msra.mxu0 %v1324
  %1902 = vmatpush.bf16.msra.mxu0 %v1320
  %1903 = vmatpush.bf16.msra.mxu0 %v1316
  %1904 = vmatpush.bf16.msra.mxu0 %v1312
  %1905 = vmatmul.bf16.gmra.mxu0 %v309
  %v1906 = vpop.f32.mrf.mxu0
  %v1907 = vadd.f32 %v1894, %v1906
  %v1908 = vpop.f32.mrf.mxu0
  %1909 = vdwg.mxu0
  %1910 = vmatpush.bf16.msra.mxu0 %v1117
  %1911 = vmatpush.bf16.msra.mxu0 %v1113
  %1912 = vmatpush.bf16.msra.mxu0 %v1109
  %1913 = vmatpush.bf16.msra.mxu0 %v1105
  %1914 = vmatpush.bf16.msra.mxu0 %v1101
  %1915 = vmatpush.bf16.msra.mxu0 %v1097
  %1916 = vmatpush.bf16.msra.mxu0 %v1093
  %1917 = vmatpush.bf16.msra.mxu0 %v1089
  %1918 = vmatmul.bf16.gmra.mxu0 %v302
  %v1919 = vpop.f32.mrf.mxu0
  %v1920 = vadd.f32 %v285, %v1919
  %v1921 = vpop.f32.mrf.mxu0
  %1922 = vdwg.mxu0
  %1923 = vmatpush.bf16.msra.mxu0 %v1149
  %1924 = vmatpush.bf16.msra.mxu0 %v1145
  %1925 = vmatpush.bf16.msra.mxu0 %v1141
  %1926 = vmatpush.bf16.msra.mxu0 %v1137
  %1927 = vmatpush.bf16.msra.mxu0 %v1133
  %1928 = vmatpush.bf16.msra.mxu0 %v1129
  %1929 = vmatpush.bf16.msra.mxu0 %v1125
  %1930 = vmatpush.bf16.msra.mxu0 %v1121
  %1931 = vmatmul.bf16.gmra.mxu0 %v303
  %v1932 = vpop.f32.mrf.mxu0
  %v1933 = vadd.f32 %v1920, %v1932
  %v1934 = vpop.f32.mrf.mxu0
  %1935 = vdwg.mxu0
  %1936 = vmatpush.bf16.msra.mxu0 %v1181
  %1937 = vmatpush.bf16.msra.mxu0 %v1177
  %1938 = vmatpush.bf16.msra.mxu0 %v1173
  %1939 = vmatpush.bf16.msra.mxu0 %v1169
  %1940 = vmatpush.bf16.msra.mxu0 %v1165
  %1941 = vmatpush.bf16.msra.mxu0 %v1161
  %1942 = vmatpush.bf16.msra.mxu0 %v1157
  %1943 = vmatpush.bf16.msra.mxu0 %v1153
  %1944 = vmatmul.bf16.gmra.mxu0 %v304
  %v1945 = vpop.f32.mrf.mxu0
  %v1946 = vadd.f32 %v1933, %v1945
  %v1947 = vpop.f32.mrf.mxu0
  %1948 = vdwg.mxu0
  %1949 = vmatpush.bf16.msra.mxu0 %v1213
  %1950 = vmatpush.bf16.msra.mxu0 %v1209
  %1951 = vmatpush.bf16.msra.mxu0 %v1205
  %1952 = vmatpush.bf16.msra.mxu0 %v1201
  %1953 = vmatpush.bf16.msra.mxu0 %v1197
  %1954 = vmatpush.bf16.msra.mxu0 %v1193
  %1955 = vmatpush.bf16.msra.mxu0 %v1189
  %1956 = vmatpush.bf16.msra.mxu0 %v1185
  %1957 = vmatmul.bf16.gmra.mxu0 %v305
  %v1958 = vpop.f32.mrf.mxu0
  %v1959 = vadd.f32 %v1946, %v1958
  %v1960 = vpop.f32.mrf.mxu0
  %1961 = vdwg.mxu0
  %1962 = vmatpush.bf16.msra.mxu0 %v1245
  %1963 = vmatpush.bf16.msra.mxu0 %v1241
  %1964 = vmatpush.bf16.msra.mxu0 %v1237
  %1965 = vmatpush.bf16.msra.mxu0 %v1233
  %1966 = vmatpush.bf16.msra.mxu0 %v1229
  %1967 = vmatpush.bf16.msra.mxu0 %v1225
  %1968 = vmatpush.bf16.msra.mxu0 %v1221
  %1969 = vmatpush.bf16.msra.mxu0 %v1217
  %1970 = vmatmul.bf16.gmra.mxu0 %v306
  %v1971 = vpop.f32.mrf.mxu0
  %v1972 = vadd.f32 %v1959, %v1971
  %v1973 = vpop.f32.mrf.mxu0
  %1974 = vdwg.mxu0
  %1975 = vmatpush.bf16.msra.mxu0 %v1277
  %1976 = vmatpush.bf16.msra.mxu0 %v1273
  %1977 = vmatpush.bf16.msra.mxu0 %v1269
  %1978 = vmatpush.bf16.msra.mxu0 %v1265
  %1979 = vmatpush.bf16.msra.mxu0 %v1261
  %1980 = vmatpush.bf16.msra.mxu0 %v1257
  %1981 = vmatpush.bf16.msra.mxu0 %v1253
  %1982 = vmatpush.bf16.msra.mxu0 %v1249
  %1983 = vmatmul.bf16.gmra.mxu0 %v307
  %v1984 = vpop.f32.mrf.mxu0
  %v1985 = vadd.f32 %v1972, %v1984
  %v1986 = vpop.f32.mrf.mxu0
  %1987 = vdwg.mxu0
  %1988 = vmatpush.bf16.msra.mxu0 %v1309
  %1989 = vmatpush.bf16.msra.mxu0 %v1305
  %1990 = vmatpush.bf16.msra.mxu0 %v1301
  %1991 = vmatpush.bf16.msra.mxu0 %v1297
  %1992 = vmatpush.bf16.msra.mxu0 %v1293
  %1993 = vmatpush.bf16.msra.mxu0 %v1289
  %1994 = vmatpush.bf16.msra.mxu0 %v1285
  %1995 = vmatpush.bf16.msra.mxu0 %v1281
  %1996 = vmatmul.bf16.gmra.mxu0 %v308
  %v1997 = vpop.f32.mrf.mxu0
  %v1998 = vadd.f32 %v1985, %v1997
  %v1999 = vpop.f32.mrf.mxu0
  %2000 = vdwg.mxu0
  %2001 = vmatpush.bf16.msra.mxu0 %v1341
  %2002 = vmatpush.bf16.msra.mxu0 %v1337
  %2003 = vmatpush.bf16.msra.mxu0 %v1333
  %2004 = vmatpush.bf16.msra.mxu0 %v1329
  %2005 = vmatpush.bf16.msra.mxu0 %v1325
  %2006 = vmatpush.bf16.msra.mxu0 %v1321
  %2007 = vmatpush.bf16.msra.mxu0 %v1317
  %2008 = vmatpush.bf16.msra.mxu0 %v1313
  %2009 = vmatmul.bf16.gmra.mxu0 %v309
  %v2010 = vpop.f32.mrf.mxu0
  %v2011 = vadd.f32 %v1998, %v2010
  %v2012 = vpop.f32.mrf.mxu0
  %2013 = vdwg.mxu0
  %v2014 = vmax.f32 %v1699, 0.0
  %v2015 = vmax.f32 %v1803, 0.0
  %v2016 = vmax.f32 %v1907, 0.0
  %v2017 = vmax.f32 %v2011, 0.0
  %v2018 = vpack.c.bf16 %v2014, %v2014
  %v2019 = vpack.c.bf16 %v2015, %v2015
  %v2020 = vpack.c.bf16 %v2016, %v2016
  %v2021 = vpack.c.bf16 %v2017, %v2017
  %v2022 = vld [vmem:[%s3] sm:$0xf]
  %v2023 = vld [vmem:[%s3 + $0x4] sm:$0xf]
  %v2024 = vld [vmem:[%s3 + $0x8] sm:$0xf]
  %v2025 = vld [vmem:[%s3 + $0xc] sm:$0xf]
  %v2026 = vld [vmem:[%s3 + $0x10] sm:$0xf]
  %v2027 = vld [vmem:[%s3 + $0x14] sm:$0xf]
  %v2028 = vld [vmem:[%s3 + $0x18] sm:$0xf]
  %v2029 = vld [vmem:[%s3 + $0x1c] sm:$0xf]
  %v2030 = vld [vmem:[%s3 + $0x20] sm:$0xf]
  %v2031 = vld [vmem:[%s3 + $0x24] sm:$0xf]
  %v2032 = vld [vmem:[%s3 + $0x28] sm:$0xf]
  %v2033 = vld [vmem:[%s3 + $0x2c] sm:$0xf]
  %v2034 = vld [vmem:[%s3 + $0x30] sm:$0xf]
  %v2035 = vld [vmem:[%s3 + $0x34] sm:$0xf]
  %v2036 = vld [vmem:[%s3 + $0x38] sm:$0xf]
  %v2037 = vld [vmem:[%s3 + $0x3c] sm:$0xf]
  %v2038 = vld [vmem:[%s3 + $0x40] sm:$0xf]
  %v2039 = vld [vmem:[%s3 + $0x44] sm:$0xf]
  %v2040 = vld [vmem:[%s3 + $0x48] sm:$0xf]
  %v2041 = vld [vmem:[%s3 + $0x4c] sm:$0xf]
  %v2042 = vld [vmem:[%s3 + $0x50] sm:$0xf]
  %v2043 = vld [vmem:[%s3 + $0x54] sm:$0xf]
  %v2044 = vld [vmem:[%s3 + $0x58] sm:$0xf]
  %v2045 = vld [vmem:[%s3 + $0x5c] sm:$0xf]
  %v2046 = vld [vmem:[%s3 + $0x60] sm:$0xf]
  %v2047 = vld [vmem:[%s3 + $0x64] sm:$0xf]
  %v2048 = vld [vmem:[%s3 + $0x68] sm:$0xf]
  %v2049 = vld [vmem:[%s3 + $0x6c] sm:$0xf]
  %v2050 = vld [vmem:[%s3 + $0x70] sm:$0xf]
  %v2051 = vld [vmem:[%s3 + $0x74] sm:$0xf]
  %v2052 = vld [vmem:[%s3 + $0x78] sm:$0xf]
  %v2053 = vld [vmem:[%s3 + $0x7c] sm:$0xf]
  %v2054 = vld [vmem:[%s3 + $0x80] sm:$0xf]
  %v2055 = vld [vmem:[%s3 + $0x84] sm:$0xf]
  %v2056 = vld [vmem:[%s3 + $0x88] sm:$0xf]
  %v2057 = vld [vmem:[%s3 + $0x8c] sm:$0xf]
  %v2058 = vld [vmem:[%s3 + $0x90] sm:$0xf]
  %v2059 = vld [vmem:[%s3 + $0x94] sm:$0xf]
  %v2060 = vld [vmem:[%s3 + $0x98] sm:$0xf]
  %v2061 = vld [vmem:[%s3 + $0x9c] sm:$0xf]
  %v2062 = vld [vmem:[%s3 + $0xa0] sm:$0xf]
  %v2063 = vld [vmem:[%s3 + $0xa4] sm:$0xf]
  %v2064 = vld [vmem:[%s3 + $0xa8] sm:$0xf]
  %v2065 = vld [vmem:[%s3 + $0xac] sm:$0xf]
  %v2066 = vld [vmem:[%s3 + $0xb0] sm:$0xf]
  %v2067 = vld [vmem:[%s3 + $0xb4] sm:$0xf]
  %v2068 = vld [vmem:[%s3 + $0xb8] sm:$0xf]
  %v2069 = vld [vmem:[%s3 + $0xbc] sm:$0xf]
  %v2070 = vld [vmem:[%s3 + $0xc0] sm:$0xf]
  %v2071 = vld [vmem:[%s3 + $0xc4] sm:$0xf]
  %v2072 = vld [vmem:[%s3 + $0xc8] sm:$0xf]
  %v2073 = vld [vmem:[%s3 + $0xcc] sm:$0xf]
  %v2074 = vld [vmem:[%s3 + $0xd0] sm:$0xf]
  %v2075 = vld [vmem:[%s3 + $0xd4] sm:$0xf]
  %v2076 = vld [vmem:[%s3 + $0xd8] sm:$0xf]
  %v2077 = vld [vmem:[%s3 + $0xdc] sm:$0xf]
  %v2078 = vld [vmem:[%s3 + $0xe0] sm:$0xf]
  %v2079 = vld [vmem:[%s3 + $0xe4] sm:$0xf]
  %v2080 = vld [vmem:[%s3 + $0xe8] sm:$0xf]
  %v2081 = vld [vmem:[%s3 + $0xec] sm:$0xf]
  %v2082 = vld [vmem:[%s3 + $0xf0] sm:$0xf]
  %v2083 = vld [vmem:[%s3 + $0xf4] sm:$0xf]
  %v2084 = vld [vmem:[%s3 + $0xf8] sm:$0xf]
  %v2085 = vld [vmem:[%s3 + $0xfc] sm:$0xf]
  %v2086 = vld [vmem:[%s4] sm:$0x1]
  %v2088 = vperm.slane %v2086, 0
  %v2154 = vunpack.c.l.b16 %v2022
  %v2155 = vunpack.c.l.b16 %v2023
  %v2156 = vunpack.c.l.b16 %v2024
  %v2157 = vunpack.c.l.b16 %v2025
  %v2158 = vunpack.c.l.b16 %v2026
  %v2159 = vunpack.c.l.b16 %v2027
  %v2160 = vunpack.c.l.b16 %v2028
  %v2161 = vunpack.c.l.b16 %v2029
  %v2162 = vunpack.c.l.b16 %v2030
  %v2163 = vunpack.c.l.b16 %v2031
  %v2164 = vunpack.c.l.b16 %v2032
  %v2165 = vunpack.c.l.b16 %v2033
  %v2166 = vunpack.c.l.b16 %v2034
  %v2167 = vunpack.c.l.b16 %v2035
  %v2168 = vunpack.c.l.b16 %v2036
  %v2169 = vunpack.c.l.b16 %v2037
  %v2170 = vunpack.c.l.b16 %v2038
  %v2171 = vunpack.c.l.b16 %v2039
  %v2172 = vunpack.c.l.b16 %v2040
  %v2173 = vunpack.c.l.b16 %v2041
  %v2174 = vunpack.c.l.b16 %v2042
  %v2175 = vunpack.c.l.b16 %v2043
  %v2176 = vunpack.c.l.b16 %v2044
  %v2177 = vunpack.c.l.b16 %v2045
  %v2178 = vunpack.c.l.b16 %v2046
  %v2179 = vunpack.c.l.b16 %v2047
  %v2180 = vunpack.c.l.b16 %v2048
  %v2181 = vunpack.c.l.b16 %v2049
  %v2182 = vunpack.c.l.b16 %v2050
  %v2183 = vunpack.c.l.b16 %v2051
  %v2184 = vunpack.c.l.b16 %v2052
  %v2185 = vunpack.c.l.b16 %v2053
  %v2186 = vunpack.c.l.b16 %v2054
  %v2187 = vunpack.c.l.b16 %v2055
  %v2188 = vunpack.c.l.b16 %v2056
  %v2189 = vunpack.c.l.b16 %v2057
  %v2190 = vunpack.c.l.b16 %v2058
  %v2191 = vunpack.c.l.b16 %v2059
  %v2192 = vunpack.c.l.b16 %v2060
  %v2193 = vunpack.c.l.b16 %v2061
  %v2194 = vunpack.c.l.b16 %v2062
  %v2195 = vunpack.c.l.b16 %v2063
  %v2196 = vunpack.c.l.b16 %v2064
  %v2197 = vunpack.c.l.b16 %v2065
  %v2198 = vunpack.c.l.b16 %v2066
  %v2199 = vunpack.c.l.b16 %v2067
  %v2200 = vunpack.c.l.b16 %v2068
  %v2201 = vunpack.c.l.b16 %v2069
  %v2202 = vunpack.c.l.b16 %v2070
  %v2203 = vunpack.c.l.b16 %v2071
  %v2204 = vunpack.c.l.b16 %v2072
  %v2205 = vunpack.c.l.b16 %v2073
  %v2206 = vunpack.c.l.b16 %v2074
  %v2207 = vunpack.c.l.b16 %v2075
  %v2208 = vunpack.c.l.b16 %v2076
  %v2209 = vunpack.c.l.b16 %v2077
  %v2210 = vunpack.c.l.b16 %v2078
  %v2211 = vunpack.c.l.b16 %v2079
  %v2212 = vunpack.c.l.b16 %v2080
  %v2213 = vunpack.c.l.b16 %v2081
  %v2214 = vunpack.c.l.b16 %v2082
  %v2215 = vunpack.c.l.b16 %v2083
  %v2216 = vunpack.c.l.b16 %v2084
  %v2217 = vunpack.c.l.b16 %v2085
  %v2218 = vpack.c.b16 %v2155, %v2154
  %v2219 = vpack.c.b16 %v2157, %v2156
  %v2220 = vpack.c.b16 %v2159, %v2158
  %v2221 = vpack.c.b16 %v2161, %v2160
  %v2222 = vpack.c.b16 %v2163, %v2162
  %v2223 = vpack.c.b16 %v2165, %v2164
  %v2224 = vpack.c.b16 %v2167, %v2166
  %v2225 = vpack.c.b16 %v2169, %v2168
  %v2226 = vpack.c.b16 %v2171, %v2170
  %v2227 = vpack.c.b16 %v2173, %v2172
  %v2228 = vpack.c.b16 %v2175, %v2174
  %v2229 = vpack.c.b16 %v2177, %v2176
  %v2230 = vpack.c.b16 %v2179, %v2178
  %v2231 = vpack.c.b16 %v2181, %v2180
  %v2232 = vpack.c.b16 %v2183, %v2182
  %v2233 = vpack.c.b16 %v2185, %v2184
  %v2234 = vpack.c.b16 %v2187, %v2186
  %v2235 = vpack.c.b16 %v2189, %v2188
  %v2236 = vpack.c.b16 %v2191, %v2190
  %v2237 = vpack.c.b16 %v2193, %v2192
  %v2238 = vpack.c.b16 %v2195, %v2194
  %v2239 = vpack.c.b16 %v2197, %v2196
  %v2240 = vpack.c.b16 %v2199, %v2198
  %v2241 = vpack.c.b16 %v2201, %v2200
  %v2242 = vpack.c.b16 %v2203, %v2202
  %v2243 = vpack.c.b16 %v2205, %v2204
  %v2244 = vpack.c.b16 %v2207, %v2206
  %v2245 = vpack.c.b16 %v2209, %v2208
  %v2246 = vpack.c.b16 %v2211, %v2210
  %v2247 = vpack.c.b16 %v2213, %v2212
  %v2248 = vpack.c.b16 %v2215, %v2214
  %v2249 = vpack.c.b16 %v2217, %v2216
  %2282 = vmatpush.bf16.msra.mxu0 %v2225
  %2283 = vmatpush.bf16.msra.mxu0 %v2224
  %2284 = vmatpush.bf16.msra.mxu0 %v2223
  %2285 = vmatpush.bf16.msra.mxu0 %v2222
  %2286 = vmatpush.bf16.msra.mxu0 %v2221
  %2287 = vmatpush.bf16.msra.mxu0 %v2220
  %2288 = vmatpush.bf16.msra.mxu0 %v2219
  %2289 = vmatpush.bf16.msra.mxu0 %v2218
  %2290 = vmatmul.bf16.gmra.mxu0 %v2018
  %v2291 = vpop.f32.mrf.mxu0
  %v2292 = vadd.f32 %v2088, %v2291
  %v2293 = vpop.f32.mrf.mxu0
  %2294 = vdwg.mxu0
  %2295 = vmatpush.bf16.msra.mxu0 %v2233
  %2296 = vmatpush.bf16.msra.mxu0 %v2232
  %2297 = vmatpush.bf16.msra.mxu0 %v2231
  %2298 = vmatpush.bf16.msra.mxu0 %v2230
  %2299 = vmatpush.bf16.msra.mxu0 %v2229
  %2300 = vmatpush.bf16.msra.mxu0 %v2228
  %2301 = vmatpush.bf16.msra.mxu0 %v2227
  %2302 = vmatpush.bf16.msra.mxu0 %v2226
  %2303 = vmatmul.bf16.gmra.mxu0 %v2019
  %v2304 = vpop.f32.mrf.mxu0
  %v2305 = vadd.f32 %v2292, %v2304
  %v2306 = vpop.f32.mrf.mxu0
  %2307 = vdwg.mxu0
  %2308 = vmatpush.bf16.msra.mxu0 %v2241
  %2309 = vmatpush.bf16.msra.mxu0 %v2240
  %2310 = vmatpush.bf16.msra.mxu0 %v2239
  %2311 = vmatpush.bf16.msra.mxu0 %v2238
  %2312 = vmatpush.bf16.msra.mxu0 %v2237
  %2313 = vmatpush.bf16.msra.mxu0 %v2236
  %2314 = vmatpush.bf16.msra.mxu0 %v2235
  %2315 = vmatpush.bf16.msra.mxu0 %v2234
  %2316 = vmatmul.bf16.gmra.mxu0 %v2020
  %v2317 = vpop.f32.mrf.mxu0
  %v2318 = vadd.f32 %v2305, %v2317
  %v2319 = vpop.f32.mrf.mxu0
  %2320 = vdwg.mxu0
  %2321 = vmatpush.bf16.msra.mxu0 %v2249
  %2322 = vmatpush.bf16.msra.mxu0 %v2248
  %2323 = vmatpush.bf16.msra.mxu0 %v2247
  %2324 = vmatpush.bf16.msra.mxu0 %v2246
  %2325 = vmatpush.bf16.msra.mxu0 %v2245
  %2326 = vmatpush.bf16.msra.mxu0 %v2244
  %2327 = vmatpush.bf16.msra.mxu0 %v2243
  %2328 = vmatpush.bf16.msra.mxu0 %v2242
  %2329 = vmatmul.bf16.gmra.mxu0 %v2021
  %v2330 = vpop.f32.mrf.mxu0
  %v2331 = vadd.f32 %v2318, %v2330
  %v2332 = vpop.f32.mrf.mxu0
  %2333 = vdwg.mxu0
  %2334 = vst [vmem:[%s5] sm:$0xff] %v2331
  // Predicated region
  $region22: #{cnn_mnist_forward.5} parent=0 // pred_check
    _
  $region23: #{cnn_mnist_forward.5} parent=0 // pred_check_branch
    %2336 = sbr.rel (0) target = $region25
  $region24: #{cnn_mnist_forward.5} parent=0 // pred_region
    _
  $region25: #{cnn_mnist_forward.5} parent=0 // pred_fallthru
    _
  // Predicated region
  $region26: #{cnn_mnist_forward.5} parent=0 // pred_check
    _
  $region27: #{cnn_mnist_forward.5} parent=0 // pred_check_branch
    %2338 = sbr.rel (0) target = $region29
  $region28: #{cnn_mnist_forward.5} parent=0 // pred_region
    _
  $region29: #{cnn_mnist_forward.5} parent=0 // pred_fallthru
    _

</llo_original>
